<compile_context>
chip_gen: v6e
topology: v6e:2x2x1
jax: 0.10.0
libtpu: 0.0.40
codegen_flags: <defaults>
</compile_context>

<pallas_src>
import math
import numpy as np
import jax
import jax.numpy as jnp
from jax import lax
from jax.experimental import pallas as pl
from jax.experimental.pallas import tpu as pltpu

D_MODEL = 32
HEADS = 4
D_K = D_MODEL // HEADS
D_FF = 2048          # FeedForward default d_ff=2048
EPS = 1e-6
N_LAYERS = 2
VOCAB = 100


def _encoder_stack_kernel(x_ref, amask_ref, wqkv_ref, bqkv_ref, wo_ref, bo_ref,
                          w1_ref, b1_ref, w2t_ref, b2_ref, np_ref, out_ref):
    N, D = x_ref.shape                 # N = B * S (whole batch in one block)
    x = x_ref[...]                     # [N, D] f32
    add_mask = amask_ref[0]            # [N, N] additive mask (0 / -1e9 / -2e9)

    wqkv = wqkv_ref[...]               # [D, 3D]  packed Wq|Wk|Wv (x @ W form)
    bqkv = bqkv_ref[...]               # [1, 3D]
    wo = wo_ref[...]                   # [D, D]
    bo = bo_ref[...]                   # [1, D]
    w1 = w1_ref[...]                   # [D, D_FF]  bf16
    b1 = b1_ref[...]                   # [1, D_FF]  f32
    w2t = w2t_ref[...]                 # [D, D_FF]  bf16 (= W2^T, lane-dense)
    b2 = b2_ref[...]                   # [1, D]     f32

    inv_sqrt_dk = 1.0 / math.sqrt(D_K)

    def norm(v, i):
        alpha = np_ref[i, 0]           # [1, D]
        bias = np_ref[i, 1]            # [1, D]
        mu = jnp.mean(v, axis=-1, keepdims=True)
        # torch.std defaults to the unbiased (N-1) estimator
        var = jnp.sum((v - mu) ** 2, axis=-1, keepdims=True) / (D - 1)
        inv = pl.reciprocal(jnp.sqrt(var) + EPS, approx=True)
        return alpha * ((v - mu) * inv) + bias

    # get_clones deep-copies one initialized layer => all layers share one
    # parameter set, so the whole stack runs inside this single invocation.
    for _ in range(N_LAYERS):
        # ---- multi-head self-attention ----
        # Fused QKV: one full-lane-width MXU push instead of 12 tiny ones.
        qkv = jnp.dot(x, wqkv, preferred_element_type=jnp.float32) + bqkv  # [N,3D]
        head_outs = []
        for h in range(HEADS):                      # static unroll, H = 4
            qh = qkv[:, h * D_K:(h + 1) * D_K]                      # [N, Dk]
            kh = qkv[:, D + h * D_K:D + (h + 1) * D_K]              # [N, Dk]
            vh = qkv[:, 2 * D + h * D_K:2 * D + (h + 1) * D_K]      # [N, Dk]
            # q @ k^T without an explicit transpose node.
            sc = lax.dot_general(qh, kh, (((1,), (1,)), ((), ())),
                                 preferred_element_type=jnp.float32)
            sc = sc * inv_sqrt_dk + add_mask                        # [N, N]
            sc = sc - jnp.max(sc, axis=-1, keepdims=True)           # softmax
            e = jnp.exp(sc)
            p = e * pl.reciprocal(jnp.sum(e, axis=-1, keepdims=True),
                                  approx=True)
            head_outs.append(jnp.dot(p, vh,
                                     preferred_element_type=jnp.float32))
        concat = jnp.concatenate(head_outs, axis=-1)                # [N, D]
        mha = jnp.dot(concat, wo, preferred_element_type=jnp.float32) + bo
        x = norm(x + mha, 0)                                        # AddNorm1

        # ---- feed-forward (bf16 operands, f32 accumulation) ----
        h1 = jnp.maximum(
            jnp.dot(x.astype(jnp.bfloat16), w1,
                    preferred_element_type=jnp.float32) + b1, 0.0)  # [N, D_FF]
        # h1 @ W2 computed as h1 @ (W2^T)^T: contraction on the 2048 axis of
        # both operands keeps w2 lane-dense in VMEM and the DMA unstrided.
        ff = lax.dot_general(h1.astype(jnp.bfloat16), w2t,
                             (((1,), (1,)), ((), ())),
                             preferred_element_type=jnp.float32) + b2
        x = norm(x + ff, 1)                                         # AddNorm2

    out_ref[...] = x


def encoder_stack(x, mask, params):
    """x: [B, S, D] f32 (embedded + positional); mask: [B, 1, S] int."""
    B, S, D = x.shape
    # Latency-bound at these shapes: run the whole batch as ONE block / ONE
    # grid step (no serial grid overhead on v5e/v6e, no duplicated weight DMA
    # on v7x).  Weights are therefore DMA'd from HBM exactly once.
    N = B * S

    # ---- one-time layout prep in plain JAX (outside the kernel) ----
    aw, ab = params["attn_w"], params["attn_b"]            # [4,D,D], [4,1,D]
    wqkv = jnp.concatenate([aw[0], aw[1], aw[2]], axis=1)  # [D, 3D]
    bqkv = jnp.concatenate([ab[0], ab[1], ab[2]], axis=1)  # [1, 3D]
    wo, bo = aw[3], ab[3]                                  # [D, D], [1, D]

    w1 = params["ff_w1"].astype(jnp.bfloat16)              # [D, D_FF]
    w2t = params["ff_w2"].T.astype(jnp.bfloat16)           # [D, D_FF] lane-dense

    # Additive attention mask over the flattened N = B*S rows:
    #   -1e9 where the torch mask is 0 (masked_fill equivalent),
    #   -2e9 for cross-batch pairs inside the block (softmax prob == 0 exactly
    #        after the max subtraction, i.e. identical to computing each batch
    #        element independently).
    b_id = jnp.repeat(jnp.arange(B, dtype=jnp.int32), S)              # [N]
    same_b = b_id[:, None] == b_id[None, :]                           # [N, N]
    key_ok = (mask[:, 0, :] != 0).reshape(N)                          # [N]
    add_mask = (jnp.where(same_b, 0.0, -2e9)
                + jnp.where(key_ok, 0.0, -1e9)[None, :]
                ).astype(jnp.float32)[None]                           # [1,N,N]

    x2 = x.reshape(N, D).astype(jnp.float32)

    def full(shape):
        return pl.BlockSpec(shape, lambda i, _n=len(shape): (0,) * _n)

    out = pl.pallas_call(
        _encoder_stack_kernel,
        out_shape=jax.ShapeDtypeStruct((N, D), jnp.float32),
        grid=(1,),
        in_specs=[
            full((N, D)),              # x (all rows)
            full((1, N, N)),           # additive mask
            full((D, 3 * D)),          # packed Wq|Wk|Wv
            full((1, 3 * D)),          # packed q/k/v biases
            full((D, D)),              # Wo
            full((1, D)),              # out bias
            full((D, D_FF)),           # ff W1 (bf16)
            full((1, D_FF)),           # ff b1
            full((D, D_FF)),           # ff W2^T (bf16, lane-dense)
            full((1, D)),              # ff b2
            full((2, 2, 1, D)),        # norm alpha/bias
        ],
        out_specs=full((N, D)),
        compiler_params=pltpu.CompilerParams(
            dimension_semantics=("arbitrary",)),
    )(x2, add_mask, wqkv, bqkv, wo, bo,
      w1, params["ff_b1"], w2t, params["ff_b2"], params["norm_p"])
    return out.reshape(B, S, D)


def make_pe(max_seq_len=200, emb_dim=D_MODEL):
    # Exact (quirky) formula from PositionalEmbedding: base 1000, sin twice.
    pe = np.zeros((max_seq_len, emb_dim), dtype=np.float32)
    for pos in range(max_seq_len):
        for i in range(0, emb_dim, 2):
            pe[pos, i] = math.sin(pos / 1000 ** (2 * i / emb_dim))
            pe[pos, i + 1] = math.sin(pos / 1000 ** (2 * (i + 1) / emb_dim))
    return jnp.asarray(pe)


def init_params(key):
    ks = jax.random.split(key, 7)
    scale = 0.05
    emb = jax.random.normal(ks[0], (VOCAB, D_MODEL), jnp.float32)
    # [q/k/v/out] weights applied as x @ W + b
    attn_w = scale * jax.random.normal(ks[1], (4, D_MODEL, D_MODEL), jnp.float32)
    attn_b = scale * jax.random.normal(ks[2], (4, 1, D_MODEL), jnp.float32)
    ff_w1 = scale * jax.random.normal(ks[3], (D_MODEL, D_FF), jnp.float32)
    ff_b1 = scale * jax.random.normal(ks[4], (1, D_FF), jnp.float32)
    ff_w2 = scale * jax.random.normal(ks[5], (D_FF, D_MODEL), jnp.float32)
    ff_b2 = scale * jax.random.normal(ks[6], (1, D_MODEL), jnp.float32)
    # Norm init: alpha = ones, bias = zeros (2 norms x {alpha, bias})
    norm_p = jnp.broadcast_to(
        jnp.array([1.0, 0.0], jnp.float32)[None, :, None, None],
        (2, 2, 1, D_MODEL)).astype(jnp.float32)
    return dict(emb=emb, attn_w=attn_w, attn_b=attn_b,
                ff_w1=ff_w1, ff_b1=ff_b1, ff_w2=ff_w2, ff_b2=ff_b2,
                norm_p=norm_p)


def encoder_forward(src_token, mask, params, pe):
    # Embedder + PositionalEmbedding (plain-JAX glue).
    x = jnp.take(params["emb"], src_token, axis=0)      # [B, S, D]
    x = x * math.sqrt(D_MODEL)
    # NOTE: PositionalEmbedding slices pe by x.size(0) (= batch!) and relies
    # on broadcasting [B, D] against [B, S, D]; that only type-checks when
    # B == S, which we reproduce exactly here.
    x = x + pe[: x.shape[0]]
    # TODO(synk): dropout layers are eval-mode identity and therefore omitted.
    return encoder_stack(x, mask, params)


if __name__ == "__main__":
    B = 4
    S = 4          # must equal B (see positional-embedding broadcast note)
    key = jax.random.PRNGKey(0)
    kp, kt = jax.random.split(key, 2)
    params = init_params(kp)
    pe = make_pe()

    src_token = jax.random.randint(kt, (B, S), 0, VOCAB, dtype=jnp.int32)
    mask = jnp.ones((B, 1, S), jnp.int32)      # padding mask: all positions valid

    out = encoder_forward(src_token, mask, params, pe)
    out = jax.block_until_ready(out)
    assert out.shape == (B, S, D_MODEL)
    assert bool(jnp.all(jnp.isfinite(out)))
    print("KERNEL_OK")
</pallas_src>

<mosaic_0001>
module attributes {stable_mosaic.version = 11 : i64} {
  func.func @_encoder_stack_kernel(%arg0: i32, %arg1: memref<16x32xf32, #tpu.memory_space<vmem>>, %arg2: memref<1x16x16xf32, #tpu.memory_space<vmem>>, %arg3: memref<32x96xf32, #tpu.memory_space<vmem>>, %arg4: memref<1x96xf32, #tpu.memory_space<vmem>>, %arg5: memref<32x32xf32, #tpu.memory_space<vmem>>, %arg6: memref<1x32xf32, #tpu.memory_space<vmem>>, %arg7: memref<32x2048xbf16, #tpu.memory_space<vmem>>, %arg8: memref<1x2048xf32, #tpu.memory_space<vmem>>, %arg9: memref<32x2048xbf16, #tpu.memory_space<vmem>>, %arg10: memref<1x32xf32, #tpu.memory_space<vmem>>, %arg11: memref<2x2x1x32xf32, #tpu.memory_space<vmem>>, %arg12: memref<16x32xf32, #tpu.memory_space<vmem>>) attributes {dimension_semantics = [#tpu.dimension_semantics<arbitrary>], iteration_bounds = array<i64: 1>, scalar_prefetch = 0 : i64, scratch_operands = 0 : i64, tpu.core_type = #tpu.core_type<tc>, window_params = [{pipeline_mode = #tpu.pipeline_mode<synchronous>, transform_indices = @transform_0, window_bounds = array<i64: 16, 32>}, {pipeline_mode = #tpu.pipeline_mode<synchronous>, transform_indices = @transform_1, window_bounds = array<i64: 1, 16, 16>}, {pipeline_mode = #tpu.pipeline_mode<synchronous>, transform_indices = @transform_2, window_bounds = array<i64: 32, 96>}, {pipeline_mode = #tpu.pipeline_mode<synchronous>, transform_indices = @transform_3, window_bounds = array<i64: 1, 96>}, {pipeline_mode = #tpu.pipeline_mode<synchronous>, transform_indices = @transform_4, window_bounds = array<i64: 32, 32>}, {pipeline_mode = #tpu.pipeline_mode<synchronous>, transform_indices = @transform_5, window_bounds = array<i64: 1, 32>}, {pipeline_mode = #tpu.pipeline_mode<synchronous>, transform_indices = @transform_6, window_bounds = array<i64: 32, 2048>}, {pipeline_mode = #tpu.pipeline_mode<synchronous>, transform_indices = @transform_7, window_bounds = array<i64: 1, 2048>}, {pipeline_mode = #tpu.pipeline_mode<synchronous>, transform_indices = @transform_8, window_bounds = array<i64: 32, 2048>}, {pipeline_mode = #tpu.pipeline_mode<synchronous>, transform_indices = @transform_9, window_bounds = array<i64: 1, 32>}, {pipeline_mode = #tpu.pipeline_mode<synchronous>, transform_indices = @transform_10, window_bounds = array<i64: 2, 2, 1, 32>}, {pipeline_mode = #tpu.pipeline_mode<synchronous>, transform_indices = @transform_11, window_bounds = array<i64: 16, 32>}]} {
    %c0 = arith.constant 0 : index
    %c0_0 = arith.constant 0 : index
    %0 = vector.load %arg1[%c0, %c0_0] : memref<16x32xf32, #tpu.memory_space<vmem>>, vector<16x32xf32>
    %c0_1 = arith.constant 0 : index
    %c0_2 = arith.constant 0 : index
    %c0_3 = arith.constant 0 : index
    %1 = vector.load %arg2[%c0_1, %c0_2, %c0_3] : memref<1x16x16xf32, #tpu.memory_space<vmem>>, vector<1x16x16xf32>
    %2 = vector.shape_cast %1 : vector<1x16x16xf32> to vector<16x16xf32>
    %c0_4 = arith.constant 0 : index
    %c0_5 = arith.constant 0 : index
    %3 = vector.load %arg3[%c0_4, %c0_5] : memref<32x96xf32, #tpu.memory_space<vmem>>, vector<32x96xf32>
    %c0_6 = arith.constant 0 : index
    %c0_7 = arith.constant 0 : index
    %4 = vector.load %arg4[%c0_6, %c0_7] : memref<1x96xf32, #tpu.memory_space<vmem>>, vector<1x96xf32>
    %c0_8 = arith.constant 0 : index
    %c0_9 = arith.constant 0 : index
    %5 = vector.load %arg5[%c0_8, %c0_9] : memref<32x32xf32, #tpu.memory_space<vmem>>, vector<32x32xf32>
    %c0_10 = arith.constant 0 : index
    %c0_11 = arith.constant 0 : index
    %6 = vector.load %arg6[%c0_10, %c0_11] : memref<1x32xf32, #tpu.memory_space<vmem>>, vector<1x32xf32>
    %c0_12 = arith.constant 0 : index
    %c0_13 = arith.constant 0 : index
    %7 = vector.load %arg7[%c0_12, %c0_13] : memref<32x2048xbf16, #tpu.memory_space<vmem>>, vector<32x2048xbf16>
    %c0_14 = arith.constant 0 : index
    %c0_15 = arith.constant 0 : index
    %8 = vector.load %arg8[%c0_14, %c0_15] : memref<1x2048xf32, #tpu.memory_space<vmem>>, vector<1x2048xf32>
    %c0_16 = arith.constant 0 : index
    %c0_17 = arith.constant 0 : index
    %9 = vector.load %arg9[%c0_16, %c0_17] : memref<32x2048xbf16, #tpu.memory_space<vmem>>, vector<32x2048xbf16>
    %c0_18 = arith.constant 0 : index
    %c0_19 = arith.constant 0 : index
    %10 = vector.load %arg10[%c0_18, %c0_19] : memref<1x32xf32, #tpu.memory_space<vmem>>, vector<1x32xf32>
    %cst = arith.constant dense<0.000000e+00> : vector<16x96xf32>
    %11 = tpu.matmul %0, %3, %cst {dimension_numbers = #tpu.dot_dimension_numbers<[1], [0], [0], [1], [0, 0, 1, 1], [], []>} : vector<16x32xf32>, vector<32x96xf32>, vector<16x96xf32> -> vector<16x96xf32>
    %12 = vector.broadcast %4 : vector<1x96xf32> to vector<16x96xf32>
    %13 = arith.addf %11, %12 : vector<16x96xf32>
    %14 = vector.extract_strided_slice %13 {offsets = [0, 0], sizes = [16, 8], strides = [1, 1]} : vector<16x96xf32> to vector<16x8xf32>
    %15 = vector.extract_strided_slice %13 {offsets = [0, 32], sizes = [16, 8], strides = [1, 1]} : vector<16x96xf32> to vector<16x8xf32>
    %16 = vector.extract_strided_slice %13 {offsets = [0, 64], sizes = [16, 8], strides = [1, 1]} : vector<16x96xf32> to vector<16x8xf32>
    %cst_20 = arith.constant dense<0.000000e+00> : vector<16x16xf32>
    %17 = tpu.matmul %14, %15, %cst_20 {dimension_numbers = #tpu.dot_dimension_numbers<[1], [1], [0], [0], [0, 0, 1, 0], [], []>} : vector<16x8xf32>, vector<16x8xf32>, vector<16x16xf32> -> vector<16x16xf32>
    %cst_21 = arith.constant 0.353553385 : f32
    %18 = vector.broadcast %cst_21 : f32 to vector<16x16xf32>
    %19 = arith.mulf %17, %18 : vector<16x16xf32>
    %20 = arith.addf %19, %2 : vector<16x16xf32>
    %cst_22 = arith.constant dense<0xFF800000> : vector<16xf32>
    %21 = vector.multi_reduction <maximumf>, %20, %cst_22 [1] : vector<16x16xf32> to vector<16xf32>
    %22 = vector.shape_cast %21 : vector<16xf32> to vector<16x1xf32>
    %23 = vector.broadcast %22 : vector<16x1xf32> to vector<16x16xf32>
    %24 = arith.subf %20, %23 : vector<16x16xf32>
    %25 = math.exp %24 : vector<16x16xf32>
    %cst_23 = arith.constant dense<0.000000e+00> : vector<16xf32>
    %26 = vector.multi_reduction <add>, %25, %cst_23 [1] : vector<16x16xf32> to vector<16xf32>
    %27 = vector.shape_cast %26 : vector<16xf32> to vector<16x1xf32>
    %28 = tpu.reciprocal %27 {approx = true} : vector<16x1xf32> -> vector<16x1xf32>
    %29 = vector.broadcast %28 : vector<16x1xf32> to vector<16x16xf32>
    %30 = arith.mulf %25, %29 : vector<16x16xf32>
    %cst_24 = arith.constant dense<0.000000e+00> : vector<16x8xf32>
    %31 = tpu.matmul %30, %16, %cst_24 {dimension_numbers = #tpu.dot_dimension_numbers<[1], [0], [0], [1], [0, 0, 1, 1], [], []>} : vector<16x16xf32>, vector<16x8xf32>, vector<16x8xf32> -> vector<16x8xf32>
    %32 = vector.extract_strided_slice %13 {offsets = [0, 8], sizes = [16, 8], strides = [1, 1]} : vector<16x96xf32> to vector<16x8xf32>
    %33 = vector.extract_strided_slice %13 {offsets = [0, 40], sizes = [16, 8], strides = [1, 1]} : vector<16x96xf32> to vector<16x8xf32>
    %34 = vector.extract_strided_slice %13 {offsets = [0, 72], sizes = [16, 8], strides = [1, 1]} : vector<16x96xf32> to vector<16x8xf32>
    %cst_25 = arith.constant dense<0.000000e+00> : vector<16x16xf32>
    %35 = tpu.matmul %32, %33, %cst_25 {dimension_numbers = #tpu.dot_dimension_numbers<[1], [1], [0], [0], [0, 0, 1, 0], [], []>} : vector<16x8xf32>, vector<16x8xf32>, vector<16x16xf32> -> vector<16x16xf32>
    %cst_26 = arith.constant 0.353553385 : f32
    %36 = vector.broadcast %cst_26 : f32 to vector<16x16xf32>
    %37 = arith.mulf %35, %36 : vector<16x16xf32>
    %38 = arith.addf %37, %2 : vector<16x16xf32>
    %cst_27 = arith.constant dense<0xFF800000> : vector<16xf32>
    %39 = vector.multi_reduction <maximumf>, %38, %cst_27 [1] : vector<16x16xf32> to vector<16xf32>
    %40 = vector.shape_cast %39 : vector<16xf32> to vector<16x1xf32>
    %41 = vector.broadcast %40 : vector<16x1xf32> to vector<16x16xf32>
    %42 = arith.subf %38, %41 : vector<16x16xf32>
    %43 = math.exp %42 : vector<16x16xf32>
    %cst_28 = arith.constant dense<0.000000e+00> : vector<16xf32>
    %44 = vector.multi_reduction <add>, %43, %cst_28 [1] : vector<16x16xf32> to vector<16xf32>
    %45 = vector.shape_cast %44 : vector<16xf32> to vector<16x1xf32>
    %46 = tpu.reciprocal %45 {approx = true} : vector<16x1xf32> -> vector<16x1xf32>
    %47 = vector.broadcast %46 : vector<16x1xf32> to vector<16x16xf32>
    %48 = arith.mulf %43, %47 : vector<16x16xf32>
    %cst_29 = arith.constant dense<0.000000e+00> : vector<16x8xf32>
    %49 = tpu.matmul %48, %34, %cst_29 {dimension_numbers = #tpu.dot_dimension_numbers<[1], [0], [0], [1], [0, 0, 1, 1], [], []>} : vector<16x16xf32>, vector<16x8xf32>, vector<16x8xf32> -> vector<16x8xf32>
    %50 = vector.extract_strided_slice %13 {offsets = [0, 16], sizes = [16, 8], strides = [1, 1]} : vector<16x96xf32> to vector<16x8xf32>
    %51 = vector.extract_strided_slice %13 {offsets = [0, 48], sizes = [16, 8], strides = [1, 1]} : vector<16x96xf32> to vector<16x8xf32>
    %52 = vector.extract_strided_slice %13 {offsets = [0, 80], sizes = [16, 8], strides = [1, 1]} : vector<16x96xf32> to vector<16x8xf32>
    %cst_30 = arith.constant dense<0.000000e+00> : vector<16x16xf32>
    %53 = tpu.matmul %50, %51, %cst_30 {dimension_numbers = #tpu.dot_dimension_numbers<[1], [1], [0], [0], [0, 0, 1, 0], [], []>} : vector<16x8xf32>, vector<16x8xf32>, vector<16x16xf32> -> vector<16x16xf32>
    %cst_31 = arith.constant 0.353553385 : f32
    %54 = vector.broadcast %cst_31 : f32 to vector<16x16xf32>
    %55 = arith.mulf %53, %54 : vector<16x16xf32>
    %56 = arith.addf %55, %2 : vector<16x16xf32>
    %cst_32 = arith.constant dense<0xFF800000> : vector<16xf32>
    %57 = vector.multi_reduction <maximumf>, %56, %cst_32 [1] : vector<16x16xf32> to vector<16xf32>
    %58 = vector.shape_cast %57 : vector<16xf32> to vector<16x1xf32>
    %59 = vector.broadcast %58 : vector<16x1xf32> to vector<16x16xf32>
    %60 = arith.subf %56, %59 : vector<16x16xf32>
    %61 = math.exp %60 : vector<16x16xf32>
    %cst_33 = arith.constant dense<0.000000e+00> : vector<16xf32>
    %62 = vector.multi_reduction <add>, %61, %cst_33 [1] : vector<16x16xf32> to vector<16xf32>
    %63 = vector.shape_cast %62 : vector<16xf32> to vector<16x1xf32>
    %64 = tpu.reciprocal %63 {approx = true} : vector<16x1xf32> -> vector<16x1xf32>
    %65 = vector.broadcast %64 : vector<16x1xf32> to vector<16x16xf32>
    %66 = arith.mulf %61, %65 : vector<16x16xf32>
    %cst_34 = arith.constant dense<0.000000e+00> : vector<16x8xf32>
    %67 = tpu.matmul %66, %52, %cst_34 {dimension_numbers = #tpu.dot_dimension_numbers<[1], [0], [0], [1], [0, 0, 1, 1], [], []>} : vector<16x16xf32>, vector<16x8xf32>, vector<16x8xf32> -> vector<16x8xf32>
    %68 = vector.extract_strided_slice %13 {offsets = [0, 24], sizes = [16, 8], strides = [1, 1]} : vector<16x96xf32> to vector<16x8xf32>
    %69 = vector.extract_strided_slice %13 {offsets = [0, 56], sizes = [16, 8], strides = [1, 1]} : vector<16x96xf32> to vector<16x8xf32>
    %70 = vector.extract_strided_slice %13 {offsets = [0, 88], sizes = [16, 8], strides = [1, 1]} : vector<16x96xf32> to vector<16x8xf32>
    %cst_35 = arith.constant dense<0.000000e+00> : vector<16x16xf32>
    %71 = tpu.matmul %68, %69, %cst_35 {dimension_numbers = #tpu.dot_dimension_numbers<[1], [1], [0], [0], [0, 0, 1, 0], [], []>} : vector<16x8xf32>, vector<16x8xf32>, vector<16x16xf32> -> vector<16x16xf32>
    %cst_36 = arith.constant 0.353553385 : f32
    %72 = vector.broadcast %cst_36 : f32 to vector<16x16xf32>
    %73 = arith.mulf %71, %72 : vector<16x16xf32>
    %74 = arith.addf %73, %2 : vector<16x16xf32>
    %cst_37 = arith.constant dense<0xFF800000> : vector<16xf32>
    %75 = vector.multi_reduction <maximumf>, %74, %cst_37 [1] : vector<16x16xf32> to vector<16xf32>
    %76 = vector.shape_cast %75 : vector<16xf32> to vector<16x1xf32>
    %77 = vector.broadcast %76 : vector<16x1xf32> to vector<16x16xf32>
    %78 = arith.subf %74, %77 : vector<16x16xf32>
    %79 = math.exp %78 : vector<16x16xf32>
    %cst_38 = arith.constant dense<0.000000e+00> : vector<16xf32>
    %80 = vector.multi_reduction <add>, %79, %cst_38 [1] : vector<16x16xf32> to vector<16xf32>
    %81 = vector.shape_cast %80 : vector<16xf32> to vector<16x1xf32>
    %82 = tpu.reciprocal %81 {approx = true} : vector<16x1xf32> -> vector<16x1xf32>
    %83 = vector.broadcast %82 : vector<16x1xf32> to vector<16x16xf32>
    %84 = arith.mulf %79, %83 : vector<16x16xf32>
    %cst_39 = arith.constant dense<0.000000e+00> : vector<16x8xf32>
    %85 = tpu.matmul %84, %70, %cst_39 {dimension_numbers = #tpu.dot_dimension_numbers<[1], [0], [0], [1], [0, 0, 1, 1], [], []>} : vector<16x16xf32>, vector<16x8xf32>, vector<16x8xf32> -> vector<16x8xf32>
    %86 = tpu.concatenate %31, %49, %67, %85 in 1 : vector<16x8xf32>, vector<16x8xf32>, vector<16x8xf32>, vector<16x8xf32> -> vector<16x32xf32>
    %cst_40 = arith.constant dense<0.000000e+00> : vector<16x32xf32>
    %87 = tpu.matmul %86, %5, %cst_40 {dimension_numbers = #tpu.dot_dimension_numbers<[1], [0], [0], [1], [0, 0, 1, 1], [], []>} : vector<16x32xf32>, vector<32x32xf32>, vector<16x32xf32> -> vector<16x32xf32>
    %88 = vector.broadcast %6 : vector<1x32xf32> to vector<16x32xf32>
    %89 = arith.addf %87, %88 : vector<16x32xf32>
    %90 = arith.addf %0, %89 : vector<16x32xf32>
    %c0_41 = arith.constant 0 : index
    %c0_42 = arith.constant 0 : index
    %c0_43 = arith.constant 0 : index
    %c0_44 = arith.constant 0 : index
    %91 = vector.load %arg11[%c0_41, %c0_42, %c0_43, %c0_44] : memref<2x2x1x32xf32, #tpu.memory_space<vmem>>, vector<1x1x1x32xf32>
    %92 = vector.shape_cast %91 : vector<1x1x1x32xf32> to vector<1x32xf32>
    %c0_45 = arith.constant 0 : index
    %c1 = arith.constant 1 : index
    %c0_46 = arith.constant 0 : index
    %c0_47 = arith.constant 0 : index
    %93 = vector.load %arg11[%c0_45, %c1, %c0_46, %c0_47] : memref<2x2x1x32xf32, #tpu.memory_space<vmem>>, vector<1x1x1x32xf32>
    %94 = vector.shape_cast %93 : vector<1x1x1x32xf32> to vector<1x32xf32>
    %cst_48 = arith.constant dense<0.000000e+00> : vector<16xf32>
    %95 = vector.multi_reduction <add>, %90, %cst_48 [1] : vector<16x32xf32> to vector<16xf32>
    %96 = vector.shape_cast %95 : vector<16xf32> to vector<16x1xf32>
    %cst_49 = arith.constant 3.200000e+01 : f32
    %97 = vector.broadcast %cst_49 : f32 to vector<16x1xf32>
    %98 = arith.divf %96, %97 : vector<16x1xf32>
    %99 = vector.broadcast %98 : vector<16x1xf32> to vector<16x32xf32>
    %100 = arith.subf %90, %99 : vector<16x32xf32>
    %101 = arith.mulf %100, %100 : vector<16x32xf32>
    %cst_50 = arith.constant dense<0.000000e+00> : vector<16xf32>
    %102 = vector.multi_reduction <add>, %101, %cst_50 [1] : vector<16x32xf32> to vector<16xf32>
    %103 = vector.shape_cast %102 : vector<16xf32> to vector<16x1xf32>
    %cst_51 = arith.constant 3.100000e+01 : f32
    %104 = vector.broadcast %cst_51 : f32 to vector<16x1xf32>
    %105 = arith.divf %103, %104 : vector<16x1xf32>
    %106 = math.sqrt %105 : vector<16x1xf32>
    %cst_52 = arith.constant 9.99999997E-7 : f32
    %107 = vector.broadcast %cst_52 : f32 to vector<16x1xf32>
    %108 = arith.addf %106, %107 : vector<16x1xf32>
    %109 = tpu.reciprocal %108 {approx = true} : vector<16x1xf32> -> vector<16x1xf32>
    %110 = vector.broadcast %98 : vector<16x1xf32> to vector<16x32xf32>
    %111 = arith.subf %90, %110 : vector<16x32xf32>
    %112 = vector.broadcast %109 : vector<16x1xf32> to vector<16x32xf32>
    %113 = arith.mulf %111, %112 : vector<16x32xf32>
    %114 = vector.broadcast %92 : vector<1x32xf32> to vector<16x32xf32>
    %115 = arith.mulf %114, %113 : vector<16x32xf32>
    %116 = vector.broadcast %94 : vector<1x32xf32> to vector<16x32xf32>
    %117 = arith.addf %115, %116 : vector<16x32xf32>
    %118 = arith.truncf %117 : vector<16x32xf32> to vector<16x32xbf16>
    %cst_53 = arith.constant dense<0.000000e+00> : vector<16x2048xf32>
    %119 = tpu.matmul %118, %7, %cst_53 {dimension_numbers = #tpu.dot_dimension_numbers<[1], [0], [0], [1], [0, 0, 1, 1], [], []>} : vector<16x32xbf16>, vector<32x2048xbf16>, vector<16x2048xf32> -> vector<16x2048xf32>
    %120 = vector.broadcast %8 : vector<1x2048xf32> to vector<16x2048xf32>
    %121 = arith.addf %119, %120 : vector<16x2048xf32>
    %cst_54 = arith.constant 0.000000e+00 : f32
    %122 = vector.broadcast %cst_54 : f32 to vector<16x2048xf32>
    %123 = arith.maximumf %121, %122 : vector<16x2048xf32>
    %124 = arith.truncf %123 : vector<16x2048xf32> to vector<16x2048xbf16>
    %cst_55 = arith.constant dense<0.000000e+00> : vector<16x32xf32>
    %125 = tpu.matmul %124, %9, %cst_55 {dimension_numbers = #tpu.dot_dimension_numbers<[1], [1], [0], [0], [0, 0, 1, 0], [], []>} : vector<16x2048xbf16>, vector<32x2048xbf16>, vector<16x32xf32> -> vector<16x32xf32>
    %126 = vector.broadcast %10 : vector<1x32xf32> to vector<16x32xf32>
    %127 = arith.addf %125, %126 : vector<16x32xf32>
    %128 = arith.addf %117, %127 : vector<16x32xf32>
    %c1_56 = arith.constant 1 : index
    %c0_57 = arith.constant 0 : index
    %c0_58 = arith.constant 0 : index
    %c0_59 = arith.constant 0 : index
    %129 = vector.load %arg11[%c1_56, %c0_57, %c0_58, %c0_59] : memref<2x2x1x32xf32, #tpu.memory_space<vmem>>, vector<1x1x1x32xf32>
    %130 = vector.shape_cast %129 : vector<1x1x1x32xf32> to vector<1x32xf32>
    %c1_60 = arith.constant 1 : index
    %c1_61 = arith.constant 1 : index
    %c0_62 = arith.constant 0 : index
    %c0_63 = arith.constant 0 : index
    %131 = vector.load %arg11[%c1_60, %c1_61, %c0_62, %c0_63] : memref<2x2x1x32xf32, #tpu.memory_space<vmem>>, vector<1x1x1x32xf32>
    %132 = vector.shape_cast %131 : vector<1x1x1x32xf32> to vector<1x32xf32>
    %cst_64 = arith.constant dense<0.000000e+00> : vector<16xf32>
    %133 = vector.multi_reduction <add>, %128, %cst_64 [1] : vector<16x32xf32> to vector<16xf32>
    %134 = vector.shape_cast %133 : vector<16xf32> to vector<16x1xf32>
    %cst_65 = arith.constant 3.200000e+01 : f32
    %135 = vector.broadcast %cst_65 : f32 to vector<16x1xf32>
    %136 = arith.divf %134, %135 : vector<16x1xf32>
    %137 = vector.broadcast %136 : vector<16x1xf32> to vector<16x32xf32>
    %138 = arith.subf %128, %137 : vector<16x32xf32>
    %139 = arith.mulf %138, %138 : vector<16x32xf32>
    %cst_66 = arith.constant dense<0.000000e+00> : vector<16xf32>
    %140 = vector.multi_reduction <add>, %139, %cst_66 [1] : vector<16x32xf32> to vector<16xf32>
    %141 = vector.shape_cast %140 : vector<16xf32> to vector<16x1xf32>
    %cst_67 = arith.constant 3.100000e+01 : f32
    %142 = vector.broadcast %cst_67 : f32 to vector<16x1xf32>
    %143 = arith.divf %141, %142 : vector<16x1xf32>
    %144 = math.sqrt %143 : vector<16x1xf32>
    %cst_68 = arith.constant 9.99999997E-7 : f32
    %145 = vector.broadcast %cst_68 : f32 to vector<16x1xf32>
    %146 = arith.addf %144, %145 : vector<16x1xf32>
    %147 = tpu.reciprocal %146 {approx = true} : vector<16x1xf32> -> vector<16x1xf32>
    %148 = vector.broadcast %136 : vector<16x1xf32> to vector<16x32xf32>
    %149 = arith.subf %128, %148 : vector<16x32xf32>
    %150 = vector.broadcast %147 : vector<16x1xf32> to vector<16x32xf32>
    %151 = arith.mulf %149, %150 : vector<16x32xf32>
    %152 = vector.broadcast %130 : vector<1x32xf32> to vector<16x32xf32>
    %153 = arith.mulf %152, %151 : vector<16x32xf32>
    %154 = vector.broadcast %132 : vector<1x32xf32> to vector<16x32xf32>
    %155 = arith.addf %153, %154 : vector<16x32xf32>
    %cst_69 = arith.constant dense<0.000000e+00> : vector<16x96xf32>
    %156 = tpu.matmul %155, %3, %cst_69 {dimension_numbers = #tpu.dot_dimension_numbers<[1], [0], [0], [1], [0, 0, 1, 1], [], []>} : vector<16x32xf32>, vector<32x96xf32>, vector<16x96xf32> -> vector<16x96xf32>
    %157 = vector.broadcast %4 : vector<1x96xf32> to vector<16x96xf32>
    %158 = arith.addf %156, %157 : vector<16x96xf32>
    %159 = vector.extract_strided_slice %158 {offsets = [0, 0], sizes = [16, 8], strides = [1, 1]} : vector<16x96xf32> to vector<16x8xf32>
    %160 = vector.extract_strided_slice %158 {offsets = [0, 32], sizes = [16, 8], strides = [1, 1]} : vector<16x96xf32> to vector<16x8xf32>
    %161 = vector.extract_strided_slice %158 {offsets = [0, 64], sizes = [16, 8], strides = [1, 1]} : vector<16x96xf32> to vector<16x8xf32>
    %cst_70 = arith.constant dense<0.000000e+00> : vector<16x16xf32>
    %162 = tpu.matmul %159, %160, %cst_70 {dimension_numbers = #tpu.dot_dimension_numbers<[1], [1], [0], [0], [0, 0, 1, 0], [], []>} : vector<16x8xf32>, vector<16x8xf32>, vector<16x16xf32> -> vector<16x16xf32>
    %cst_71 = arith.constant 0.353553385 : f32
    %163 = vector.broadcast %cst_71 : f32 to vector<16x16xf32>
    %164 = arith.mulf %162, %163 : vector<16x16xf32>
    %165 = arith.addf %164, %2 : vector<16x16xf32>
    %cst_72 = arith.constant dense<0xFF800000> : vector<16xf32>
    %166 = vector.multi_reduction <maximumf>, %165, %cst_72 [1] : vector<16x16xf32> to vector<16xf32>
    %167 = vector.shape_cast %166 : vector<16xf32> to vector<16x1xf32>
    %168 = vector.broadcast %167 : vector<16x1xf32> to vector<16x16xf32>
    %169 = arith.subf %165, %168 : vector<16x16xf32>
    %170 = math.exp %169 : vector<16x16xf32>
    %cst_73 = arith.constant dense<0.000000e+00> : vector<16xf32>
    %171 = vector.multi_reduction <add>, %170, %cst_73 [1] : vector<16x16xf32> to vector<16xf32>
    %172 = vector.shape_cast %171 : vector<16xf32> to vector<16x1xf32>
    %173 = tpu.reciprocal %172 {approx = true} : vector<16x1xf32> -> vector<16x1xf32>
    %174 = vector.broadcast %173 : vector<16x1xf32> to vector<16x16xf32>
    %175 = arith.mulf %170, %174 : vector<16x16xf32>
    %cst_74 = arith.constant dense<0.000000e+00> : vector<16x8xf32>
    %176 = tpu.matmul %175, %161, %cst_74 {dimension_numbers = #tpu.dot_dimension_numbers<[1], [0], [0], [1], [0, 0, 1, 1], [], []>} : vector<16x16xf32>, vector<16x8xf32>, vector<16x8xf32> -> vector<16x8xf32>
    %177 = vector.extract_strided_slice %158 {offsets = [0, 8], sizes = [16, 8], strides = [1, 1]} : vector<16x96xf32> to vector<16x8xf32>
    %178 = vector.extract_strided_slice %158 {offsets = [0, 40], sizes = [16, 8], strides = [1, 1]} : vector<16x96xf32> to vector<16x8xf32>
    %179 = vector.extract_strided_slice %158 {offsets = [0, 72], sizes = [16, 8], strides = [1, 1]} : vector<16x96xf32> to vector<16x8xf32>
    %cst_75 = arith.constant dense<0.000000e+00> : vector<16x16xf32>
    %180 = tpu.matmul %177, %178, %cst_75 {dimension_numbers = #tpu.dot_dimension_numbers<[1], [1], [0], [0], [0, 0, 1, 0], [], []>} : vector<16x8xf32>, vector<16x8xf32>, vector<16x16xf32> -> vector<16x16xf32>
    %cst_76 = arith.constant 0.353553385 : f32
    %181 = vector.broadcast %cst_76 : f32 to vector<16x16xf32>
    %182 = arith.mulf %180, %181 : vector<16x16xf32>
    %183 = arith.addf %182, %2 : vector<16x16xf32>
    %cst_77 = arith.constant dense<0xFF800000> : vector<16xf32>
    %184 = vector.multi_reduction <maximumf>, %183, %cst_77 [1] : vector<16x16xf32> to vector<16xf32>
    %185 = vector.shape_cast %184 : vector<16xf32> to vector<16x1xf32>
    %186 = vector.broadcast %185 : vector<16x1xf32> to vector<16x16xf32>
    %187 = arith.subf %183, %186 : vector<16x16xf32>
    %188 = math.exp %187 : vector<16x16xf32>
    %cst_78 = arith.constant dense<0.000000e+00> : vector<16xf32>
    %189 = vector.multi_reduction <add>, %188, %cst_78 [1] : vector<16x16xf32> to vector<16xf32>
    %190 = vector.shape_cast %189 : vector<16xf32> to vector<16x1xf32>
    %191 = tpu.reciprocal %190 {approx = true} : vector<16x1xf32> -> vector<16x1xf32>
    %192 = vector.broadcast %191 : vector<16x1xf32> to vector<16x16xf32>
    %193 = arith.mulf %188, %192 : vector<16x16xf32>
    %cst_79 = arith.constant dense<0.000000e+00> : vector<16x8xf32>
    %194 = tpu.matmul %193, %179, %cst_79 {dimension_numbers = #tpu.dot_dimension_numbers<[1], [0], [0], [1], [0, 0, 1, 1], [], []>} : vector<16x16xf32>, vector<16x8xf32>, vector<16x8xf32> -> vector<16x8xf32>
    %195 = vector.extract_strided_slice %158 {offsets = [0, 16], sizes = [16, 8], strides = [1, 1]} : vector<16x96xf32> to vector<16x8xf32>
    %196 = vector.extract_strided_slice %158 {offsets = [0, 48], sizes = [16, 8], strides = [1, 1]} : vector<16x96xf32> to vector<16x8xf32>
    %197 = vector.extract_strided_slice %158 {offsets = [0, 80], sizes = [16, 8], strides = [1, 1]} : vector<16x96xf32> to vector<16x8xf32>
    %cst_80 = arith.constant dense<0.000000e+00> : vector<16x16xf32>
    %198 = tpu.matmul %195, %196, %cst_80 {dimension_numbers = #tpu.dot_dimension_numbers<[1], [1], [0], [0], [0, 0, 1, 0], [], []>} : vector<16x8xf32>, vector<16x8xf32>, vector<16x16xf32> -> vector<16x16xf32>
    %cst_81 = arith.constant 0.353553385 : f32
    %199 = vector.broadcast %cst_81 : f32 to vector<16x16xf32>
    %200 = arith.mulf %198, %199 : vector<16x16xf32>
    %201 = arith.addf %200, %2 : vector<16x16xf32>
    %cst_82 = arith.constant dense<0xFF800000> : vector<16xf32>
    %202 = vector.multi_reduction <maximumf>, %201, %cst_82 [1] : vector<16x16xf32> to vector<16xf32>
    %203 = vector.shape_cast %202 : vector<16xf32> to vector<16x1xf32>
    %204 = vector.broadcast %203 : vector<16x1xf32> to vector<16x16xf32>
    %205 = arith.subf %201, %204 : vector<16x16xf32>
    %206 = math.exp %205 : vector<16x16xf32>
    %cst_83 = arith.constant dense<0.000000e+00> : vector<16xf32>
    %207 = vector.multi_reduction <add>, %206, %cst_83 [1] : vector<16x16xf32> to vector<16xf32>
    %208 = vector.shape_cast %207 : vector<16xf32> to vector<16x1xf32>
    %209 = tpu.reciprocal %208 {approx = true} : vector<16x1xf32> -> vector<16x1xf32>
    %210 = vector.broadcast %209 : vector<16x1xf32> to vector<16x16xf32>
    %211 = arith.mulf %206, %210 : vector<16x16xf32>
    %cst_84 = arith.constant dense<0.000000e+00> : vector<16x8xf32>
    %212 = tpu.matmul %211, %197, %cst_84 {dimension_numbers = #tpu.dot_dimension_numbers<[1], [0], [0], [1], [0, 0, 1, 1], [], []>} : vector<16x16xf32>, vector<16x8xf32>, vector<16x8xf32> -> vector<16x8xf32>
    %213 = vector.extract_strided_slice %158 {offsets = [0, 24], sizes = [16, 8], strides = [1, 1]} : vector<16x96xf32> to vector<16x8xf32>
    %214 = vector.extract_strided_slice %158 {offsets = [0, 56], sizes = [16, 8], strides = [1, 1]} : vector<16x96xf32> to vector<16x8xf32>
    %215 = vector.extract_strided_slice %158 {offsets = [0, 88], sizes = [16, 8], strides = [1, 1]} : vector<16x96xf32> to vector<16x8xf32>
    %cst_85 = arith.constant dense<0.000000e+00> : vector<16x16xf32>
    %216 = tpu.matmul %213, %214, %cst_85 {dimension_numbers = #tpu.dot_dimension_numbers<[1], [1], [0], [0], [0, 0, 1, 0], [], []>} : vector<16x8xf32>, vector<16x8xf32>, vector<16x16xf32> -> vector<16x16xf32>
    %cst_86 = arith.constant 0.353553385 : f32
    %217 = vector.broadcast %cst_86 : f32 to vector<16x16xf32>
    %218 = arith.mulf %216, %217 : vector<16x16xf32>
    %219 = arith.addf %218, %2 : vector<16x16xf32>
    %cst_87 = arith.constant dense<0xFF800000> : vector<16xf32>
    %220 = vector.multi_reduction <maximumf>, %219, %cst_87 [1] : vector<16x16xf32> to vector<16xf32>
    %221 = vector.shape_cast %220 : vector<16xf32> to vector<16x1xf32>
    %222 = vector.broadcast %221 : vector<16x1xf32> to vector<16x16xf32>
    %223 = arith.subf %219, %222 : vector<16x16xf32>
    %224 = math.exp %223 : vector<16x16xf32>
    %cst_88 = arith.constant dense<0.000000e+00> : vector<16xf32>
    %225 = vector.multi_reduction <add>, %224, %cst_88 [1] : vector<16x16xf32> to vector<16xf32>
    %226 = vector.shape_cast %225 : vector<16xf32> to vector<16x1xf32>
    %227 = tpu.reciprocal %226 {approx = true} : vector<16x1xf32> -> vector<16x1xf32>
    %228 = vector.broadcast %227 : vector<16x1xf32> to vector<16x16xf32>
    %229 = arith.mulf %224, %228 : vector<16x16xf32>
    %cst_89 = arith.constant dense<0.000000e+00> : vector<16x8xf32>
    %230 = tpu.matmul %229, %215, %cst_89 {dimension_numbers = #tpu.dot_dimension_numbers<[1], [0], [0], [1], [0, 0, 1, 1], [], []>} : vector<16x16xf32>, vector<16x8xf32>, vector<16x8xf32> -> vector<16x8xf32>
    %231 = tpu.concatenate %176, %194, %212, %230 in 1 : vector<16x8xf32>, vector<16x8xf32>, vector<16x8xf32>, vector<16x8xf32> -> vector<16x32xf32>
    %cst_90 = arith.constant dense<0.000000e+00> : vector<16x32xf32>
    %232 = tpu.matmul %231, %5, %cst_90 {dimension_numbers = #tpu.dot_dimension_numbers<[1], [0], [0], [1], [0, 0, 1, 1], [], []>} : vector<16x32xf32>, vector<32x32xf32>, vector<16x32xf32> -> vector<16x32xf32>
    %233 = vector.broadcast %6 : vector<1x32xf32> to vector<16x32xf32>
    %234 = arith.addf %232, %233 : vector<16x32xf32>
    %235 = arith.addf %155, %234 : vector<16x32xf32>
    %c0_91 = arith.constant 0 : index
    %c0_92 = arith.constant 0 : index
    %c0_93 = arith.constant 0 : index
    %c0_94 = arith.constant 0 : index
    %236 = vector.load %arg11[%c0_91, %c0_92, %c0_93, %c0_94] : memref<2x2x1x32xf32, #tpu.memory_space<vmem>>, vector<1x1x1x32xf32>
    %237 = vector.shape_cast %236 : vector<1x1x1x32xf32> to vector<1x32xf32>
    %c0_95 = arith.constant 0 : index
    %c1_96 = arith.constant 1 : index
    %c0_97 = arith.constant 0 : index
    %c0_98 = arith.constant 0 : index
    %238 = vector.load %arg11[%c0_95, %c1_96, %c0_97, %c0_98] : memref<2x2x1x32xf32, #tpu.memory_space<vmem>>, vector<1x1x1x32xf32>
    %239 = vector.shape_cast %238 : vector<1x1x1x32xf32> to vector<1x32xf32>
    %cst_99 = arith.constant dense<0.000000e+00> : vector<16xf32>
    %240 = vector.multi_reduction <add>, %235, %cst_99 [1] : vector<16x32xf32> to vector<16xf32>
    %241 = vector.shape_cast %240 : vector<16xf32> to vector<16x1xf32>
    %cst_100 = arith.constant 3.200000e+01 : f32
    %242 = vector.broadcast %cst_100 : f32 to vector<16x1xf32>
    %243 = arith.divf %241, %242 : vector<16x1xf32>
    %244 = vector.broadcast %243 : vector<16x1xf32> to vector<16x32xf32>
    %245 = arith.subf %235, %244 : vector<16x32xf32>
    %246 = arith.mulf %245, %245 : vector<16x32xf32>
    %cst_101 = arith.constant dense<0.000000e+00> : vector<16xf32>
    %247 = vector.multi_reduction <add>, %246, %cst_101 [1] : vector<16x32xf32> to vector<16xf32>
    %248 = vector.shape_cast %247 : vector<16xf32> to vector<16x1xf32>
    %cst_102 = arith.constant 3.100000e+01 : f32
    %249 = vector.broadcast %cst_102 : f32 to vector<16x1xf32>
    %250 = arith.divf %248, %249 : vector<16x1xf32>
    %251 = math.sqrt %250 : vector<16x1xf32>
    %cst_103 = arith.constant 9.99999997E-7 : f32
    %252 = vector.broadcast %cst_103 : f32 to vector<16x1xf32>
    %253 = arith.addf %251, %252 : vector<16x1xf32>
    %254 = tpu.reciprocal %253 {approx = true} : vector<16x1xf32> -> vector<16x1xf32>
    %255 = vector.broadcast %243 : vector<16x1xf32> to vector<16x32xf32>
    %256 = arith.subf %235, %255 : vector<16x32xf32>
    %257 = vector.broadcast %254 : vector<16x1xf32> to vector<16x32xf32>
    %258 = arith.mulf %256, %257 : vector<16x32xf32>
    %259 = vector.broadcast %237 : vector<1x32xf32> to vector<16x32xf32>
    %260 = arith.mulf %259, %258 : vector<16x32xf32>
    %261 = vector.broadcast %239 : vector<1x32xf32> to vector<16x32xf32>
    %262 = arith.addf %260, %261 : vector<16x32xf32>
    %263 = arith.truncf %262 : vector<16x32xf32> to vector<16x32xbf16>
    %cst_104 = arith.constant dense<0.000000e+00> : vector<16x2048xf32>
    %264 = tpu.matmul %263, %7, %cst_104 {dimension_numbers = #tpu.dot_dimension_numbers<[1], [0], [0], [1], [0, 0, 1, 1], [], []>} : vector<16x32xbf16>, vector<32x2048xbf16>, vector<16x2048xf32> -> vector<16x2048xf32>
    %265 = vector.broadcast %8 : vector<1x2048xf32> to vector<16x2048xf32>
    %266 = arith.addf %264, %265 : vector<16x2048xf32>
    %cst_105 = arith.constant 0.000000e+00 : f32
    %267 = vector.broadcast %cst_105 : f32 to vector<16x2048xf32>
    %268 = arith.maximumf %266, %267 : vector<16x2048xf32>
    %269 = arith.truncf %268 : vector<16x2048xf32> to vector<16x2048xbf16>
    %cst_106 = arith.constant dense<0.000000e+00> : vector<16x32xf32>
    %270 = tpu.matmul %269, %9, %cst_106 {dimension_numbers = #tpu.dot_dimension_numbers<[1], [1], [0], [0], [0, 0, 1, 0], [], []>} : vector<16x2048xbf16>, vector<32x2048xbf16>, vector<16x32xf32> -> vector<16x32xf32>
    %271 = vector.broadcast %10 : vector<1x32xf32> to vector<16x32xf32>
    %272 = arith.addf %270, %271 : vector<16x32xf32>
    %273 = arith.addf %262, %272 : vector<16x32xf32>
    %c1_107 = arith.constant 1 : index
    %c0_108 = arith.constant 0 : index
    %c0_109 = arith.constant 0 : index
    %c0_110 = arith.constant 0 : index
    %274 = vector.load %arg11[%c1_107, %c0_108, %c0_109, %c0_110] : memref<2x2x1x32xf32, #tpu.memory_space<vmem>>, vector<1x1x1x32xf32>
    %275 = vector.shape_cast %274 : vector<1x1x1x32xf32> to vector<1x32xf32>
    %c1_111 = arith.constant 1 : index
    %c1_112 = arith.constant 1 : index
    %c0_113 = arith.constant 0 : index
    %c0_114 = arith.constant 0 : index
    %276 = vector.load %arg11[%c1_111, %c1_112, %c0_113, %c0_114] : memref<2x2x1x32xf32, #tpu.memory_space<vmem>>, vector<1x1x1x32xf32>
    %277 = vector.shape_cast %276 : vector<1x1x1x32xf32> to vector<1x32xf32>
    %cst_115 = arith.constant dense<0.000000e+00> : vector<16xf32>
    %278 = vector.multi_reduction <add>, %273, %cst_115 [1] : vector<16x32xf32> to vector<16xf32>
    %279 = vector.shape_cast %278 : vector<16xf32> to vector<16x1xf32>
    %cst_116 = arith.constant 3.200000e+01 : f32
    %280 = vector.broadcast %cst_116 : f32 to vector<16x1xf32>
    %281 = arith.divf %279, %280 : vector<16x1xf32>
    %282 = vector.broadcast %281 : vector<16x1xf32> to vector<16x32xf32>
    %283 = arith.subf %273, %282 : vector<16x32xf32>
    %284 = arith.mulf %283, %283 : vector<16x32xf32>
    %cst_117 = arith.constant dense<0.000000e+00> : vector<16xf32>
    %285 = vector.multi_reduction <add>, %284, %cst_117 [1] : vector<16x32xf32> to vector<16xf32>
    %286 = vector.shape_cast %285 : vector<16xf32> to vector<16x1xf32>
    %cst_118 = arith.constant 3.100000e+01 : f32
    %287 = vector.broadcast %cst_118 : f32 to vector<16x1xf32>
    %288 = arith.divf %286, %287 : vector<16x1xf32>
    %289 = math.sqrt %288 : vector<16x1xf32>
    %cst_119 = arith.constant 9.99999997E-7 : f32
    %290 = vector.broadcast %cst_119 : f32 to vector<16x1xf32>
    %291 = arith.addf %289, %290 : vector<16x1xf32>
    %292 = tpu.reciprocal %291 {approx = true} : vector<16x1xf32> -> vector<16x1xf32>
    %293 = vector.broadcast %281 : vector<16x1xf32> to vector<16x32xf32>
    %294 = arith.subf %273, %293 : vector<16x32xf32>
    %295 = vector.broadcast %292 : vector<16x1xf32> to vector<16x32xf32>
    %296 = arith.mulf %294, %295 : vector<16x32xf32>
    %297 = vector.broadcast %275 : vector<1x32xf32> to vector<16x32xf32>
    %298 = arith.mulf %297, %296 : vector<16x32xf32>
    %299 = vector.broadcast %277 : vector<1x32xf32> to vector<16x32xf32>
    %300 = arith.addf %298, %299 : vector<16x32xf32>
    %c0_120 = arith.constant 0 : index
    %c0_121 = arith.constant 0 : index
    %301 = vector.load %arg12[%c0_120, %c0_121] : memref<16x32xf32, #tpu.memory_space<vmem>>, vector<16x32xf32>
    tpu.vector_store %arg12[%c0_120, %c0_121], %300 {strides = array<i32>} : memref<16x32xf32, #tpu.memory_space<vmem>>, vector<16x32xf32>,
    return
  }
  func.func @transform_0(%arg0: i32) -> (i32, i32) {
    %c0_i32 = arith.constant 0 : i32
    %c0_i32_0 = arith.constant 0 : i32
    %c0_i32_1 = arith.constant 0 : i32
    return %c0_i32, %c0_i32_0 : i32, i32
  }
  func.func @transform_1(%arg0: i32) -> (i32, i32, i32) {
    %c0_i32 = arith.constant 0 : i32
    %c0_i32_0 = arith.constant 0 : i32
    %c0_i32_1 = arith.constant 0 : i32
    %c0_i32_2 = arith.constant 0 : i32
    return %c0_i32, %c0_i32_0, %c0_i32_1 : i32, i32, i32
  }
  func.func @transform_2(%arg0: i32) -> (i32, i32) {
    %c0_i32 = arith.constant 0 : i32
    %c0_i32_0 = arith.constant 0 : i32
    %c0_i32_1 = arith.constant 0 : i32
    return %c0_i32, %c0_i32_0 : i32, i32
  }
  func.func @transform_3(%arg0: i32) -> (i32, i32) {
    %c0_i32 = arith.constant 0 : i32
    %c0_i32_0 = arith.constant 0 : i32
    %c0_i32_1 = arith.constant 0 : i32
    return %c0_i32, %c0_i32_0 : i32, i32
  }
  func.func @transform_4(%arg0: i32) -> (i32, i32) {
    %c0_i32 = arith.constant 0 : i32
    %c0_i32_0 = arith.constant 0 : i32
    %c0_i32_1 = arith.constant 0 : i32
    return %c0_i32, %c0_i32_0 : i32, i32
  }
  func.func @transform_5(%arg0: i32) -> (i32, i32) {
    %c0_i32 = arith.constant 0 : i32
    %c0_i32_0 = arith.constant 0 : i32
    %c0_i32_1 = arith.constant 0 : i32
    return %c0_i32, %c0_i32_0 : i32, i32
  }
  func.func @transform_6(%arg0: i32) -> (i32, i32) {
    %c0_i32 = arith.constant 0 : i32
    %c0_i32_0 = arith.constant 0 : i32
    %c0_i32_1 = arith.constant 0 : i32
    return %c0_i32, %c0_i32_0 : i32, i32
  }
  func.func @transform_7(%arg0: i32) -> (i32, i32) {
    %c0_i32 = arith.constant 0 : i32
    %c0_i32_0 = arith.constant 0 : i32
    %c0_i32_1 = arith.constant 0 : i32
    return %c0_i32, %c0_i32_0 : i32, i32
  }
  func.func @transform_8(%arg0: i32) -> (i32, i32) {
    %c0_i32 = arith.constant 0 : i32
    %c0_i32_0 = arith.constant 0 : i32
    %c0_i32_1 = arith.constant 0 : i32
    return %c0_i32, %c0_i32_0 : i32, i32
  }
  func.func @transform_9(%arg0: i32) -> (i32, i32) {
    %c0_i32 = arith.constant 0 : i32
    %c0_i32_0 = arith.constant 0 : i32
    %c0_i32_1 = arith.constant 0 : i32
    return %c0_i32, %c0_i32_0 : i32, i32
  }
  func.func @transform_10(%arg0: i32) -> (i32, i32, i32, i32) {
    %c0_i32 = arith.constant 0 : i32
    %c0_i32_0 = arith.constant 0 : i32
    %c0_i32_1 = arith.constant 0 : i32
    %c0_i32_2 = arith.constant 0 : i32
    %c0_i32_3 = arith.constant 0 : i32
    return %c0_i32, %c0_i32_0, %c0_i32_1, %c0_i32_2 : i32, i32, i32, i32
  }
  func.func @transform_11(%arg0: i32) -> (i32, i32) {
    %c0_i32 = arith.constant 0 : i32
    %c0_i32_0 = arith.constant 0 : i32
    %c0_i32_1 = arith.constant 0 : i32
    return %c0_i32, %c0_i32_0 : i32, i32
  }
}

</mosaic_0001>

<llo_original>
// kernel: tpu_custom_call.1
$region0: #{tpu_custom_call.1}
  #allocation0 [shape = 'u32[]', space=smem, size = 0x4, offset = 0x4, fixed_abs, tag = 'smem constant byte address 0x4 - core index']
  #allocation1 [shape = 'u32[144,128]{1,0:T(1,128)}', space=vmem, size = 0x12000, scoped, tag = 'internal scratch']
  %s0 = inlined_call_operand.hbm [shape: f32[16,32], index: 0, kind: input, shape index: {}]
  %s1 = inlined_call_operand.hbm [shape: f32[1,16,16], index: 1, kind: input, shape index: {}]
  %s2 = inlined_call_operand.hbm [shape: f32[32,96], index: 2, kind: input, shape index: {}]
  %s3 = inlined_call_operand.vmem [shape: f32[1,96], index: 3, kind: input, shape index: {}]
  %s4 = inlined_call_operand.hbm [shape: f32[32,32], index: 4, kind: input, shape index: {}]
  %s5 = inlined_call_operand.vmem [shape: f32[1,32], index: 5, kind: input, shape index: {}]
  %s6 = inlined_call_operand.hbm [shape: bf16[32,2048], index: 6, kind: input, shape index: {}]
  %s7 = inlined_call_operand.hbm [shape: f32[1,2048], index: 7, kind: input, shape index: {}]
  %s8 = inlined_call_operand.hbm [shape: bf16[32,2048], index: 8, kind: input, shape index: {}]
  %s9 = inlined_call_operand.vmem [shape: f32[1,32], index: 9, kind: input, shape index: {}]
  %s10 = inlined_call_operand.vmem [shape: f32[2,2,1,32], index: 10, kind: input, shape index: {}]
  %s11 = inlined_call_operand.hbm [shape: f32[16,32], index: 11, kind: output, shape index: {}]
  %s12 = sld [smem:[#allocation0]]
  $region82: #{tpu_custom_call.1} parent=0
    _
  %s14 = ssub.s32 1, %s12
  %s15 = scalar_select 0, %s14, %s12
  $region1: #{tpu_custom_call.1} parent=0
    #allocation2 [shape = 'u8[8192]{0}', space=vmem, size = 0x2000, scoped, tag = 'input window, operand 0, single buffered']
    #allocation3 [shape = 's32[1]{0}', space=sflag, size = 0x4, scoped, tag = 'scoped memory for tpu_custom_call.1']
    #allocation4 [shape = 's32[1]{0}', space=sflag, size = 0x4, scoped, tag = 'scoped memory for tpu_custom_call.1']
    #allocation5 [shape = 'u8[8192]{0}', space=vmem, size = 0x2000, scoped, tag = 'input window, operand 1, single buffered']
    #allocation6 [shape = 's32[1]{0}', space=sflag, size = 0x4, scoped, tag = 'scoped memory for tpu_custom_call.1']
    #allocation7 [shape = 'u8[16384]{0}', space=vmem, size = 0x4000, scoped, tag = 'input window, operand 2, single buffered']
    #allocation8 [shape = 'u8[16384]{0}', space=vmem, size = 0x4000, scoped, tag = 'input window, operand 4, single buffered']
    #allocation9 [shape = 's32[1]{0}', space=sflag, size = 0x4, scoped, tag = 'scoped memory for tpu_custom_call.1']
    #allocation10 [shape = 'u8[131072]{0}', space=vmem, size = 0x20000, scoped, tag = 'input window, operand 6, single buffered']
    #allocation11 [shape = 'u8[8192]{0}', space=vmem, size = 0x2000, scoped, tag = 'input window, operand 7, single buffered']
    #allocation12 [shape = 's32[1]{0}', space=sflag, size = 0x4, scoped, tag = 'scoped memory for tpu_custom_call.1']
    #allocation13 [shape = 'u8[131072]{0}', space=vmem, size = 0x20000, scoped, tag = 'input window, operand 8, single buffered']
    #allocation14 [shape = 'u8[8192]{0}', space=vmem, size = 0x2000, scoped, tag = 'output window, operand 0, single buffered']
    %16 = vsyncpa [#allocation3], 0
    %17 = vsyncpa [#allocation6], 0
    %18 = vsyncpa [#allocation9], 0
    %19 = vsyncpa [#allocation12], 0
    %20 = vsyncpa [#allocation4], 0
    // Predicated region
    $region2: #{tpu_custom_call.1} parent=1 // pred_check
      _
    $region3: #{tpu_custom_call.1} parent=1 // pred_check_branch
      %22 = sbr.rel (0) target = $region5
    $region4: #{tpu_custom_call.1} parent=1 // pred_region
      %s24 = ssub.s32 256, 256
      %25 = vsyncadd [#allocation3], %s24
      %s26 = sshll.u32 [#allocation2], 4
      %s27 = int_to_ptr.vmem [resolvable:$true] %s26
      %32 = dma.hbm_to_vmem [thread:$0]  %s0, 256, %s27, [#allocation3], 128, 128, 8
    $region5: #{tpu_custom_call.1} parent=1 // pred_fallthru
      _
    // Predicated region
    $region6: #{tpu_custom_call.1} parent=1 // pred_check
      _
    $region7: #{tpu_custom_call.1} parent=1 // pred_check_branch
      %34 = sbr.rel (0) target = $region9
    $region8: #{tpu_custom_call.1} parent=1 // pred_region
      %s36 = ssub.s32 256, 256
      %37 = vsyncadd [#allocation6], %s36
      %s38 = sshll.u32 [#allocation5], 4
      %s39 = int_to_ptr.vmem [resolvable:$true] %s38
      %44 = dma.hbm_to_vmem [thread:$0]  %s1, 256, %s39, [#allocation6], 128, 128, 8
    $region9: #{tpu_custom_call.1} parent=1 // pred_fallthru
      _
    // Predicated region
    $region10: #{tpu_custom_call.1} parent=1 // pred_check
      _
    $region11: #{tpu_custom_call.1} parent=1 // pred_check_branch
      %46 = sbr.rel (0) target = $region13
    $region12: #{tpu_custom_call.1} parent=1 // pred_region
      %s48 = ssub.s32 512, 512
      %49 = vsyncadd [#allocation6], %s48
      %s50 = sshll.u32 [#allocation7], 4
      %s51 = int_to_ptr.vmem [resolvable:$true] %s50
      %56 = dma.hbm_to_vmem [thread:$0]  %s2, 512, %s51, [#allocation6], 128, 128, 8
    $region13: #{tpu_custom_call.1} parent=1 // pred_fallthru
      _
    // Predicated region
    $region14: #{tpu_custom_call.1} parent=1 // pred_check
      _
    $region15: #{tpu_custom_call.1} parent=1 // pred_check_branch
      %58 = sbr.rel (0) target = $region17
    $region16: #{tpu_custom_call.1} parent=1 // pred_region
      _
    $region17: #{tpu_custom_call.1} parent=1 // pred_fallthru
      _
    // Predicated region
    $region18: #{tpu_custom_call.1} parent=1 // pred_check
      _
    $region19: #{tpu_custom_call.1} parent=1 // pred_check_branch
      %60 = sbr.rel (0) target = $region21
    $region20: #{tpu_custom_call.1} parent=1 // pred_region
      %s62 = ssub.s32 512, 512
      %63 = vsyncadd [#allocation9], %s62
      %s64 = sshll.u32 [#allocation8], 4
      %s65 = int_to_ptr.vmem [resolvable:$true] %s64
      %70 = dma.hbm_to_vmem [thread:$0]  %s4, 512, %s65, [#allocation9], 128, 128, 8
    $region21: #{tpu_custom_call.1} parent=1 // pred_fallthru
      _
    // Predicated region
    $region22: #{tpu_custom_call.1} parent=1 // pred_check
      _
    $region23: #{tpu_custom_call.1} parent=1 // pred_check_branch
      %72 = sbr.rel (0) target = $region25
    $region24: #{tpu_custom_call.1} parent=1 // pred_region
      _
    $region25: #{tpu_custom_call.1} parent=1 // pred_fallthru
      _
    // Predicated region
    $region26: #{tpu_custom_call.1} parent=1 // pred_check
      _
    $region27: #{tpu_custom_call.1} parent=1 // pred_check_branch
      %74 = sbr.rel (0) target = $region29
    $region28: #{tpu_custom_call.1} parent=1 // pred_region
      %s76 = ssub.s32 4096, 4096
      %77 = vsyncadd [#allocation9], %s76
      %s78 = sshll.u32 [#allocation10], 4
      %s79 = int_to_ptr.vmem [resolvable:$true] %s78
      %84 = dma.hbm_to_vmem [thread:$0]  %s6, 4096, %s79, [#allocation9], 1024, 1024, 64
    $region29: #{tpu_custom_call.1} parent=1 // pred_fallthru
      _
    // Predicated region
    $region30: #{tpu_custom_call.1} parent=1 // pred_check
      _
    $region31: #{tpu_custom_call.1} parent=1 // pred_check_branch
      %86 = sbr.rel (0) target = $region33
    $region32: #{tpu_custom_call.1} parent=1 // pred_region
      %s88 = ssub.s32 256, 256
      %89 = vsyncadd [#allocation12], %s88
      %s91 = sshll.u32 [#allocation11], 4
      %s92 = int_to_ptr.vmem [resolvable:$true] %s91
      %94 = dma.hbm_to_vmem [thread:$0]  %s7, 256, %s92, [#allocation12]
    $region33: #{tpu_custom_call.1} parent=1 // pred_fallthru
      _
    // Predicated region
    $region34: #{tpu_custom_call.1} parent=1 // pred_check
      _
    $region35: #{tpu_custom_call.1} parent=1 // pred_check_branch
      %96 = sbr.rel (0) target = $region37
    $region36: #{tpu_custom_call.1} parent=1 // pred_region
      %s98 = ssub.s32 4096, 4096
      %99 = vsyncadd [#allocation12], %s98
      %s100 = sshll.u32 [#allocation13], 4
      %s101 = int_to_ptr.vmem [resolvable:$true] %s100
      %106 = dma.hbm_to_vmem [thread:$0]  %s8, 4096, %s101, [#allocation12], 1024, 1024, 64
    $region37: #{tpu_custom_call.1} parent=1 // pred_fallthru
      _
    // Predicated region
    $region38: #{tpu_custom_call.1} parent=1 // pred_check
      _
    $region39: #{tpu_custom_call.1} parent=1 // pred_check_branch
      %108 = sbr.rel (0) target = $region41
    $region40: #{tpu_custom_call.1} parent=1 // pred_region
      _
    $region41: #{tpu_custom_call.1} parent=1 // pred_fallthru
      _
    // Predicated region
    $region42: #{tpu_custom_call.1} parent=1 // pred_check
      _
    $region43: #{tpu_custom_call.1} parent=1 // pred_check_branch
      %110 = sbr.rel (0) target = $region45
    $region44: #{tpu_custom_call.1} parent=1 // pred_region
      _
    $region45: #{tpu_custom_call.1} parent=1 // pred_fallthru
      _
    // Predicated region
    $region46: #{tpu_custom_call.1} parent=1 // pred_check
      _
    $region47: #{tpu_custom_call.1} parent=1 // pred_check_branch
      %112 = sbr.rel (0) target = $region49
    $region48: #{tpu_custom_call.1} parent=1 // pred_region
      %113 = dma.done [#allocation3], 256
    $region49: #{tpu_custom_call.1} parent=1 // pred_fallthru
      _
    // Predicated region
    $region50: #{tpu_custom_call.1} parent=1 // pred_check
      _
    $region51: #{tpu_custom_call.1} parent=1 // pred_check_branch
      %115 = sbr.rel (0) target = $region53
    $region52: #{tpu_custom_call.1} parent=1 // pred_region
      %116 = dma.done [#allocation6], 256
    $region53: #{tpu_custom_call.1} parent=1 // pred_fallthru
      _
    // Predicated region
    $region54: #{tpu_custom_call.1} parent=1 // pred_check
      _
    $region55: #{tpu_custom_call.1} parent=1 // pred_check_branch
      %118 = sbr.rel (0) target = $region57
    $region56: #{tpu_custom_call.1} parent=1 // pred_region
      %119 = dma.done [#allocation6], 512
    $region57: #{tpu_custom_call.1} parent=1 // pred_fallthru
      _
    // Predicated region
    $region58: #{tpu_custom_call.1} parent=1 // pred_check
      _
    $region59: #{tpu_custom_call.1} parent=1 // pred_check_branch
      %121 = sbr.rel (0) target = $region61
    $region60: #{tpu_custom_call.1} parent=1 // pred_region
      %122 = dma.done [#allocation9], 512
    $region61: #{tpu_custom_call.1} parent=1 // pred_fallthru
      _
    // Predicated region
    $region62: #{tpu_custom_call.1} parent=1 // pred_check
      _
    $region63: #{tpu_custom_call.1} parent=1 // pred_check_branch
      %124 = sbr.rel (0) target = $region65
    $region64: #{tpu_custom_call.1} parent=1 // pred_region
      %125 = dma.done [#allocation9], 4096
    $region65: #{tpu_custom_call.1} parent=1 // pred_fallthru
      _
    // Predicated region
    $region66: #{tpu_custom_call.1} parent=1 // pred_check
      _
    $region67: #{tpu_custom_call.1} parent=1 // pred_check_branch
      %127 = sbr.rel (0) target = $region69
    $region68: #{tpu_custom_call.1} parent=1 // pred_region
      %128 = dma.done [#allocation12], 256
    $region69: #{tpu_custom_call.1} parent=1 // pred_fallthru
      _
    // Predicated region
    $region70: #{tpu_custom_call.1} parent=1 // pred_check
      _
    $region71: #{tpu_custom_call.1} parent=1 // pred_check_branch
      %130 = sbr.rel (0) target = $region73
    $region72: #{tpu_custom_call.1} parent=1 // pred_region
      %131 = dma.done [#allocation12], 4096
    $region73: #{tpu_custom_call.1} parent=1 // pred_fallthru
      _
    %v133 = vld [vmem:[#allocation2] sm:$0xff]
    %v134 = vld [vmem:[#allocation2 + $0x8] sm:$0xff]
    %v135 = vld [vmem:[#allocation5] sm:$0xff]
    %v136 = vld [vmem:[#allocation5 + $0x8] sm:$0xff]
    %v137 = vld [vmem:[#allocation7] sm:$0xff]
    %v138 = vld [vmem:[#allocation7 + $0x8] sm:$0xff]
    %v139 = vld [vmem:[#allocation7 + $0x10] sm:$0xff]
    %v140 = vld [vmem:[#allocation7 + $0x18] sm:$0xff]
    %v141 = vld [vmem:[%s3] sm:$0x1]
    %v142 = vld [vmem:[#allocation8] sm:$0xff]
    %v143 = vld [vmem:[#allocation8 + $0x8] sm:$0xff]
    %v144 = vld [vmem:[#allocation8 + $0x10] sm:$0xff]
    %v145 = vld [vmem:[#allocation8 + $0x18] sm:$0xff]
    %v146 = vld [vmem:[%s5] sm:$0x1]
    %v147 = vld [vmem:[#allocation10] sm:$0xff]
    %v148 = vld [vmem:[#allocation10 + $0x8] sm:$0xff]
    %v149 = vld [vmem:[#allocation10 + $0x10] sm:$0xff]
    %v150 = vld [vmem:[#allocation10 + $0x18] sm:$0xff]
    %v151 = vld [vmem:[#allocation10 + $0x20] sm:$0xff]
    %v152 = vld [vmem:[#allocation10 + $0x28] sm:$0xff]
    %v153 = vld [vmem:[#allocation10 + $0x30] sm:$0xff]
    %v154 = vld [vmem:[#allocation10 + $0x38] sm:$0xff]
    %v155 = vld [vmem:[#allocation10 + $0x40] sm:$0xff]
    %v156 = vld [vmem:[#allocation10 + $0x48] sm:$0xff]
    %v157 = vld [vmem:[#allocation10 + $0x50] sm:$0xff]
    %v158 = vld [vmem:[#allocation10 + $0x58] sm:$0xff]
    %v159 = vld [vmem:[#allocation10 + $0x60] sm:$0xff]
    %v160 = vld [vmem:[#allocation10 + $0x68] sm:$0xff]
    %v161 = vld [vmem:[#allocation10 + $0x70] sm:$0xff]
    %v162 = vld [vmem:[#allocation10 + $0x78] sm:$0xff]
    %v163 = vld [vmem:[#allocation10 + $0x80] sm:$0xff]
    %v164 = vld [vmem:[#allocation10 + $0x88] sm:$0xff]
    %v165 = vld [vmem:[#allocation10 + $0x90] sm:$0xff]
    %v166 = vld [vmem:[#allocation10 + $0x98] sm:$0xff]
    %v167 = vld [vmem:[#allocation10 + $0xa0] sm:$0xff]
    %v168 = vld [vmem:[#allocation10 + $0xa8] sm:$0xff]
    %v169 = vld [vmem:[#allocation10 + $0xb0] sm:$0xff]
    %v170 = vld [vmem:[#allocation10 + $0xb8] sm:$0xff]
    %v171 = vld [vmem:[#allocation10 + $0xc0] sm:$0xff]
    %v172 = vld [vmem:[#allocation10 + $0xc8] sm:$0xff]
    %v173 = vld [vmem:[#allocation10 + $0xd0] sm:$0xff]
    %v174 = vld [vmem:[#allocation10 + $0xd8] sm:$0xff]
    %v175 = vld [vmem:[#allocation10 + $0xe0] sm:$0xff]
    %v176 = vld [vmem:[#allocation10 + $0xe8] sm:$0xff]
    %v177 = vld [vmem:[#allocation10 + $0xf0] sm:$0xff]
    %v178 = vld [vmem:[#allocation10 + $0xf8] sm:$0xff]
    %v179 = vld [vmem:[#allocation11] sm:$0xff]
    %v180 = vld [vmem:[#allocation11 + $0x8] sm:$0xff]
    %v181 = vld [vmem:[#allocation13] sm:$0xff]
    %v182 = vld [vmem:[#allocation13 + $0x8] sm:$0xff]
    %v183 = vld [vmem:[#allocation13 + $0x10] sm:$0xff]
    %v184 = vld [vmem:[#allocation13 + $0x18] sm:$0xff]
    %v185 = vld [vmem:[#allocation13 + $0x20] sm:$0xff]
    %v186 = vld [vmem:[#allocation13 + $0x28] sm:$0xff]
    %v187 = vld [vmem:[#allocation13 + $0x30] sm:$0xff]
    %v188 = vld [vmem:[#allocation13 + $0x38] sm:$0xff]
    %v189 = vld [vmem:[#allocation13 + $0x40] sm:$0xff]
    %v190 = vld [vmem:[#allocation13 + $0x48] sm:$0xff]
    %v191 = vld [vmem:[#allocation13 + $0x50] sm:$0xff]
    %v192 = vld [vmem:[#allocation13 + $0x58] sm:$0xff]
    %v193 = vld [vmem:[#allocation13 + $0x60] sm:$0xff]
    %v194 = vld [vmem:[#allocation13 + $0x68] sm:$0xff]
    %v195 = vld [vmem:[#allocation13 + $0x70] sm:$0xff]
    %v196 = vld [vmem:[#allocation13 + $0x78] sm:$0xff]
    %v197 = vld [vmem:[#allocation13 + $0x80] sm:$0xff]
    %v198 = vld [vmem:[#allocation13 + $0x88] sm:$0xff]
    %v199 = vld [vmem:[#allocation13 + $0x90] sm:$0xff]
    %v200 = vld [vmem:[#allocation13 + $0x98] sm:$0xff]
    %v201 = vld [vmem:[#allocation13 + $0xa0] sm:$0xff]
    %v202 = vld [vmem:[#allocation13 + $0xa8] sm:$0xff]
    %v203 = vld [vmem:[#allocation13 + $0xb0] sm:$0xff]
    %v204 = vld [vmem:[#allocation13 + $0xb8] sm:$0xff]
    %v205 = vld [vmem:[#allocation13 + $0xc0] sm:$0xff]
    %v206 = vld [vmem:[#allocation13 + $0xc8] sm:$0xff]
    %v207 = vld [vmem:[#allocation13 + $0xd0] sm:$0xff]
    %v208 = vld [vmem:[#allocation13 + $0xd8] sm:$0xff]
    %v209 = vld [vmem:[#allocation13 + $0xe0] sm:$0xff]
    %v210 = vld [vmem:[#allocation13 + $0xe8] sm:$0xff]
    %v211 = vld [vmem:[#allocation13 + $0xf0] sm:$0xff]
    %v212 = vld [vmem:[#allocation13 + $0xf8] sm:$0xff]
    %v213 = vld [vmem:[%s9] sm:$0x1]
    %v215 = vlaneseq
    %v216 = vshrl.u32 %v215, 7
    %v217 = vsub.s32 0, %v216
    %v218 = vrot.slane %v141, %v217
    %vm220 = vcmask 261120
    %v222 = vsel %vm220, %v133, 0
    %v225 = vsel %vm220, %v134, 0
    %227 = vmatprep.subr.mxu0 0.0
    %228 = vmatpush1.msra.mxu0 0.0
    %229 = vmatprep.subr.mxu0 0.0
    %230 = vmatpush1.msra.mxu0 0.0
    %231 = vmatprep.subr.mxu0 0.0
    %232 = vmatpush1.msra.mxu0 0.0
    %233 = vmatprep.subr.mxu0 0.0
    %234 = vmatpush1.msra.mxu0 0.0
    %235 = vmatprep.subr.mxu0 0.0
    %236 = vmatpush1.msra.mxu0 0.0
    %237 = vmatprep.subr.mxu0 0.0
    %238 = vmatpush1.msra.mxu0 0.0
    %239 = vmatprep.subr.mxu0 0.0
    %240 = vmatpush1.msra.mxu0 0.0
    %241 = vmatprep.subr.mxu0 0.0
    %242 = vmatpush1.msra.mxu0 0.0
    %243 = vmatprep.subr.mxu0 0.0
    %244 = vmatpush1.msra.mxu0 0.0
    %245 = vmatprep.subr.mxu0 0.0
    %246 = vmatpush1.msra.mxu0 0.0
    %247 = vmatprep.subr.mxu0 0.0
    %248 = vmatpush1.msra.mxu0 0.0
    %249 = vmatprep.subr.mxu0 0.0
    %250 = vmatpush1.msra.mxu0 0.0
    %251 = vmatprep.subr.mxu0 0.0
    %252 = vmatpush1.msra.mxu0 %v140
    %253 = vmatprep.subr.mxu0 0.0
    %254 = vmatpush1.msra.mxu0 %v139
    %255 = vmatprep.subr.mxu0 0.0
    %256 = vmatpush1.msra.mxu0 %v138
    %257 = vmatprep.subr.mxu0 0.0
    %258 = vmatpush1.msra.mxu0 %v137
    %259 = vmatprep.subr.mxu0 0.0
    %260 = vmatpush2.msra.mxu0 0.0
    %261 = vmatprep.subr.mxu0 0.0
    %262 = vmatpush2.msra.mxu0 0.0
    %263 = vmatprep.subr.mxu0 0.0
    %264 = vmatpush2.msra.mxu0 0.0
    %265 = vmatprep.subr.mxu0 0.0
    %266 = vmatpush2.msra.mxu0 0.0
    %267 = vmatprep.subr.mxu0 0.0
    %268 = vmatpush2.msra.mxu0 0.0
    %269 = vmatprep.subr.mxu0 0.0
    %270 = vmatpush2.msra.mxu0 0.0
    %271 = vmatprep.subr.mxu0 0.0
    %272 = vmatpush2.msra.mxu0 0.0
    %273 = vmatprep.subr.mxu0 0.0
    %274 = vmatpush2.msra.mxu0 0.0
    %275 = vmatprep.subr.mxu0 0.0
    %276 = vmatpush2.msra.mxu0 0.0
    %277 = vmatprep.subr.mxu0 0.0
    %278 = vmatpush2.msra.mxu0 0.0
    %279 = vmatprep.subr.mxu0 0.0
    %280 = vmatpush2.msra.mxu0 0.0
    %281 = vmatprep.subr.mxu0 0.0
    %282 = vmatpush2.msra.mxu0 0.0
    %283 = vmatprep.subr.mxu0 0.0
    %284 = vmatpush2.msra.mxu0 0.0
    %285 = vmatprep.subr.mxu0 0.0
    %286 = vmatpush2.msra.mxu0 0.0
    %287 = vmatprep.subr.mxu0 0.0
    %288 = vmatpush2.msra.mxu0 0.0
    %289 = vmatprep.subr.mxu0 0.0
    %290 = vmatpush2.msra.mxu0 0.0
    %291 = vmatprep.mubr.f32.mxu0 0.0
    %292 = vmatmul.mubr.f32.gmra.mxu0 %v222
    %v293 = vpop.f32.mrf.mxu0
    %v294 = vadd.f32 %v218, %v293
    %v295 = vpop.f32.mrf.mxu0
    %296 = vmatprep.mubr.f32.mxu0 0.0
    %297 = vmatmul.mubr.f32.gmra.mxu0 %v225
    %v298 = vpop.f32.mrf.mxu0
    %v299 = vadd.f32 %v218, %v298
    %v300 = vpop.f32.mrf.mxu0
    %301 = vdwg.mxu0
    %304 = vrot.lane.b32.xlu0 %v294, 96
    %v305 = vpop.permute.xlu0 %304
    %306 = vrot.lane.b32.xlu0 %v299, 96
    %v307 = vpop.permute.xlu0 %306
    %vm308 = vcmask 64512
    %v309 = vsel %vm308, %v294, 0
    %v311 = vsel %vm308, %v299, 0
    %v313 = vsel %vm308, %v305, 0
    %v315 = vsel %vm308, %v307, 0
    %317 = vmatprep.subr.mxu0 0.0
    %318 = vmatpush1.xpose.msra.mxu0 0.0
    %319 = vmatprep.subr.mxu0 0.0
    %320 = vmatpush1.xpose.msra.mxu0 0.0
    %321 = vmatprep.subr.mxu0 0.0
    %322 = vmatpush1.xpose.msra.mxu0 0.0
    %323 = vmatprep.subr.mxu0 0.0
    %324 = vmatpush1.xpose.msra.mxu0 0.0
    %325 = vmatprep.subr.mxu0 0.0
    %326 = vmatpush1.xpose.msra.mxu0 0.0
    %327 = vmatprep.subr.mxu0 0.0
    %328 = vmatpush1.xpose.msra.mxu0 0.0
    %329 = vmatprep.subr.mxu0 0.0
    %330 = vmatpush1.xpose.msra.mxu0 0.0
    %331 = vmatprep.subr.mxu0 0.0
    %332 = vmatpush1.xpose.msra.mxu0 0.0
    %333 = vmatprep.subr.mxu0 0.0
    %334 = vmatpush1.xpose.msra.mxu0 0.0
    %335 = vmatprep.subr.mxu0 0.0
    %336 = vmatpush1.xpose.msra.mxu0 0.0
    %337 = vmatprep.subr.mxu0 0.0
    %338 = vmatpush1.xpose.msra.mxu0 0.0
    %339 = vmatprep.subr.mxu0 0.0
    %340 = vmatpush1.xpose.msra.mxu0 0.0
    %341 = vmatprep.subr.mxu0 0.0
    %342 = vmatpush1.xpose.msra.mxu0 0.0
    %343 = vmatprep.subr.mxu0 0.0
    %344 = vmatpush1.xpose.msra.mxu0 0.0
    %345 = vmatprep.subr.mxu0 0.0
    %346 = vmatpush1.xpose.msra.mxu0 %v315
    %347 = vmatprep.subr.mxu0 0.0
    %348 = vmatpush1.xpose.msra.mxu0 %v313
    %349 = vmatprep.subr.mxu0 0.0
    %350 = vmatpush2.xpose.msra.mxu0 0.0
    %351 = vmatprep.subr.mxu0 0.0
    %352 = vmatpush2.xpose.msra.mxu0 0.0
    %353 = vmatprep.subr.mxu0 0.0
    %354 = vmatpush2.xpose.msra.mxu0 0.0
    %355 = vmatprep.subr.mxu0 0.0
    %356 = vmatpush2.xpose.msra.mxu0 0.0
    %357 = vmatprep.subr.mxu0 0.0
    %358 = vmatpush2.xpose.msra.mxu0 0.0
    %359 = vmatprep.subr.mxu0 0.0
    %360 = vmatpush2.xpose.msra.mxu0 0.0
    %361 = vmatprep.subr.mxu0 0.0
    %362 = vmatpush2.xpose.msra.mxu0 0.0
    %363 = vmatprep.subr.mxu0 0.0
    %364 = vmatpush2.xpose.msra.mxu0 0.0
    %365 = vmatprep.subr.mxu0 0.0
    %366 = vmatpush2.xpose.msra.mxu0 0.0
    %367 = vmatprep.subr.mxu0 0.0
    %368 = vmatpush2.xpose.msra.mxu0 0.0
    %369 = vmatprep.subr.mxu0 0.0
    %370 = vmatpush2.xpose.msra.mxu0 0.0
    %371 = vmatprep.subr.mxu0 0.0
    %372 = vmatpush2.xpose.msra.mxu0 0.0
    %373 = vmatprep.subr.mxu0 0.0
    %374 = vmatpush2.xpose.msra.mxu0 0.0
    %375 = vmatprep.subr.mxu0 0.0
    %376 = vmatpush2.xpose.msra.mxu0 0.0
    %377 = vmatprep.subr.mxu0 0.0
    %378 = vmatpush2.xpose.msra.mxu0 0.0
    %379 = vmatprep.subr.mxu0 0.0
    %380 = vmatpush2.xpose.msra.mxu0 0.0
    %381 = vmatprep.mubr.f32.mxu0 0.0
    %382 = vmatmul.mubr.f32.gmra.mxu0 %v309
    %v383 = vpop.f32.mrf.mxu0
    %v384 = vadd.f32 0.0, %v383
    %v385 = vpop.f32.mrf.mxu0
    %386 = vmatprep.mubr.f32.mxu0 0.0
    %387 = vmatmul.mubr.f32.gmra.mxu0 %v311
    %v388 = vpop.f32.mrf.mxu0
    %v389 = vadd.f32 0.0, %v388
    %v390 = vpop.f32.mrf.mxu0
    %391 = vdwg.mxu0
    %v392 = vmul.f32 %v384, 0.35355338
    %v393 = vmul.f32 %v389, 0.35355338
    %v394 = vadd.f32 %v392, %v135
    %v395 = vadd.f32 %v393, %v136
    %vm396 = vcmask 130048
    %v397 = vsel %vm396, %v394, -inf
    %398 = vmax.xlane.f32.xlu0 %v397
    %v399 = vpop.xlane.xlu0 %398
    %v400 = vsel %vm396, %v395, -inf
    %401 = vmax.xlane.f32.xlu0 %v400
    %v402 = vpop.xlane.xlu0 %401
    %v403 = vsub.f32 %v394, %v399
    %v404 = vsub.f32 %v395, %v402
    %v405 = vmul.f32 %v403, 1.442695
    %v406 = vpow.pop %v405
    %v407 = vmul.f32 %v404, 1.442695
    %v408 = vpow.pop %v407
    %v409 = vsel %vm396, %v406, 0.0
    %410 = vadd.xlane.f32.xlu0 %v409
    %v411 = vpop.xlane.xlu0 %410
    %v412 = vsel %vm396, %v408, 0.0
    %413 = vadd.xlane.f32.xlu0 %v412
    %v414 = vpop.xlane.xlu0 %413
    %v415 = vrcp.pop %v411
    %v416 = vrcp.pop %v414
    %v417 = vmul.f32 %v406, %v415
    %v418 = vmul.f32 %v408, %v416
    %419 = vrot.lane.b32.xlu0 %v294, 64
    %v420 = vpop.permute.xlu0 %419
    %421 = vrot.lane.b32.xlu0 %v299, 64
    %v422 = vpop.permute.xlu0 %421
    %v426 = vsel %vm396, %v417, 0
    %v429 = vsel %vm396, %v418, 0
    %431 = vmatprep.subr.mxu0 0.0
    %432 = vmatpush1.msra.mxu0 0.0
    %433 = vmatprep.subr.mxu0 0.0
    %434 = vmatpush1.msra.mxu0 0.0
    %435 = vmatprep.subr.mxu0 0.0
    %436 = vmatpush1.msra.mxu0 0.0
    %437 = vmatprep.subr.mxu0 0.0
    %438 = vmatpush1.msra.mxu0 0.0
    %439 = vmatprep.subr.mxu0 0.0
    %440 = vmatpush1.msra.mxu0 0.0
    %441 = vmatprep.subr.mxu0 0.0
    %442 = vmatpush1.msra.mxu0 0.0
    %443 = vmatprep.subr.mxu0 0.0
    %444 = vmatpush1.msra.mxu0 0.0
    %445 = vmatprep.subr.mxu0 0.0
    %446 = vmatpush1.msra.mxu0 0.0
    %447 = vmatprep.subr.mxu0 0.0
    %448 = vmatpush1.msra.mxu0 0.0
    %449 = vmatprep.subr.mxu0 0.0
    %450 = vmatpush1.msra.mxu0 0.0
    %451 = vmatprep.subr.mxu0 0.0
    %452 = vmatpush1.msra.mxu0 0.0
    %453 = vmatprep.subr.mxu0 0.0
    %454 = vmatpush1.msra.mxu0 0.0
    %455 = vmatprep.subr.mxu0 0.0
    %456 = vmatpush1.msra.mxu0 0.0
    %457 = vmatprep.subr.mxu0 0.0
    %458 = vmatpush1.msra.mxu0 0.0
    %459 = vmatprep.subr.mxu0 0.0
    %460 = vmatpush1.msra.mxu0 %v422
    %461 = vmatprep.subr.mxu0 0.0
    %462 = vmatpush1.msra.mxu0 %v420
    %463 = vmatprep.subr.mxu0 0.0
    %464 = vmatpush2.msra.mxu0 0.0
    %465 = vmatprep.subr.mxu0 0.0
    %466 = vmatpush2.msra.mxu0 0.0
    %467 = vmatprep.subr.mxu0 0.0
    %468 = vmatpush2.msra.mxu0 0.0
    %469 = vmatprep.subr.mxu0 0.0
    %470 = vmatpush2.msra.mxu0 0.0
    %471 = vmatprep.subr.mxu0 0.0
    %472 = vmatpush2.msra.mxu0 0.0
    %473 = vmatprep.subr.mxu0 0.0
    %474 = vmatpush2.msra.mxu0 0.0
    %475 = vmatprep.subr.mxu0 0.0
    %476 = vmatpush2.msra.mxu0 0.0
    %477 = vmatprep.subr.mxu0 0.0
    %478 = vmatpush2.msra.mxu0 0.0
    %479 = vmatprep.subr.mxu0 0.0
    %480 = vmatpush2.msra.mxu0 0.0
    %481 = vmatprep.subr.mxu0 0.0
    %482 = vmatpush2.msra.mxu0 0.0
    %483 = vmatprep.subr.mxu0 0.0
    %484 = vmatpush2.msra.mxu0 0.0
    %485 = vmatprep.subr.mxu0 0.0
    %486 = vmatpush2.msra.mxu0 0.0
    %487 = vmatprep.subr.mxu0 0.0
    %488 = vmatpush2.msra.mxu0 0.0
    %489 = vmatprep.subr.mxu0 0.0
    %490 = vmatpush2.msra.mxu0 0.0
    %491 = vmatprep.subr.mxu0 0.0
    %492 = vmatpush2.msra.mxu0 0.0
    %493 = vmatprep.subr.mxu0 0.0
    %494 = vmatpush2.msra.mxu0 0.0
    %495 = vmatprep.mubr.f32.mxu0 0.0
    %496 = vmatmul.mubr.f32.gmra.mxu0 %v426
    %v497 = vpop.f32.mrf.mxu0
    %v498 = vadd.f32 0.0, %v497
    %v499 = vpop.f32.mrf.mxu0
    %500 = vmatprep.mubr.f32.mxu0 0.0
    %501 = vmatmul.mubr.f32.gmra.mxu0 %v429
    %v502 = vpop.f32.mrf.mxu0
    %v503 = vadd.f32 0.0, %v502
    %v504 = vpop.f32.mrf.mxu0
    %505 = vdwg.mxu0
    %506 = vrot.lane.b32.xlu0 %v294, 120
    %v507 = vpop.permute.xlu0 %506
    %508 = vrot.lane.b32.xlu0 %v299, 120
    %v509 = vpop.permute.xlu0 %508
    %510 = vrot.lane.b32.xlu0 %v294, 88
    %v511 = vpop.permute.xlu0 %510
    %512 = vrot.lane.b32.xlu0 %v299, 88
    %v513 = vpop.permute.xlu0 %512
    %v514 = vsel %vm308, %v507, 0
    %v516 = vsel %vm308, %v509, 0
    %v518 = vsel %vm308, %v511, 0
    %v520 = vsel %vm308, %v513, 0
    %522 = vmatprep.subr.mxu0 0.0
    %523 = vmatpush1.xpose.msra.mxu0 0.0
    %524 = vmatprep.subr.mxu0 0.0
    %525 = vmatpush1.xpose.msra.mxu0 0.0
    %526 = vmatprep.subr.mxu0 0.0
    %527 = vmatpush1.xpose.msra.mxu0 0.0
    %528 = vmatprep.subr.mxu0 0.0
    %529 = vmatpush1.xpose.msra.mxu0 0.0
    %530 = vmatprep.subr.mxu0 0.0
    %531 = vmatpush1.xpose.msra.mxu0 0.0
    %532 = vmatprep.subr.mxu0 0.0
    %533 = vmatpush1.xpose.msra.mxu0 0.0
    %534 = vmatprep.subr.mxu0 0.0
    %535 = vmatpush1.xpose.msra.mxu0 0.0
    %536 = vmatprep.subr.mxu0 0.0
    %537 = vmatpush1.xpose.msra.mxu0 0.0
    %538 = vmatprep.subr.mxu0 0.0
    %539 = vmatpush1.xpose.msra.mxu0 0.0
    %540 = vmatprep.subr.mxu0 0.0
    %541 = vmatpush1.xpose.msra.mxu0 0.0
    %542 = vmatprep.subr.mxu0 0.0
    %543 = vmatpush1.xpose.msra.mxu0 0.0
    %544 = vmatprep.subr.mxu0 0.0
    %545 = vmatpush1.xpose.msra.mxu0 0.0
    %546 = vmatprep.subr.mxu0 0.0
    %547 = vmatpush1.xpose.msra.mxu0 0.0
    %548 = vmatprep.subr.mxu0 0.0
    %549 = vmatpush1.xpose.msra.mxu0 0.0
    %550 = vmatprep.subr.mxu0 0.0
    %551 = vmatpush1.xpose.msra.mxu0 %v520
    %552 = vmatprep.subr.mxu0 0.0
    %553 = vmatpush1.xpose.msra.mxu0 %v518
    %554 = vmatprep.subr.mxu0 0.0
    %555 = vmatpush2.xpose.msra.mxu0 0.0
    %556 = vmatprep.subr.mxu0 0.0
    %557 = vmatpush2.xpose.msra.mxu0 0.0
    %558 = vmatprep.subr.mxu0 0.0
    %559 = vmatpush2.xpose.msra.mxu0 0.0
    %560 = vmatprep.subr.mxu0 0.0
    %561 = vmatpush2.xpose.msra.mxu0 0.0
    %562 = vmatprep.subr.mxu0 0.0
    %563 = vmatpush2.xpose.msra.mxu0 0.0
    %564 = vmatprep.subr.mxu0 0.0
    %565 = vmatpush2.xpose.msra.mxu0 0.0
    %566 = vmatprep.subr.mxu0 0.0
    %567 = vmatpush2.xpose.msra.mxu0 0.0
    %568 = vmatprep.subr.mxu0 0.0
    %569 = vmatpush2.xpose.msra.mxu0 0.0
    %570 = vmatprep.subr.mxu0 0.0
    %571 = vmatpush2.xpose.msra.mxu0 0.0
    %572 = vmatprep.subr.mxu0 0.0
    %573 = vmatpush2.xpose.msra.mxu0 0.0
    %574 = vmatprep.subr.mxu0 0.0
    %575 = vmatpush2.xpose.msra.mxu0 0.0
    %576 = vmatprep.subr.mxu0 0.0
    %577 = vmatpush2.xpose.msra.mxu0 0.0
    %578 = vmatprep.subr.mxu0 0.0
    %579 = vmatpush2.xpose.msra.mxu0 0.0
    %580 = vmatprep.subr.mxu0 0.0
    %581 = vmatpush2.xpose.msra.mxu0 0.0
    %582 = vmatprep.subr.mxu0 0.0
    %583 = vmatpush2.xpose.msra.mxu0 0.0
    %584 = vmatprep.subr.mxu0 0.0
    %585 = vmatpush2.xpose.msra.mxu0 0.0
    %586 = vmatprep.mubr.f32.mxu0 0.0
    %587 = vmatmul.mubr.f32.gmra.mxu0 %v514
    %v588 = vpop.f32.mrf.mxu0
    %v589 = vadd.f32 0.0, %v588
    %v590 = vpop.f32.mrf.mxu0
    %591 = vmatprep.mubr.f32.mxu0 0.0
    %592 = vmatmul.mubr.f32.gmra.mxu0 %v516
    %v593 = vpop.f32.mrf.mxu0
    %v594 = vadd.f32 0.0, %v593
    %v595 = vpop.f32.mrf.mxu0
    %596 = vdwg.mxu0
    %v597 = vmul.f32 %v589, 0.35355338
    %v598 = vmul.f32 %v594, 0.35355338
    %v599 = vadd.f32 %v597, %v135
    %v600 = vadd.f32 %v598, %v136
    %v601 = vsel %vm396, %v599, -inf
    %602 = vmax.xlane.f32.xlu0 %v601
    %v603 = vpop.xlane.xlu0 %602
    %v604 = vsel %vm396, %v600, -inf
    %605 = vmax.xlane.f32.xlu0 %v604
    %v606 = vpop.xlane.xlu0 %605
    %v607 = vsub.f32 %v599, %v603
    %v608 = vsub.f32 %v600, %v606
    %v609 = vmul.f32 %v607, 1.442695
    %v610 = vpow.pop %v609
    %v611 = vmul.f32 %v608, 1.442695
    %v612 = vpow.pop %v611
    %v613 = vsel %vm396, %v610, 0.0
    %614 = vadd.xlane.f32.xlu0 %v613
    %v615 = vpop.xlane.xlu0 %614
    %v616 = vsel %vm396, %v612, 0.0
    %617 = vadd.xlane.f32.xlu0 %v616
    %v618 = vpop.xlane.xlu0 %617
    %v619 = vrcp.pop %v615
    %v620 = vrcp.pop %v618
    %v621 = vmul.f32 %v610, %v619
    %v622 = vmul.f32 %v612, %v620
    %623 = vrot.lane.b32.xlu0 %v294, 56
    %v624 = vpop.permute.xlu0 %623
    %625 = vrot.lane.b32.xlu0 %v299, 56
    %v626 = vpop.permute.xlu0 %625
    %v630 = vsel %vm396, %v621, 0
    %v633 = vsel %vm396, %v622, 0
    %635 = vmatprep.subr.mxu0 0.0
    %636 = vmatpush1.msra.mxu0 0.0
    %637 = vmatprep.subr.mxu0 0.0
    %638 = vmatpush1.msra.mxu0 0.0
    %639 = vmatprep.subr.mxu0 0.0
    %640 = vmatpush1.msra.mxu0 0.0
    %641 = vmatprep.subr.mxu0 0.0
    %642 = vmatpush1.msra.mxu0 0.0
    %643 = vmatprep.subr.mxu0 0.0
    %644 = vmatpush1.msra.mxu0 0.0
    %645 = vmatprep.subr.mxu0 0.0
    %646 = vmatpush1.msra.mxu0 0.0
    %647 = vmatprep.subr.mxu0 0.0
    %648 = vmatpush1.msra.mxu0 0.0
    %649 = vmatprep.subr.mxu0 0.0
    %650 = vmatpush1.msra.mxu0 0.0
    %651 = vmatprep.subr.mxu0 0.0
    %652 = vmatpush1.msra.mxu0 0.0
    %653 = vmatprep.subr.mxu0 0.0
    %654 = vmatpush1.msra.mxu0 0.0
    %655 = vmatprep.subr.mxu0 0.0
    %656 = vmatpush1.msra.mxu0 0.0
    %657 = vmatprep.subr.mxu0 0.0
    %658 = vmatpush1.msra.mxu0 0.0
    %659 = vmatprep.subr.mxu0 0.0
    %660 = vmatpush1.msra.mxu0 0.0
    %661 = vmatprep.subr.mxu0 0.0
    %662 = vmatpush1.msra.mxu0 0.0
    %663 = vmatprep.subr.mxu0 0.0
    %664 = vmatpush1.msra.mxu0 %v626
    %665 = vmatprep.subr.mxu0 0.0
    %666 = vmatpush1.msra.mxu0 %v624
    %667 = vmatprep.subr.mxu0 0.0
    %668 = vmatpush2.msra.mxu0 0.0
    %669 = vmatprep.subr.mxu0 0.0
    %670 = vmatpush2.msra.mxu0 0.0
    %671 = vmatprep.subr.mxu0 0.0
    %672 = vmatpush2.msra.mxu0 0.0
    %673 = vmatprep.subr.mxu0 0.0
    %674 = vmatpush2.msra.mxu0 0.0
    %675 = vmatprep.subr.mxu0 0.0
    %676 = vmatpush2.msra.mxu0 0.0
    %677 = vmatprep.subr.mxu0 0.0
    %678 = vmatpush2.msra.mxu0 0.0
    %679 = vmatprep.subr.mxu0 0.0
    %680 = vmatpush2.msra.mxu0 0.0
    %681 = vmatprep.subr.mxu0 0.0
    %682 = vmatpush2.msra.mxu0 0.0
    %683 = vmatprep.subr.mxu0 0.0
    %684 = vmatpush2.msra.mxu0 0.0
    %685 = vmatprep.subr.mxu0 0.0
    %686 = vmatpush2.msra.mxu0 0.0
    %687 = vmatprep.subr.mxu0 0.0
    %688 = vmatpush2.msra.mxu0 0.0
    %689 = vmatprep.subr.mxu0 0.0
    %690 = vmatpush2.msra.mxu0 0.0
    %691 = vmatprep.subr.mxu0 0.0
    %692 = vmatpush2.msra.mxu0 0.0
    %693 = vmatprep.subr.mxu0 0.0
    %694 = vmatpush2.msra.mxu0 0.0
    %695 = vmatprep.subr.mxu0 0.0
    %696 = vmatpush2.msra.mxu0 0.0
    %697 = vmatprep.subr.mxu0 0.0
    %698 = vmatpush2.msra.mxu0 0.0
    %699 = vmatprep.mubr.f32.mxu0 0.0
    %700 = vmatmul.mubr.f32.gmra.mxu0 %v630
    %v701 = vpop.f32.mrf.mxu0
    %v702 = vadd.f32 0.0, %v701
    %v703 = vpop.f32.mrf.mxu0
    %704 = vmatprep.mubr.f32.mxu0 0.0
    %705 = vmatmul.mubr.f32.gmra.mxu0 %v633
    %v706 = vpop.f32.mrf.mxu0
    %v707 = vadd.f32 0.0, %v706
    %v708 = vpop.f32.mrf.mxu0
    %709 = vdwg.mxu0
    %710 = vrot.lane.b32.xlu0 %v294, 112
    %v711 = vpop.permute.xlu0 %710
    %712 = vrot.lane.b32.xlu0 %v299, 112
    %v713 = vpop.permute.xlu0 %712
    %714 = vrot.lane.b32.xlu0 %v294, 80
    %v715 = vpop.permute.xlu0 %714
    %716 = vrot.lane.b32.xlu0 %v299, 80
    %v717 = vpop.permute.xlu0 %716
    %v718 = vsel %vm308, %v711, 0
    %v720 = vsel %vm308, %v713, 0
    %v722 = vsel %vm308, %v715, 0
    %v724 = vsel %vm308, %v717, 0
    %726 = vmatprep.subr.mxu0 0.0
    %727 = vmatpush1.xpose.msra.mxu0 0.0
    %728 = vmatprep.subr.mxu0 0.0
    %729 = vmatpush1.xpose.msra.mxu0 0.0
    %730 = vmatprep.subr.mxu0 0.0
    %731 = vmatpush1.xpose.msra.mxu0 0.0
    %732 = vmatprep.subr.mxu0 0.0
    %733 = vmatpush1.xpose.msra.mxu0 0.0
    %734 = vmatprep.subr.mxu0 0.0
    %735 = vmatpush1.xpose.msra.mxu0 0.0
    %736 = vmatprep.subr.mxu0 0.0
    %737 = vmatpush1.xpose.msra.mxu0 0.0
    %738 = vmatprep.subr.mxu0 0.0
    %739 = vmatpush1.xpose.msra.mxu0 0.0
    %740 = vmatprep.subr.mxu0 0.0
    %741 = vmatpush1.xpose.msra.mxu0 0.0
    %742 = vmatprep.subr.mxu0 0.0
    %743 = vmatpush1.xpose.msra.mxu0 0.0
    %744 = vmatprep.subr.mxu0 0.0
    %745 = vmatpush1.xpose.msra.mxu0 0.0
    %746 = vmatprep.subr.mxu0 0.0
    %747 = vmatpush1.xpose.msra.mxu0 0.0
    %748 = vmatprep.subr.mxu0 0.0
    %749 = vmatpush1.xpose.msra.mxu0 0.0
    %750 = vmatprep.subr.mxu0 0.0
    %751 = vmatpush1.xpose.msra.mxu0 0.0
    %752 = vmatprep.subr.mxu0 0.0
    %753 = vmatpush1.xpose.msra.mxu0 0.0
    %754 = vmatprep.subr.mxu0 0.0
    %755 = vmatpush1.xpose.msra.mxu0 %v724
    %756 = vmatprep.subr.mxu0 0.0
    %757 = vmatpush1.xpose.msra.mxu0 %v722
    %758 = vmatprep.subr.mxu0 0.0
    %759 = vmatpush2.xpose.msra.mxu0 0.0
    %760 = vmatprep.subr.mxu0 0.0
    %761 = vmatpush2.xpose.msra.mxu0 0.0
    %762 = vmatprep.subr.mxu0 0.0
    %763 = vmatpush2.xpose.msra.mxu0 0.0
    %764 = vmatprep.subr.mxu0 0.0
    %765 = vmatpush2.xpose.msra.mxu0 0.0
    %766 = vmatprep.subr.mxu0 0.0
    %767 = vmatpush2.xpose.msra.mxu0 0.0
    %768 = vmatprep.subr.mxu0 0.0
    %769 = vmatpush2.xpose.msra.mxu0 0.0
    %770 = vmatprep.subr.mxu0 0.0
    %771 = vmatpush2.xpose.msra.mxu0 0.0
    %772 = vmatprep.subr.mxu0 0.0
    %773 = vmatpush2.xpose.msra.mxu0 0.0
    %774 = vmatprep.subr.mxu0 0.0
    %775 = vmatpush2.xpose.msra.mxu0 0.0
    %776 = vmatprep.subr.mxu0 0.0
    %777 = vmatpush2.xpose.msra.mxu0 0.0
    %778 = vmatprep.subr.mxu0 0.0
    %779 = vmatpush2.xpose.msra.mxu0 0.0
    %780 = vmatprep.subr.mxu0 0.0
    %781 = vmatpush2.xpose.msra.mxu0 0.0
    %782 = vmatprep.subr.mxu0 0.0
    %783 = vmatpush2.xpose.msra.mxu0 0.0
    %784 = vmatprep.subr.mxu0 0.0
    %785 = vmatpush2.xpose.msra.mxu0 0.0
    %786 = vmatprep.subr.mxu0 0.0
    %787 = vmatpush2.xpose.msra.mxu0 0.0
    %788 = vmatprep.subr.mxu0 0.0
    %789 = vmatpush2.xpose.msra.mxu0 0.0
    %790 = vmatprep.mubr.f32.mxu0 0.0
    %791 = vmatmul.mubr.f32.gmra.mxu0 %v718
    %v792 = vpop.f32.mrf.mxu0
    %v793 = vadd.f32 0.0, %v792
    %v794 = vpop.f32.mrf.mxu0
    %795 = vmatprep.mubr.f32.mxu0 0.0
    %796 = vmatmul.mubr.f32.gmra.mxu0 %v720
    %v797 = vpop.f32.mrf.mxu0
    %v798 = vadd.f32 0.0, %v797
    %v799 = vpop.f32.mrf.mxu0
    %800 = vdwg.mxu0
    %v801 = vmul.f32 %v793, 0.35355338
    %v802 = vmul.f32 %v798, 0.35355338
    %v803 = vadd.f32 %v801, %v135
    %v804 = vadd.f32 %v802, %v136
    %v805 = vsel %vm396, %v803, -inf
    %806 = vmax.xlane.f32.xlu0 %v805
    %v807 = vpop.xlane.xlu0 %806
    %v808 = vsel %vm396, %v804, -inf
    %809 = vmax.xlane.f32.xlu0 %v808
    %v810 = vpop.xlane.xlu0 %809
    %v811 = vsub.f32 %v803, %v807
    %v812 = vsub.f32 %v804, %v810
    %v813 = vmul.f32 %v811, 1.442695
    %v814 = vpow.pop %v813
    %v815 = vmul.f32 %v812, 1.442695
    %v816 = vpow.pop %v815
    %v817 = vsel %vm396, %v814, 0.0
    %818 = vadd.xlane.f32.xlu0 %v817
    %v819 = vpop.xlane.xlu0 %818
    %v820 = vsel %vm396, %v816, 0.0
    %821 = vadd.xlane.f32.xlu0 %v820
    %v822 = vpop.xlane.xlu0 %821
    %v823 = vrcp.pop %v819
    %v824 = vrcp.pop %v822
    %v825 = vmul.f32 %v814, %v823
    %v826 = vmul.f32 %v816, %v824
    %827 = vrot.lane.b32.xlu0 %v294, 48
    %v828 = vpop.permute.xlu0 %827
    %829 = vrot.lane.b32.xlu0 %v299, 48
    %v830 = vpop.permute.xlu0 %829
    %v834 = vsel %vm396, %v825, 0
    %v837 = vsel %vm396, %v826, 0
    %839 = vmatprep.subr.mxu0 0.0
    %840 = vmatpush1.msra.mxu0 0.0
    %841 = vmatprep.subr.mxu0 0.0
    %842 = vmatpush1.msra.mxu0 0.0
    %843 = vmatprep.subr.mxu0 0.0
    %844 = vmatpush1.msra.mxu0 0.0
    %845 = vmatprep.subr.mxu0 0.0
    %846 = vmatpush1.msra.mxu0 0.0
    %847 = vmatprep.subr.mxu0 0.0
    %848 = vmatpush1.msra.mxu0 0.0
    %849 = vmatprep.subr.mxu0 0.0
    %850 = vmatpush1.msra.mxu0 0.0
    %851 = vmatprep.subr.mxu0 0.0
    %852 = vmatpush1.msra.mxu0 0.0
    %853 = vmatprep.subr.mxu0 0.0
    %854 = vmatpush1.msra.mxu0 0.0
    %855 = vmatprep.subr.mxu0 0.0
    %856 = vmatpush1.msra.mxu0 0.0
    %857 = vmatprep.subr.mxu0 0.0
    %858 = vmatpush1.msra.mxu0 0.0
    %859 = vmatprep.subr.mxu0 0.0
    %860 = vmatpush1.msra.mxu0 0.0
    %861 = vmatprep.subr.mxu0 0.0
    %862 = vmatpush1.msra.mxu0 0.0
    %863 = vmatprep.subr.mxu0 0.0
    %864 = vmatpush1.msra.mxu0 0.0
    %865 = vmatprep.subr.mxu0 0.0
    %866 = vmatpush1.msra.mxu0 0.0
    %867 = vmatprep.subr.mxu0 0.0
    %868 = vmatpush1.msra.mxu0 %v830
    %869 = vmatprep.subr.mxu0 0.0
    %870 = vmatpush1.msra.mxu0 %v828
    %871 = vmatprep.subr.mxu0 0.0
    %872 = vmatpush2.msra.mxu0 0.0
    %873 = vmatprep.subr.mxu0 0.0
    %874 = vmatpush2.msra.mxu0 0.0
    %875 = vmatprep.subr.mxu0 0.0
    %876 = vmatpush2.msra.mxu0 0.0
    %877 = vmatprep.subr.mxu0 0.0
    %878 = vmatpush2.msra.mxu0 0.0
    %879 = vmatprep.subr.mxu0 0.0
    %880 = vmatpush2.msra.mxu0 0.0
    %881 = vmatprep.subr.mxu0 0.0
    %882 = vmatpush2.msra.mxu0 0.0
    %883 = vmatprep.subr.mxu0 0.0
    %884 = vmatpush2.msra.mxu0 0.0
    %885 = vmatprep.subr.mxu0 0.0
    %886 = vmatpush2.msra.mxu0 0.0
    %887 = vmatprep.subr.mxu0 0.0
    %888 = vmatpush2.msra.mxu0 0.0
    %889 = vmatprep.subr.mxu0 0.0
    %890 = vmatpush2.msra.mxu0 0.0
    %891 = vmatprep.subr.mxu0 0.0
    %892 = vmatpush2.msra.mxu0 0.0
    %893 = vmatprep.subr.mxu0 0.0
    %894 = vmatpush2.msra.mxu0 0.0
    %895 = vmatprep.subr.mxu0 0.0
    %896 = vmatpush2.msra.mxu0 0.0
    %897 = vmatprep.subr.mxu0 0.0
    %898 = vmatpush2.msra.mxu0 0.0
    %899 = vmatprep.subr.mxu0 0.0
    %900 = vmatpush2.msra.mxu0 0.0
    %901 = vmatprep.subr.mxu0 0.0
    %902 = vmatpush2.msra.mxu0 0.0
    %903 = vmatprep.mubr.f32.mxu0 0.0
    %904 = vmatmul.mubr.f32.gmra.mxu0 %v834
    %v905 = vpop.f32.mrf.mxu0
    %v906 = vadd.f32 0.0, %v905
    %v907 = vpop.f32.mrf.mxu0
    %908 = vmatprep.mubr.f32.mxu0 0.0
    %909 = vmatmul.mubr.f32.gmra.mxu0 %v837
    %v910 = vpop.f32.mrf.mxu0
    %v911 = vadd.f32 0.0, %v910
    %v912 = vpop.f32.mrf.mxu0
    %913 = vdwg.mxu0
    %914 = vrot.lane.b32.xlu0 %v294, 104
    %v915 = vpop.permute.xlu0 %914
    %916 = vrot.lane.b32.xlu0 %v299, 104
    %v917 = vpop.permute.xlu0 %916
    %918 = vrot.lane.b32.xlu0 %v294, 72
    %v919 = vpop.permute.xlu0 %918
    %920 = vrot.lane.b32.xlu0 %v299, 72
    %v921 = vpop.permute.xlu0 %920
    %v922 = vsel %vm308, %v915, 0
    %v924 = vsel %vm308, %v917, 0
    %v926 = vsel %vm308, %v919, 0
    %v928 = vsel %vm308, %v921, 0
    %930 = vmatprep.subr.mxu0 0.0
    %931 = vmatpush1.xpose.msra.mxu0 0.0
    %932 = vmatprep.subr.mxu0 0.0
    %933 = vmatpush1.xpose.msra.mxu0 0.0
    %934 = vmatprep.subr.mxu0 0.0
    %935 = vmatpush1.xpose.msra.mxu0 0.0
    %936 = vmatprep.subr.mxu0 0.0
    %937 = vmatpush1.xpose.msra.mxu0 0.0
    %938 = vmatprep.subr.mxu0 0.0
    %939 = vmatpush1.xpose.msra.mxu0 0.0
    %940 = vmatprep.subr.mxu0 0.0
    %941 = vmatpush1.xpose.msra.mxu0 0.0
    %942 = vmatprep.subr.mxu0 0.0
    %943 = vmatpush1.xpose.msra.mxu0 0.0
    %944 = vmatprep.subr.mxu0 0.0
    %945 = vmatpush1.xpose.msra.mxu0 0.0
    %946 = vmatprep.subr.mxu0 0.0
    %947 = vmatpush1.xpose.msra.mxu0 0.0
    %948 = vmatprep.subr.mxu0 0.0
    %949 = vmatpush1.xpose.msra.mxu0 0.0
    %950 = vmatprep.subr.mxu0 0.0
    %951 = vmatpush1.xpose.msra.mxu0 0.0
    %952 = vmatprep.subr.mxu0 0.0
    %953 = vmatpush1.xpose.msra.mxu0 0.0
    %954 = vmatprep.subr.mxu0 0.0
    %955 = vmatpush1.xpose.msra.mxu0 0.0
    %956 = vmatprep.subr.mxu0 0.0
    %957 = vmatpush1.xpose.msra.mxu0 0.0
    %958 = vmatprep.subr.mxu0 0.0
    %959 = vmatpush1.xpose.msra.mxu0 %v928
    %960 = vmatprep.subr.mxu0 0.0
    %961 = vmatpush1.xpose.msra.mxu0 %v926
    %962 = vmatprep.subr.mxu0 0.0
    %963 = vmatpush2.xpose.msra.mxu0 0.0
    %964 = vmatprep.subr.mxu0 0.0
    %965 = vmatpush2.xpose.msra.mxu0 0.0
    %966 = vmatprep.subr.mxu0 0.0
    %967 = vmatpush2.xpose.msra.mxu0 0.0
    %968 = vmatprep.subr.mxu0 0.0
    %969 = vmatpush2.xpose.msra.mxu0 0.0
    %970 = vmatprep.subr.mxu0 0.0
    %971 = vmatpush2.xpose.msra.mxu0 0.0
    %972 = vmatprep.subr.mxu0 0.0
    %973 = vmatpush2.xpose.msra.mxu0 0.0
    %974 = vmatprep.subr.mxu0 0.0
    %975 = vmatpush2.xpose.msra.mxu0 0.0
    %976 = vmatprep.subr.mxu0 0.0
    %977 = vmatpush2.xpose.msra.mxu0 0.0
    %978 = vmatprep.subr.mxu0 0.0
    %979 = vmatpush2.xpose.msra.mxu0 0.0
    %980 = vmatprep.subr.mxu0 0.0
    %981 = vmatpush2.xpose.msra.mxu0 0.0
    %982 = vmatprep.subr.mxu0 0.0
    %983 = vmatpush2.xpose.msra.mxu0 0.0
    %984 = vmatprep.subr.mxu0 0.0
    %985 = vmatpush2.xpose.msra.mxu0 0.0
    %986 = vmatprep.subr.mxu0 0.0
    %987 = vmatpush2.xpose.msra.mxu0 0.0
    %988 = vmatprep.subr.mxu0 0.0
    %989 = vmatpush2.xpose.msra.mxu0 0.0
    %990 = vmatprep.subr.mxu0 0.0
    %991 = vmatpush2.xpose.msra.mxu0 0.0
    %992 = vmatprep.subr.mxu0 0.0
    %993 = vmatpush2.xpose.msra.mxu0 0.0
    %994 = vmatprep.mubr.f32.mxu0 0.0
    %995 = vmatmul.mubr.f32.gmra.mxu0 %v922
    %v996 = vpop.f32.mrf.mxu0
    %v997 = vadd.f32 0.0, %v996
    %v998 = vpop.f32.mrf.mxu0
    %999 = vmatprep.mubr.f32.mxu0 0.0
    %1000 = vmatmul.mubr.f32.gmra.mxu0 %v924
    %v1001 = vpop.f32.mrf.mxu0
    %v1002 = vadd.f32 0.0, %v1001
    %v1003 = vpop.f32.mrf.mxu0
    %1004 = vdwg.mxu0
    %v1005 = vmul.f32 %v997, 0.35355338
    %v1006 = vmul.f32 %v1002, 0.35355338
    %v1007 = vadd.f32 %v1005, %v135
    %v1008 = vadd.f32 %v1006, %v136
    %v1009 = vsel %vm396, %v1007, -inf
    %1010 = vmax.xlane.f32.xlu0 %v1009
    %v1011 = vpop.xlane.xlu0 %1010
    %v1012 = vsel %vm396, %v1008, -inf
    %1013 = vmax.xlane.f32.xlu0 %v1012
    %v1014 = vpop.xlane.xlu0 %1013
    %v1015 = vsub.f32 %v1007, %v1011
    %v1016 = vsub.f32 %v1008, %v1014
    %v1017 = vmul.f32 %v1015, 1.442695
    %v1018 = vpow.pop %v1017
    %v1019 = vmul.f32 %v1016, 1.442695
    %v1020 = vpow.pop %v1019
    %v1021 = vsel %vm396, %v1018, 0.0
    %1022 = vadd.xlane.f32.xlu0 %v1021
    %v1023 = vpop.xlane.xlu0 %1022
    %v1024 = vsel %vm396, %v1020, 0.0
    %1025 = vadd.xlane.f32.xlu0 %v1024
    %v1026 = vpop.xlane.xlu0 %1025
    %v1027 = vrcp.pop %v1023
    %v1028 = vrcp.pop %v1026
    %v1029 = vmul.f32 %v1018, %v1027
    %v1030 = vmul.f32 %v1020, %v1028
    %1031 = vrot.lane.b32.xlu0 %v294, 40
    %v1032 = vpop.permute.xlu0 %1031
    %1033 = vrot.lane.b32.xlu0 %v299, 40
    %v1034 = vpop.permute.xlu0 %1033
    %v1038 = vsel %vm396, %v1029, 0
    %v1041 = vsel %vm396, %v1030, 0
    %1043 = vmatprep.subr.mxu0 0.0
    %1044 = vmatpush1.msra.mxu0 0.0
    %1045 = vmatprep.subr.mxu0 0.0
    %1046 = vmatpush1.msra.mxu0 0.0
    %1047 = vmatprep.subr.mxu0 0.0
    %1048 = vmatpush1.msra.mxu0 0.0
    %1049 = vmatprep.subr.mxu0 0.0
    %1050 = vmatpush1.msra.mxu0 0.0
    %1051 = vmatprep.subr.mxu0 0.0
    %1052 = vmatpush1.msra.mxu0 0.0
    %1053 = vmatprep.subr.mxu0 0.0
    %1054 = vmatpush1.msra.mxu0 0.0
    %1055 = vmatprep.subr.mxu0 0.0
    %1056 = vmatpush1.msra.mxu0 0.0
    %1057 = vmatprep.subr.mxu0 0.0
    %1058 = vmatpush1.msra.mxu0 0.0
    %1059 = vmatprep.subr.mxu0 0.0
    %1060 = vmatpush1.msra.mxu0 0.0
    %1061 = vmatprep.subr.mxu0 0.0
    %1062 = vmatpush1.msra.mxu0 0.0
    %1063 = vmatprep.subr.mxu0 0.0
    %1064 = vmatpush1.msra.mxu0 0.0
    %1065 = vmatprep.subr.mxu0 0.0
    %1066 = vmatpush1.msra.mxu0 0.0
    %1067 = vmatprep.subr.mxu0 0.0
    %1068 = vmatpush1.msra.mxu0 0.0
    %1069 = vmatprep.subr.mxu0 0.0
    %1070 = vmatpush1.msra.mxu0 0.0
    %1071 = vmatprep.subr.mxu0 0.0
    %1072 = vmatpush1.msra.mxu0 %v1034
    %1073 = vmatprep.subr.mxu0 0.0
    %1074 = vmatpush1.msra.mxu0 %v1032
    %1075 = vmatprep.subr.mxu0 0.0
    %1076 = vmatpush2.msra.mxu0 0.0
    %1077 = vmatprep.subr.mxu0 0.0
    %1078 = vmatpush2.msra.mxu0 0.0
    %1079 = vmatprep.subr.mxu0 0.0
    %1080 = vmatpush2.msra.mxu0 0.0
    %1081 = vmatprep.subr.mxu0 0.0
    %1082 = vmatpush2.msra.mxu0 0.0
    %1083 = vmatprep.subr.mxu0 0.0
    %1084 = vmatpush2.msra.mxu0 0.0
    %1085 = vmatprep.subr.mxu0 0.0
    %1086 = vmatpush2.msra.mxu0 0.0
    %1087 = vmatprep.subr.mxu0 0.0
    %1088 = vmatpush2.msra.mxu0 0.0
    %1089 = vmatprep.subr.mxu0 0.0
    %1090 = vmatpush2.msra.mxu0 0.0
    %1091 = vmatprep.subr.mxu0 0.0
    %1092 = vmatpush2.msra.mxu0 0.0
    %1093 = vmatprep.subr.mxu0 0.0
    %1094 = vmatpush2.msra.mxu0 0.0
    %1095 = vmatprep.subr.mxu0 0.0
    %1096 = vmatpush2.msra.mxu0 0.0
    %1097 = vmatprep.subr.mxu0 0.0
    %1098 = vmatpush2.msra.mxu0 0.0
    %1099 = vmatprep.subr.mxu0 0.0
    %1100 = vmatpush2.msra.mxu0 0.0
    %1101 = vmatprep.subr.mxu0 0.0
    %1102 = vmatpush2.msra.mxu0 0.0
    %1103 = vmatprep.subr.mxu0 0.0
    %1104 = vmatpush2.msra.mxu0 0.0
    %1105 = vmatprep.subr.mxu0 0.0
    %1106 = vmatpush2.msra.mxu0 0.0
    %1107 = vmatprep.mubr.f32.mxu0 0.0
    %1108 = vmatmul.mubr.f32.gmra.mxu0 %v1038
    %v1109 = vpop.f32.mrf.mxu0
    %v1110 = vadd.f32 0.0, %v1109
    %v1111 = vpop.f32.mrf.mxu0
    %1112 = vmatprep.mubr.f32.mxu0 0.0
    %1113 = vmatmul.mubr.f32.gmra.mxu0 %v1041
    %v1114 = vpop.f32.mrf.mxu0
    %v1115 = vadd.f32 0.0, %v1114
    %v1116 = vpop.f32.mrf.mxu0
    %1117 = vdwg.mxu0
    %1120 = vrot.lane.b32.xlu0 %v702, 8
    %v1121 = vpop.permute.xlu0 %1120
    %1122 = vrot.lane.b32.xlu0 %v707, 8
    %v1123 = vpop.permute.xlu0 %1122
    %1128 = vrot.lane.b32.xlu0 %v906, 16
    %v1129 = vpop.permute.xlu0 %1128
    %1130 = vrot.lane.b32.xlu0 %v911, 16
    %v1131 = vpop.permute.xlu0 %1130
    %1136 = vrot.lane.b32.xlu0 %v1110, 24
    %v1137 = vpop.permute.xlu0 %1136
    %1138 = vrot.lane.b32.xlu0 %v1115, 24
    %v1139 = vpop.permute.xlu0 %1138
    %v1142 = vsel %vm308, %v498, %v1121
    %v1143 = vsel %vm308, %v503, %v1123
    %v1144 = vsel %vm396, %v1142, %v1129
    %v1145 = vsel %vm396, %v1143, %v1131
    %vm1146 = vcmask 195584
    %v1147 = vsel %vm1146, %v1144, %v1137
    %v1148 = vsel %vm1146, %v1145, %v1139
    %v1150 = vlaneseq
    %v1151 = vshrl.u32 %v1150, 7
    %v1152 = vsub.s32 0, %v1151
    %v1153 = vrot.slane %v146, %v1152
    %v1156 = vsel %vm220, %v1147, 0
    %v1159 = vsel %vm220, %v1148, 0
    %1161 = vmatprep.subr.mxu0 0.0
    %1162 = vmatpush1.msra.mxu0 0.0
    %1163 = vmatprep.subr.mxu0 0.0
    %1164 = vmatpush1.msra.mxu0 0.0
    %1165 = vmatprep.subr.mxu0 0.0
    %1166 = vmatpush1.msra.mxu0 0.0
    %1167 = vmatprep.subr.mxu0 0.0
    %1168 = vmatpush1.msra.mxu0 0.0
    %1169 = vmatprep.subr.mxu0 0.0
    %1170 = vmatpush1.msra.mxu0 0.0
    %1171 = vmatprep.subr.mxu0 0.0
    %1172 = vmatpush1.msra.mxu0 0.0
    %1173 = vmatprep.subr.mxu0 0.0
    %1174 = vmatpush1.msra.mxu0 0.0
    %1175 = vmatprep.subr.mxu0 0.0
    %1176 = vmatpush1.msra.mxu0 0.0
    %1177 = vmatprep.subr.mxu0 0.0
    %1178 = vmatpush1.msra.mxu0 0.0
    %1179 = vmatprep.subr.mxu0 0.0
    %1180 = vmatpush1.msra.mxu0 0.0
    %1181 = vmatprep.subr.mxu0 0.0
    %1182 = vmatpush1.msra.mxu0 0.0
    %1183 = vmatprep.subr.mxu0 0.0
    %1184 = vmatpush1.msra.mxu0 0.0
    %1185 = vmatprep.subr.mxu0 0.0
    %1186 = vmatpush1.msra.mxu0 %v145
    %1187 = vmatprep.subr.mxu0 0.0
    %1188 = vmatpush1.msra.mxu0 %v144
    %1189 = vmatprep.subr.mxu0 0.0
    %1190 = vmatpush1.msra.mxu0 %v143
    %1191 = vmatprep.subr.mxu0 0.0
    %1192 = vmatpush1.msra.mxu0 %v142
    %1193 = vmatprep.subr.mxu0 0.0
    %1194 = vmatpush2.msra.mxu0 0.0
    %1195 = vmatprep.subr.mxu0 0.0
    %1196 = vmatpush2.msra.mxu0 0.0
    %1197 = vmatprep.subr.mxu0 0.0
    %1198 = vmatpush2.msra.mxu0 0.0
    %1199 = vmatprep.subr.mxu0 0.0
    %1200 = vmatpush2.msra.mxu0 0.0
    %1201 = vmatprep.subr.mxu0 0.0
    %1202 = vmatpush2.msra.mxu0 0.0
    %1203 = vmatprep.subr.mxu0 0.0
    %1204 = vmatpush2.msra.mxu0 0.0
    %1205 = vmatprep.subr.mxu0 0.0
    %1206 = vmatpush2.msra.mxu0 0.0
    %1207 = vmatprep.subr.mxu0 0.0
    %1208 = vmatpush2.msra.mxu0 0.0
    %1209 = vmatprep.subr.mxu0 0.0
    %1210 = vmatpush2.msra.mxu0 0.0
    %1211 = vmatprep.subr.mxu0 0.0
    %1212 = vmatpush2.msra.mxu0 0.0
    %1213 = vmatprep.subr.mxu0 0.0
    %1214 = vmatpush2.msra.mxu0 0.0
    %1215 = vmatprep.subr.mxu0 0.0
    %1216 = vmatpush2.msra.mxu0 0.0
    %1217 = vmatprep.subr.mxu0 0.0
    %1218 = vmatpush2.msra.mxu0 0.0
    %1219 = vmatprep.subr.mxu0 0.0
    %1220 = vmatpush2.msra.mxu0 0.0
    %1221 = vmatprep.subr.mxu0 0.0
    %1222 = vmatpush2.msra.mxu0 0.0
    %1223 = vmatprep.subr.mxu0 0.0
    %1224 = vmatpush2.msra.mxu0 0.0
    %1225 = vmatprep.mubr.f32.mxu0 0.0
    %1226 = vmatmul.mubr.f32.gmra.mxu0 %v1156
    %v1227 = vpop.f32.mrf.mxu0
    %v1228 = vadd.f32 %v1153, %v1227
    %v1229 = vpop.f32.mrf.mxu0
    %1230 = vmatprep.mubr.f32.mxu0 0.0
    %1231 = vmatmul.mubr.f32.gmra.mxu0 %v1159
    %v1232 = vpop.f32.mrf.mxu0
    %v1233 = vadd.f32 %v1153, %v1232
    %v1234 = vpop.f32.mrf.mxu0
    %1235 = vdwg.mxu0
    %v1236 = vadd.f32 %v133, %v1228
    %v1237 = vadd.f32 %v134, %v1233
    %v1238 = vld [vmem:[%s10] sm:$0x1]
    %s1239 = scalar_lea.vmem %s10, 1
    %v1240 = vld [vmem:[%s1239] sm:$0x1]
    %v1241 = vsel %vm220, %v1236, 0.0
    %1242 = vadd.xlane.f32.xlu0 %v1241
    %v1243 = vpop.xlane.xlu0 %1242
    %v1244 = vsel %vm220, %v1237, 0.0
    %1245 = vadd.xlane.f32.xlu0 %v1244
    %v1246 = vpop.xlane.xlu0 %1245
    %v1247 = vrcp.pop 32.0
    %v1248 = vmul.f32 %v1243, %v1247
    %v1249 = vmul.f32 %v1246, %v1247
    %v1250 = vsub.f32 %v1236, %v1248
    %v1251 = vsub.f32 %v1237, %v1249
    %v1252 = vmul.f32 %v1250, %v1250
    %v1253 = vmul.f32 %v1251, %v1251
    %v1254 = vsel %vm220, %v1252, 0.0
    %1255 = vadd.xlane.f32.xlu0 %v1254
    %v1256 = vpop.xlane.xlu0 %1255
    %v1257 = vsel %vm220, %v1253, 0.0
    %1258 = vadd.xlane.f32.xlu0 %v1257
    %v1259 = vpop.xlane.xlu0 %1258
    %v1260 = vrcp.pop 31.0
    %v1261 = vmul.f32 %v1256, %v1260
    %v1262 = vmul.f32 %v1259, %v1260
    %v1263 = vrsqrt.pop %v1261
    %v1264 = vmul.f32 %v1261, %v1263
    %vm1265 = vcmp.eq.f32.partialorder %v1261, inf
    %v1266 = vsel %vm1265, %v1261, %v1264
    %vm1267 = vcmp.eq.f32.partialorder %v1261, 0.0
    %v1268 = vand.u32 %v1261, 2147483648
    %v1269 = vsel %vm1267, %v1268, %v1266
    %v1270 = vrsqrt.pop %v1262
    %v1271 = vmul.f32 %v1262, %v1270
    %vm1272 = vcmp.eq.f32.partialorder %v1262, inf
    %v1273 = vsel %vm1272, %v1262, %v1271
    %vm1274 = vcmp.eq.f32.partialorder %v1262, 0.0
    %v1275 = vand.u32 %v1262, 2147483648
    %v1276 = vsel %vm1274, %v1275, %v1273
    %v1277 = vadd.f32 %v1269, 1e-06
    %v1278 = vadd.f32 %v1276, 1e-06
    %v1279 = vrcp.pop %v1277
    %v1280 = vrcp.pop %v1278
    %v1281 = vmul.f32 %v1250, %v1279
    %v1282 = vmul.f32 %v1251, %v1280
    %v1284 = vlaneseq
    %v1285 = vshrl.u32 %v1284, 7
    %v1286 = vsub.s32 0, %v1285
    %v1287 = vrot.slane %v1238, %v1286
    %v1289 = vmul.f32 %v1287, %v1281
    %v1290 = vmul.f32 %v1287, %v1282
    %v1292 = vlaneseq
    %v1293 = vshrl.u32 %v1292, 7
    %v1294 = vsub.s32 0, %v1293
    %v1295 = vrot.slane %v1240, %v1294
    %v1297 = vadd.f32 %v1289, %v1295
    %v1298 = vadd.f32 %v1290, %v1295
    %v1299 = vpack.c.bf16 %v1298, %v1297
    %v1302 = vlaneseq
    %v1303 = vshrl.u32 %v1302, 7
    %v1304 = vsub.s32 0, %v1303
    %v1305 = vrot.slane %v179, %v1304
    %v1306 = vlaneseq
    %v1307 = vshrl.u32 %v1306, 7
    %v1308 = vsub.s32 1, %v1307
    %v1309 = vrot.slane %v179, %v1308
    %v1310 = vlaneseq
    %v1311 = vshrl.u32 %v1310, 7
    %v1312 = vsub.s32 2, %v1311
    %v1313 = vrot.slane %v179, %v1312
    %v1314 = vlaneseq
    %v1315 = vshrl.u32 %v1314, 7
    %v1316 = vsub.s32 3, %v1315
    %v1317 = vrot.slane %v179, %v1316
    %v1318 = vlaneseq
    %v1319 = vshrl.u32 %v1318, 7
    %v1320 = vsub.s32 4, %v1319
    %v1321 = vrot.slane %v179, %v1320
    %v1322 = vlaneseq
    %v1323 = vshrl.u32 %v1322, 7
    %v1324 = vsub.s32 5, %v1323
    %v1325 = vrot.slane %v179, %v1324
    %v1326 = vlaneseq
    %v1327 = vshrl.u32 %v1326, 7
    %v1328 = vsub.s32 6, %v1327
    %v1329 = vrot.slane %v179, %v1328
    %v1330 = vlaneseq
    %v1331 = vshrl.u32 %v1330, 7
    %v1332 = vsub.s32 7, %v1331
    %v1333 = vrot.slane %v179, %v1332
    %v1334 = vlaneseq
    %v1335 = vshrl.u32 %v1334, 7
    %v1336 = vsub.s32 0, %v1335
    %v1337 = vrot.slane %v180, %v1336
    %v1338 = vlaneseq
    %v1339 = vshrl.u32 %v1338, 7
    %v1340 = vsub.s32 1, %v1339
    %v1341 = vrot.slane %v180, %v1340
    %v1342 = vlaneseq
    %v1343 = vshrl.u32 %v1342, 7
    %v1344 = vsub.s32 2, %v1343
    %v1345 = vrot.slane %v180, %v1344
    %v1346 = vlaneseq
    %v1347 = vshrl.u32 %v1346, 7
    %v1348 = vsub.s32 3, %v1347
    %v1349 = vrot.slane %v180, %v1348
    %v1350 = vlaneseq
    %v1351 = vshrl.u32 %v1350, 7
    %v1352 = vsub.s32 4, %v1351
    %v1353 = vrot.slane %v180, %v1352
    %v1354 = vlaneseq
    %v1355 = vshrl.u32 %v1354, 7
    %v1356 = vsub.s32 5, %v1355
    %v1357 = vrot.slane %v180, %v1356
    %v1358 = vlaneseq
    %v1359 = vshrl.u32 %v1358, 7
    %v1360 = vsub.s32 6, %v1359
    %v1361 = vrot.slane %v180, %v1360
    %v1362 = vlaneseq
    %v1363 = vshrl.u32 %v1362, 7
    %v1364 = vsub.s32 7, %v1363
    %v1365 = vrot.slane %v180, %v1364
    %v1414 = vunpack.c.l.b16 %v147
    %v1415 = vunpack.c.h.b16 %v147
    %v1416 = vunpack.c.l.b16 %v148
    %v1417 = vunpack.c.h.b16 %v148
    %v1418 = vunpack.c.l.b16 %v149
    %v1419 = vunpack.c.h.b16 %v149
    %v1420 = vunpack.c.l.b16 %v150
    %v1421 = vunpack.c.h.b16 %v150
    %v1422 = vunpack.c.l.b16 %v151
    %v1423 = vunpack.c.h.b16 %v151
    %v1424 = vunpack.c.l.b16 %v152
    %v1425 = vunpack.c.h.b16 %v152
    %v1426 = vunpack.c.l.b16 %v153
    %v1427 = vunpack.c.h.b16 %v153
    %v1428 = vunpack.c.l.b16 %v154
    %v1429 = vunpack.c.h.b16 %v154
    %v1430 = vunpack.c.l.b16 %v155
    %v1431 = vunpack.c.h.b16 %v155
    %v1432 = vunpack.c.l.b16 %v156
    %v1433 = vunpack.c.h.b16 %v156
    %v1434 = vunpack.c.l.b16 %v157
    %v1435 = vunpack.c.h.b16 %v157
    %v1436 = vunpack.c.l.b16 %v158
    %v1437 = vunpack.c.h.b16 %v158
    %v1438 = vunpack.c.l.b16 %v159
    %v1439 = vunpack.c.h.b16 %v159
    %v1440 = vunpack.c.l.b16 %v160
    %v1441 = vunpack.c.h.b16 %v160
    %v1442 = vunpack.c.l.b16 %v161
    %v1443 = vunpack.c.h.b16 %v161
    %v1444 = vunpack.c.l.b16 %v162
    %v1445 = vunpack.c.h.b16 %v162
    %v1446 = vunpack.c.l.b16 %v163
    %v1447 = vunpack.c.h.b16 %v163
    %v1448 = vunpack.c.l.b16 %v164
    %v1449 = vunpack.c.h.b16 %v164
    %v1450 = vunpack.c.l.b16 %v165
    %v1451 = vunpack.c.h.b16 %v165
    %v1452 = vunpack.c.l.b16 %v166
    %v1453 = vunpack.c.h.b16 %v166
    %v1454 = vunpack.c.l.b16 %v167
    %v1455 = vunpack.c.h.b16 %v167
    %v1456 = vunpack.c.l.b16 %v168
    %v1457 = vunpack.c.h.b16 %v168
    %v1458 = vunpack.c.l.b16 %v169
    %v1459 = vunpack.c.h.b16 %v169
    %v1460 = vunpack.c.l.b16 %v170
    %v1461 = vunpack.c.h.b16 %v170
    %v1462 = vunpack.c.l.b16 %v171
    %v1463 = vunpack.c.h.b16 %v171
    %v1464 = vunpack.c.l.b16 %v172
    %v1465 = vunpack.c.h.b16 %v172
    %v1466 = vunpack.c.l.b16 %v173
    %v1467 = vunpack.c.h.b16 %v173
    %v1468 = vunpack.c.l.b16 %v174
    %v1469 = vunpack.c.h.b16 %v174
    %v1470 = vunpack.c.l.b16 %v175
    %v1471 = vunpack.c.h.b16 %v175
    %v1472 = vunpack.c.l.b16 %v176
    %v1473 = vunpack.c.h.b16 %v176
    %v1474 = vunpack.c.l.b16 %v177
    %v1475 = vunpack.c.h.b16 %v177
    %v1476 = vunpack.c.l.b16 %v178
    %v1477 = vunpack.c.h.b16 %v178
    %v1478 = vpack.c.b16 %v1430, %v1414
    %v1479 = vpack.c.b16 %v1431, %v1415
    %v1480 = vpack.c.b16 %v1432, %v1416
    %v1481 = vpack.c.b16 %v1433, %v1417
    %v1482 = vpack.c.b16 %v1434, %v1418
    %v1483 = vpack.c.b16 %v1435, %v1419
    %v1484 = vpack.c.b16 %v1436, %v1420
    %v1485 = vpack.c.b16 %v1437, %v1421
    %v1486 = vpack.c.b16 %v1438, %v1422
    %v1487 = vpack.c.b16 %v1439, %v1423
    %v1488 = vpack.c.b16 %v1440, %v1424
    %v1489 = vpack.c.b16 %v1441, %v1425
    %v1490 = vpack.c.b16 %v1442, %v1426
    %v1491 = vpack.c.b16 %v1443, %v1427
    %v1492 = vpack.c.b16 %v1444, %v1428
    %v1493 = vpack.c.b16 %v1445, %v1429
    %v1494 = vpack.c.b16 %v1462, %v1446
    %v1495 = vpack.c.b16 %v1463, %v1447
    %v1496 = vpack.c.b16 %v1464, %v1448
    %v1497 = vpack.c.b16 %v1465, %v1449
    %v1498 = vpack.c.b16 %v1466, %v1450
    %v1499 = vpack.c.b16 %v1467, %v1451
    %v1500 = vpack.c.b16 %v1468, %v1452
    %v1501 = vpack.c.b16 %v1469, %v1453
    %v1502 = vpack.c.b16 %v1470, %v1454
    %v1503 = vpack.c.b16 %v1471, %v1455
    %v1504 = vpack.c.b16 %v1472, %v1456
    %v1505 = vpack.c.b16 %v1473, %v1457
    %v1506 = vpack.c.b16 %v1474, %v1458
    %v1507 = vpack.c.b16 %v1475, %v1459
    %v1508 = vpack.c.b16 %v1476, %v1460
    %v1509 = vpack.c.b16 %v1477, %v1461
    %v1543 = vsel %vm220, %v1299, 0
    %1545 = vmatprep.subr.bf16.mxu0 0
    %1546 = vmatpush1.bf16.msra.mxu0 0
    %1547 = vmatprep.subr.bf16.mxu0 0
    %1548 = vmatpush1.bf16.msra.mxu0 0
    %1549 = vmatprep.subr.bf16.mxu0 0
    %1550 = vmatpush1.bf16.msra.mxu0 0
    %1551 = vmatprep.subr.bf16.mxu0 0
    %1552 = vmatpush1.bf16.msra.mxu0 0
    %1553 = vmatprep.subr.bf16.mxu0 0
    %1554 = vmatpush1.bf16.msra.mxu0 0
    %1555 = vmatprep.subr.bf16.mxu0 0
    %1556 = vmatpush1.bf16.msra.mxu0 0
    %1557 = vmatprep.subr.bf16.mxu0 %v1495
    %1558 = vmatpush1.bf16.msra.mxu0 %v1494
    %1559 = vmatprep.subr.bf16.mxu0 %v1479
    %1560 = vmatpush1.bf16.msra.mxu0 %v1478
    %1561 = vmatprep.subr.bf16.mxu0 0
    %1562 = vmatpush2.bf16.msra.mxu0 0
    %1563 = vmatprep.subr.bf16.mxu0 0
    %1564 = vmatpush2.bf16.msra.mxu0 0
    %1565 = vmatprep.subr.bf16.mxu0 0
    %1566 = vmatpush2.bf16.msra.mxu0 0
    %1567 = vmatprep.subr.bf16.mxu0 0
    %1568 = vmatpush2.bf16.msra.mxu0 0
    %1569 = vmatprep.subr.bf16.mxu0 0
    %1570 = vmatpush2.bf16.msra.mxu0 0
    %1571 = vmatprep.subr.bf16.mxu0 0
    %1572 = vmatpush2.bf16.msra.mxu0 0
    %1573 = vmatprep.subr.bf16.mxu0 0
    %1574 = vmatpush2.bf16.msra.mxu0 0
    %1575 = vmatprep.subr.bf16.mxu0 0
    %1576 = vmatpush2.bf16.msra.mxu0 0
    %1577 = vmatprep.mubr.bf16.mxu0 0
    %1578 = vmatmul.mubr.bf16.gmra.mxu0 %v1543
    %v1579 = vpop.f32.mrf.mxu0
    %v1580 = vadd.f32 %v1305, %v1579
    %v1581 = vpop.f32.mrf.mxu0
    %v1582 = vadd.f32 %v1309, %v1581
    %v1583 = vpop.f32.mrf.mxu0
    %v1584 = vadd.f32 %v1305, %v1583
    %v1585 = vpop.f32.mrf.mxu0
    %v1586 = vadd.f32 %v1309, %v1585
    %1587 = vdwg.mxu0
    %1588 = vmatprep.subr.bf16.mxu0 0
    %1589 = vmatpush1.bf16.msra.mxu0 0
    %1590 = vmatprep.subr.bf16.mxu0 0
    %1591 = vmatpush1.bf16.msra.mxu0 0
    %1592 = vmatprep.subr.bf16.mxu0 0
    %1593 = vmatpush1.bf16.msra.mxu0 0
    %1594 = vmatprep.subr.bf16.mxu0 0
    %1595 = vmatpush1.bf16.msra.mxu0 0
    %1596 = vmatprep.subr.bf16.mxu0 0
    %1597 = vmatpush1.bf16.msra.mxu0 0
    %1598 = vmatprep.subr.bf16.mxu0 0
    %1599 = vmatpush1.bf16.msra.mxu0 0
    %1600 = vmatprep.subr.bf16.mxu0 %v1497
    %1601 = vmatpush1.bf16.msra.mxu0 %v1496
    %1602 = vmatprep.subr.bf16.mxu0 %v1481
    %1603 = vmatpush1.bf16.msra.mxu0 %v1480
    %1604 = vmatprep.subr.bf16.mxu0 0
    %1605 = vmatpush2.bf16.msra.mxu0 0
    %1606 = vmatprep.subr.bf16.mxu0 0
    %1607 = vmatpush2.bf16.msra.mxu0 0
    %1608 = vmatprep.subr.bf16.mxu0 0
    %1609 = vmatpush2.bf16.msra.mxu0 0
    %1610 = vmatprep.subr.bf16.mxu0 0
    %1611 = vmatpush2.bf16.msra.mxu0 0
    %1612 = vmatprep.subr.bf16.mxu0 0
    %1613 = vmatpush2.bf16.msra.mxu0 0
    %1614 = vmatprep.subr.bf16.mxu0 0
    %1615 = vmatpush2.bf16.msra.mxu0 0
    %1616 = vmatprep.subr.bf16.mxu0 0
    %1617 = vmatpush2.bf16.msra.mxu0 0
    %1618 = vmatprep.subr.bf16.mxu0 0
    %1619 = vmatpush2.bf16.msra.mxu0 0
    %1620 = vmatprep.mubr.bf16.mxu0 0
    %1621 = vmatmul.mubr.bf16.gmra.mxu0 %v1543
    %v1622 = vpop.f32.mrf.mxu0
    %v1623 = vadd.f32 %v1313, %v1622
    %v1624 = vpop.f32.mrf.mxu0
    %v1625 = vadd.f32 %v1317, %v1624
    %v1626 = vpop.f32.mrf.mxu0
    %v1627 = vadd.f32 %v1313, %v1626
    %v1628 = vpop.f32.mrf.mxu0
    %v1629 = vadd.f32 %v1317, %v1628
    %1630 = vdwg.mxu0
    %1631 = vmatprep.subr.bf16.mxu0 0
    %1632 = vmatpush1.bf16.msra.mxu0 0
    %1633 = vmatprep.subr.bf16.mxu0 0
    %1634 = vmatpush1.bf16.msra.mxu0 0
    %1635 = vmatprep.subr.bf16.mxu0 0
    %1636 = vmatpush1.bf16.msra.mxu0 0
    %1637 = vmatprep.subr.bf16.mxu0 0
    %1638 = vmatpush1.bf16.msra.mxu0 0
    %1639 = vmatprep.subr.bf16.mxu0 0
    %1640 = vmatpush1.bf16.msra.mxu0 0
    %1641 = vmatprep.subr.bf16.mxu0 0
    %1642 = vmatpush1.bf16.msra.mxu0 0
    %1643 = vmatprep.subr.bf16.mxu0 %v1499
    %1644 = vmatpush1.bf16.msra.mxu0 %v1498
    %1645 = vmatprep.subr.bf16.mxu0 %v1483
    %1646 = vmatpush1.bf16.msra.mxu0 %v1482
    %1647 = vmatprep.subr.bf16.mxu0 0
    %1648 = vmatpush2.bf16.msra.mxu0 0
    %1649 = vmatprep.subr.bf16.mxu0 0
    %1650 = vmatpush2.bf16.msra.mxu0 0
    %1651 = vmatprep.subr.bf16.mxu0 0
    %1652 = vmatpush2.bf16.msra.mxu0 0
    %1653 = vmatprep.subr.bf16.mxu0 0
    %1654 = vmatpush2.bf16.msra.mxu0 0
    %1655 = vmatprep.subr.bf16.mxu0 0
    %1656 = vmatpush2.bf16.msra.mxu0 0
    %1657 = vmatprep.subr.bf16.mxu0 0
    %1658 = vmatpush2.bf16.msra.mxu0 0
    %1659 = vmatprep.subr.bf16.mxu0 0
    %1660 = vmatpush2.bf16.msra.mxu0 0
    %1661 = vmatprep.subr.bf16.mxu0 0
    %1662 = vmatpush2.bf16.msra.mxu0 0
    %1663 = vmatprep.mubr.bf16.mxu0 0
    %1664 = vmatmul.mubr.bf16.gmra.mxu0 %v1543
    %v1665 = vpop.f32.mrf.mxu0
    %v1666 = vadd.f32 %v1321, %v1665
    %v1667 = vpop.f32.mrf.mxu0
    %v1668 = vadd.f32 %v1325, %v1667
    %v1669 = vpop.f32.mrf.mxu0
    %v1670 = vadd.f32 %v1321, %v1669
    %v1671 = vpop.f32.mrf.mxu0
    %v1672 = vadd.f32 %v1325, %v1671
    %1673 = vdwg.mxu0
    %1674 = vmatprep.subr.bf16.mxu0 0
    %1675 = vmatpush1.bf16.msra.mxu0 0
    %1676 = vmatprep.subr.bf16.mxu0 0
    %1677 = vmatpush1.bf16.msra.mxu0 0
    %1678 = vmatprep.subr.bf16.mxu0 0
    %1679 = vmatpush1.bf16.msra.mxu0 0
    %1680 = vmatprep.subr.bf16.mxu0 0
    %1681 = vmatpush1.bf16.msra.mxu0 0
    %1682 = vmatprep.subr.bf16.mxu0 0
    %1683 = vmatpush1.bf16.msra.mxu0 0
    %1684 = vmatprep.subr.bf16.mxu0 0
    %1685 = vmatpush1.bf16.msra.mxu0 0
    %1686 = vmatprep.subr.bf16.mxu0 %v1501
    %1687 = vmatpush1.bf16.msra.mxu0 %v1500
    %1688 = vmatprep.subr.bf16.mxu0 %v1485
    %1689 = vmatpush1.bf16.msra.mxu0 %v1484
    %1690 = vmatprep.subr.bf16.mxu0 0
    %1691 = vmatpush2.bf16.msra.mxu0 0
    %1692 = vmatprep.subr.bf16.mxu0 0
    %1693 = vmatpush2.bf16.msra.mxu0 0
    %1694 = vmatprep.subr.bf16.mxu0 0
    %1695 = vmatpush2.bf16.msra.mxu0 0
    %1696 = vmatprep.subr.bf16.mxu0 0
    %1697 = vmatpush2.bf16.msra.mxu0 0
    %1698 = vmatprep.subr.bf16.mxu0 0
    %1699 = vmatpush2.bf16.msra.mxu0 0
    %1700 = vmatprep.subr.bf16.mxu0 0
    %1701 = vmatpush2.bf16.msra.mxu0 0
    %1702 = vmatprep.subr.bf16.mxu0 0
    %1703 = vmatpush2.bf16.msra.mxu0 0
    %1704 = vmatprep.subr.bf16.mxu0 0
    %1705 = vmatpush2.bf16.msra.mxu0 0
    %1706 = vmatprep.mubr.bf16.mxu0 0
    %1707 = vmatmul.mubr.bf16.gmra.mxu0 %v1543
    %v1708 = vpop.f32.mrf.mxu0
    %v1709 = vadd.f32 %v1329, %v1708
    %v1710 = vpop.f32.mrf.mxu0
    %v1711 = vadd.f32 %v1333, %v1710
    %v1712 = vpop.f32.mrf.mxu0
    %v1713 = vadd.f32 %v1329, %v1712
    %v1714 = vpop.f32.mrf.mxu0
    %v1715 = vadd.f32 %v1333, %v1714
    %1716 = vdwg.mxu0
    %1717 = vmatprep.subr.bf16.mxu0 0
    %1718 = vmatpush1.bf16.msra.mxu0 0
    %1719 = vmatprep.subr.bf16.mxu0 0
    %1720 = vmatpush1.bf16.msra.mxu0 0
    %1721 = vmatprep.subr.bf16.mxu0 0
    %1722 = vmatpush1.bf16.msra.mxu0 0
    %1723 = vmatprep.subr.bf16.mxu0 0
    %1724 = vmatpush1.bf16.msra.mxu0 0
    %1725 = vmatprep.subr.bf16.mxu0 0
    %1726 = vmatpush1.bf16.msra.mxu0 0
    %1727 = vmatprep.subr.bf16.mxu0 0
    %1728 = vmatpush1.bf16.msra.mxu0 0
    %1729 = vmatprep.subr.bf16.mxu0 %v1503
    %1730 = vmatpush1.bf16.msra.mxu0 %v1502
    %1731 = vmatprep.subr.bf16.mxu0 %v1487
    %1732 = vmatpush1.bf16.msra.mxu0 %v1486
    %1733 = vmatprep.subr.bf16.mxu0 0
    %1734 = vmatpush2.bf16.msra.mxu0 0
    %1735 = vmatprep.subr.bf16.mxu0 0
    %1736 = vmatpush2.bf16.msra.mxu0 0
    %1737 = vmatprep.subr.bf16.mxu0 0
    %1738 = vmatpush2.bf16.msra.mxu0 0
    %1739 = vmatprep.subr.bf16.mxu0 0
    %1740 = vmatpush2.bf16.msra.mxu0 0
    %1741 = vmatprep.subr.bf16.mxu0 0
    %1742 = vmatpush2.bf16.msra.mxu0 0
    %1743 = vmatprep.subr.bf16.mxu0 0
    %1744 = vmatpush2.bf16.msra.mxu0 0
    %1745 = vmatprep.subr.bf16.mxu0 0
    %1746 = vmatpush2.bf16.msra.mxu0 0
    %1747 = vmatprep.subr.bf16.mxu0 0
    %1748 = vmatpush2.bf16.msra.mxu0 0
    %1749 = vmatprep.mubr.bf16.mxu0 0
    %1750 = vmatmul.mubr.bf16.gmra.mxu0 %v1543
    %v1751 = vpop.f32.mrf.mxu0
    %v1752 = vadd.f32 %v1337, %v1751
    %v1753 = vpop.f32.mrf.mxu0
    %v1754 = vadd.f32 %v1341, %v1753
    %v1755 = vpop.f32.mrf.mxu0
    %v1756 = vadd.f32 %v1337, %v1755
    %v1757 = vpop.f32.mrf.mxu0
    %v1758 = vadd.f32 %v1341, %v1757
    %1759 = vdwg.mxu0
    %1760 = vmatprep.subr.bf16.mxu0 0
    %1761 = vmatpush1.bf16.msra.mxu0 0
    %1762 = vmatprep.subr.bf16.mxu0 0
    %1763 = vmatpush1.bf16.msra.mxu0 0
    %1764 = vmatprep.subr.bf16.mxu0 0
    %1765 = vmatpush1.bf16.msra.mxu0 0
    %1766 = vmatprep.subr.bf16.mxu0 0
    %1767 = vmatpush1.bf16.msra.mxu0 0
    %1768 = vmatprep.subr.bf16.mxu0 0
    %1769 = vmatpush1.bf16.msra.mxu0 0
    %1770 = vmatprep.subr.bf16.mxu0 0
    %1771 = vmatpush1.bf16.msra.mxu0 0
    %1772 = vmatprep.subr.bf16.mxu0 %v1505
    %1773 = vmatpush1.bf16.msra.mxu0 %v1504
    %1774 = vmatprep.subr.bf16.mxu0 %v1489
    %1775 = vmatpush1.bf16.msra.mxu0 %v1488
    %1776 = vmatprep.subr.bf16.mxu0 0
    %1777 = vmatpush2.bf16.msra.mxu0 0
    %1778 = vmatprep.subr.bf16.mxu0 0
    %1779 = vmatpush2.bf16.msra.mxu0 0
    %1780 = vmatprep.subr.bf16.mxu0 0
    %1781 = vmatpush2.bf16.msra.mxu0 0
    %1782 = vmatprep.subr.bf16.mxu0 0
    %1783 = vmatpush2.bf16.msra.mxu0 0
    %1784 = vmatprep.subr.bf16.mxu0 0
    %1785 = vmatpush2.bf16.msra.mxu0 0
    %1786 = vmatprep.subr.bf16.mxu0 0
    %1787 = vmatpush2.bf16.msra.mxu0 0
    %1788 = vmatprep.subr.bf16.mxu0 0
    %1789 = vmatpush2.bf16.msra.mxu0 0
    %1790 = vmatprep.subr.bf16.mxu0 0
    %1791 = vmatpush2.bf16.msra.mxu0 0
    %1792 = vmatprep.mubr.bf16.mxu0 0
    %1793 = vmatmul.mubr.bf16.gmra.mxu0 %v1543
    %v1794 = vpop.f32.mrf.mxu0
    %v1795 = vadd.f32 %v1345, %v1794
    %v1796 = vpop.f32.mrf.mxu0
    %v1797 = vadd.f32 %v1349, %v1796
    %v1798 = vpop.f32.mrf.mxu0
    %v1799 = vadd.f32 %v1345, %v1798
    %v1800 = vpop.f32.mrf.mxu0
    %v1801 = vadd.f32 %v1349, %v1800
    %1802 = vdwg.mxu0
    %1803 = vmatprep.subr.bf16.mxu0 0
    %1804 = vmatpush1.bf16.msra.mxu0 0
    %1805 = vmatprep.subr.bf16.mxu0 0
    %1806 = vmatpush1.bf16.msra.mxu0 0
    %1807 = vmatprep.subr.bf16.mxu0 0
    %1808 = vmatpush1.bf16.msra.mxu0 0
    %1809 = vmatprep.subr.bf16.mxu0 0
    %1810 = vmatpush1.bf16.msra.mxu0 0
    %1811 = vmatprep.subr.bf16.mxu0 0
    %1812 = vmatpush1.bf16.msra.mxu0 0
    %1813 = vmatprep.subr.bf16.mxu0 0
    %1814 = vmatpush1.bf16.msra.mxu0 0
    %1815 = vmatprep.subr.bf16.mxu0 %v1507
    %1816 = vmatpush1.bf16.msra.mxu0 %v1506
    %1817 = vmatprep.subr.bf16.mxu0 %v1491
    %1818 = vmatpush1.bf16.msra.mxu0 %v1490
    %1819 = vmatprep.subr.bf16.mxu0 0
    %1820 = vmatpush2.bf16.msra.mxu0 0
    %1821 = vmatprep.subr.bf16.mxu0 0
    %1822 = vmatpush2.bf16.msra.mxu0 0
    %1823 = vmatprep.subr.bf16.mxu0 0
    %1824 = vmatpush2.bf16.msra.mxu0 0
    %1825 = vmatprep.subr.bf16.mxu0 0
    %1826 = vmatpush2.bf16.msra.mxu0 0
    %1827 = vmatprep.subr.bf16.mxu0 0
    %1828 = vmatpush2.bf16.msra.mxu0 0
    %1829 = vmatprep.subr.bf16.mxu0 0
    %1830 = vmatpush2.bf16.msra.mxu0 0
    %1831 = vmatprep.subr.bf16.mxu0 0
    %1832 = vmatpush2.bf16.msra.mxu0 0
    %1833 = vmatprep.subr.bf16.mxu0 0
    %1834 = vmatpush2.bf16.msra.mxu0 0
    %1835 = vmatprep.mubr.bf16.mxu0 0
    %1836 = vmatmul.mubr.bf16.gmra.mxu0 %v1543
    %v1837 = vpop.f32.mrf.mxu0
    %v1838 = vadd.f32 %v1353, %v1837
    %v1839 = vpop.f32.mrf.mxu0
    %v1840 = vadd.f32 %v1357, %v1839
    %v1841 = vpop.f32.mrf.mxu0
    %v1842 = vadd.f32 %v1353, %v1841
    %v1843 = vpop.f32.mrf.mxu0
    %v1844 = vadd.f32 %v1357, %v1843
    %1845 = vdwg.mxu0
    %1846 = vmatprep.subr.bf16.mxu0 0
    %1847 = vmatpush1.bf16.msra.mxu0 0
    %1848 = vmatprep.subr.bf16.mxu0 0
    %1849 = vmatpush1.bf16.msra.mxu0 0
    %1850 = vmatprep.subr.bf16.mxu0 0
    %1851 = vmatpush1.bf16.msra.mxu0 0
    %1852 = vmatprep.subr.bf16.mxu0 0
    %1853 = vmatpush1.bf16.msra.mxu0 0
    %1854 = vmatprep.subr.bf16.mxu0 0
    %1855 = vmatpush1.bf16.msra.mxu0 0
    %1856 = vmatprep.subr.bf16.mxu0 0
    %1857 = vmatpush1.bf16.msra.mxu0 0
    %1858 = vmatprep.subr.bf16.mxu0 %v1509
    %1859 = vmatpush1.bf16.msra.mxu0 %v1508
    %1860 = vmatprep.subr.bf16.mxu0 %v1493
    %1861 = vmatpush1.bf16.msra.mxu0 %v1492
    %1862 = vmatprep.subr.bf16.mxu0 0
    %1863 = vmatpush2.bf16.msra.mxu0 0
    %1864 = vmatprep.subr.bf16.mxu0 0
    %1865 = vmatpush2.bf16.msra.mxu0 0
    %1866 = vmatprep.subr.bf16.mxu0 0
    %1867 = vmatpush2.bf16.msra.mxu0 0
    %1868 = vmatprep.subr.bf16.mxu0 0
    %1869 = vmatpush2.bf16.msra.mxu0 0
    %1870 = vmatprep.subr.bf16.mxu0 0
    %1871 = vmatpush2.bf16.msra.mxu0 0
    %1872 = vmatprep.subr.bf16.mxu0 0
    %1873 = vmatpush2.bf16.msra.mxu0 0
    %1874 = vmatprep.subr.bf16.mxu0 0
    %1875 = vmatpush2.bf16.msra.mxu0 0
    %1876 = vmatprep.subr.bf16.mxu0 0
    %1877 = vmatpush2.bf16.msra.mxu0 0
    %1878 = vmatprep.mubr.bf16.mxu0 0
    %1879 = vmatmul.mubr.bf16.gmra.mxu0 %v1543
    %v1880 = vpop.f32.mrf.mxu0
    %v1881 = vadd.f32 %v1361, %v1880
    %v1882 = vpop.f32.mrf.mxu0
    %v1883 = vadd.f32 %v1365, %v1882
    %v1884 = vpop.f32.mrf.mxu0
    %v1885 = vadd.f32 %v1361, %v1884
    %v1886 = vpop.f32.mrf.mxu0
    %v1887 = vadd.f32 %v1365, %v1886
    %1888 = vdwg.mxu0
    %v1889 = vmax.f32 %v1580, 0.0
    %v1890 = vmax.f32 %v1582, 0.0
    %v1891 = vmax.f32 %v1623, 0.0
    %v1892 = vmax.f32 %v1625, 0.0
    %v1893 = vmax.f32 %v1666, 0.0
    %v1894 = vmax.f32 %v1668, 0.0
    %v1895 = vmax.f32 %v1709, 0.0
    %v1896 = vmax.f32 %v1711, 0.0
    %v1897 = vmax.f32 %v1752, 0.0
    %v1898 = vmax.f32 %v1754, 0.0
    %v1899 = vmax.f32 %v1795, 0.0
    %v1900 = vmax.f32 %v1797, 0.0
    %v1901 = vmax.f32 %v1838, 0.0
    %v1902 = vmax.f32 %v1840, 0.0
    %v1903 = vmax.f32 %v1881, 0.0
    %v1904 = vmax.f32 %v1883, 0.0
    %v1905 = vmax.f32 %v1584, 0.0
    %v1906 = vmax.f32 %v1586, 0.0
    %v1907 = vmax.f32 %v1627, 0.0
    %v1908 = vmax.f32 %v1629, 0.0
    %v1909 = vmax.f32 %v1670, 0.0
    %v1910 = vmax.f32 %v1672, 0.0
    %v1911 = vmax.f32 %v1713, 0.0
    %v1912 = vmax.f32 %v1715, 0.0
    %v1913 = vmax.f32 %v1756, 0.0
    %v1914 = vmax.f32 %v1758, 0.0
    %v1915 = vmax.f32 %v1799, 0.0
    %v1916 = vmax.f32 %v1801, 0.0
    %v1917 = vmax.f32 %v1842, 0.0
    %v1918 = vmax.f32 %v1844, 0.0
    %v1919 = vmax.f32 %v1885, 0.0
    %v1920 = vmax.f32 %v1887, 0.0
    %v1921 = vpack.c.bf16 %v1905, %v1889
    %v1922 = vpack.c.bf16 %v1906, %v1890
    %v1923 = vpack.c.bf16 %v1907, %v1891
    %v1924 = vpack.c.bf16 %v1908, %v1892
    %v1925 = vpack.c.bf16 %v1909, %v1893
    %v1926 = vpack.c.bf16 %v1910, %v1894
    %v1927 = vpack.c.bf16 %v1911, %v1895
    %v1928 = vpack.c.bf16 %v1912, %v1896
    %v1929 = vpack.c.bf16 %v1913, %v1897
    %v1930 = vpack.c.bf16 %v1914, %v1898
    %v1931 = vpack.c.bf16 %v1915, %v1899
    %v1932 = vpack.c.bf16 %v1916, %v1900
    %v1933 = vpack.c.bf16 %v1917, %v1901
    %v1934 = vpack.c.bf16 %v1918, %v1902
    %v1935 = vpack.c.bf16 %v1919, %v1903
    %v1936 = vpack.c.bf16 %v1920, %v1904
    %v1938 = vlaneseq
    %v1939 = vshrl.u32 %v1938, 7
    %v1940 = vsub.s32 0, %v1939
    %v1941 = vrot.slane %v213, %v1940
    %v1975 = vunpack.c.l.b16 %v181
    %v1976 = vunpack.c.h.b16 %v181
    %v1977 = vunpack.c.l.b16 %v182
    %v1978 = vunpack.c.h.b16 %v182
    %v1979 = vunpack.c.l.b16 %v183
    %v1980 = vunpack.c.h.b16 %v183
    %v1981 = vunpack.c.l.b16 %v184
    %v1982 = vunpack.c.h.b16 %v184
    %v1983 = vunpack.c.l.b16 %v185
    %v1984 = vunpack.c.h.b16 %v185
    %v1985 = vunpack.c.l.b16 %v186
    %v1986 = vunpack.c.h.b16 %v186
    %v1987 = vunpack.c.l.b16 %v187
    %v1988 = vunpack.c.h.b16 %v187
    %v1989 = vunpack.c.l.b16 %v188
    %v1990 = vunpack.c.h.b16 %v188
    %v1991 = vunpack.c.l.b16 %v189
    %v1992 = vunpack.c.h.b16 %v189
    %v1993 = vunpack.c.l.b16 %v190
    %v1994 = vunpack.c.h.b16 %v190
    %v1995 = vunpack.c.l.b16 %v191
    %v1996 = vunpack.c.h.b16 %v191
    %v1997 = vunpack.c.l.b16 %v192
    %v1998 = vunpack.c.h.b16 %v192
    %v1999 = vunpack.c.l.b16 %v193
    %v2000 = vunpack.c.h.b16 %v193
    %v2001 = vunpack.c.l.b16 %v194
    %v2002 = vunpack.c.h.b16 %v194
    %v2003 = vunpack.c.l.b16 %v195
    %v2004 = vunpack.c.h.b16 %v195
    %v2005 = vunpack.c.l.b16 %v196
    %v2006 = vunpack.c.h.b16 %v196
    %v2007 = vunpack.c.l.b16 %v197
    %v2008 = vunpack.c.h.b16 %v197
    %v2009 = vunpack.c.l.b16 %v198
    %v2010 = vunpack.c.h.b16 %v198
    %v2011 = vunpack.c.l.b16 %v199
    %v2012 = vunpack.c.h.b16 %v199
    %v2013 = vunpack.c.l.b16 %v200
    %v2014 = vunpack.c.h.b16 %v200
    %v2015 = vunpack.c.l.b16 %v201
    %v2016 = vunpack.c.h.b16 %v201
    %v2017 = vunpack.c.l.b16 %v202
    %v2018 = vunpack.c.h.b16 %v202
    %v2019 = vunpack.c.l.b16 %v203
    %v2020 = vunpack.c.h.b16 %v203
    %v2021 = vunpack.c.l.b16 %v204
    %v2022 = vunpack.c.h.b16 %v204
    %v2023 = vunpack.c.l.b16 %v205
    %v2024 = vunpack.c.h.b16 %v205
    %v2025 = vunpack.c.l.b16 %v206
    %v2026 = vunpack.c.h.b16 %v206
    %v2027 = vunpack.c.l.b16 %v207
    %v2028 = vunpack.c.h.b16 %v207
    %v2029 = vunpack.c.l.b16 %v208
    %v2030 = vunpack.c.h.b16 %v208
    %v2031 = vunpack.c.l.b16 %v209
    %v2032 = vunpack.c.h.b16 %v209
    %v2033 = vunpack.c.l.b16 %v210
    %v2034 = vunpack.c.h.b16 %v210
    %v2035 = vunpack.c.l.b16 %v211
    %v2036 = vunpack.c.h.b16 %v211
    %v2037 = vunpack.c.l.b16 %v212
    %v2038 = vunpack.c.h.b16 %v212
    %v2039 = vpack.c.b16 %v1991, %v1975
    %v2040 = vpack.c.b16 %v1992, %v1976
    %v2041 = vpack.c.b16 %v1993, %v1977
    %v2042 = vpack.c.b16 %v1994, %v1978
    %v2043 = vpack.c.b16 %v1995, %v1979
    %v2044 = vpack.c.b16 %v1996, %v1980
    %v2045 = vpack.c.b16 %v1997, %v1981
    %v2046 = vpack.c.b16 %v1998, %v1982
    %v2047 = vpack.c.b16 %v1999, %v1983
    %v2048 = vpack.c.b16 %v2000, %v1984
    %v2049 = vpack.c.b16 %v2001, %v1985
    %v2050 = vpack.c.b16 %v2002, %v1986
    %v2051 = vpack.c.b16 %v2003, %v1987
    %v2052 = vpack.c.b16 %v2004, %v1988
    %v2053 = vpack.c.b16 %v2005, %v1989
    %v2054 = vpack.c.b16 %v2006, %v1990
    %v2055 = vpack.c.b16 %v2023, %v2007
    %v2056 = vpack.c.b16 %v2024, %v2008
    %v2057 = vpack.c.b16 %v2025, %v2009
    %v2058 = vpack.c.b16 %v2026, %v2010
    %v2059 = vpack.c.b16 %v2027, %v2011
    %v2060 = vpack.c.b16 %v2028, %v2012
    %v2061 = vpack.c.b16 %v2029, %v2013
    %v2062 = vpack.c.b16 %v2030, %v2014
    %v2063 = vpack.c.b16 %v2031, %v2015
    %v2064 = vpack.c.b16 %v2032, %v2016
    %v2065 = vpack.c.b16 %v2033, %v2017
    %v2066 = vpack.c.b16 %v2034, %v2018
    %v2067 = vpack.c.b16 %v2035, %v2019
    %v2068 = vpack.c.b16 %v2036, %v2020
    %v2069 = vpack.c.b16 %v2037, %v2021
    %v2070 = vpack.c.b16 %v2038, %v2022
    %2103 = vmatprep.subr.bf16.mxu0 0
    %2104 = vmatpush1.bf16.xpose.msra.mxu0 0
    %2105 = vmatprep.subr.bf16.mxu0 0
    %2106 = vmatpush1.bf16.xpose.msra.mxu0 0
    %2107 = vmatprep.subr.bf16.mxu0 0
    %2108 = vmatpush1.bf16.xpose.msra.mxu0 0
    %2109 = vmatprep.subr.bf16.mxu0 0
    %2110 = vmatpush1.bf16.xpose.msra.mxu0 0
    %2111 = vmatprep.subr.bf16.mxu0 0
    %2112 = vmatpush1.bf16.xpose.msra.mxu0 0
    %2113 = vmatprep.subr.bf16.mxu0 0
    %2114 = vmatpush1.bf16.xpose.msra.mxu0 0
    %2115 = vmatprep.subr.bf16.mxu0 %v2056
    %2116 = vmatpush1.bf16.xpose.msra.mxu0 %v2055
    %2117 = vmatprep.subr.bf16.mxu0 %v2040
    %2118 = vmatpush1.bf16.xpose.msra.mxu0 %v2039
    %2119 = vmatprep.subr.bf16.mxu0 0
    %2120 = vmatpush2.bf16.xpose.msra.mxu0 0
    %2121 = vmatprep.subr.bf16.mxu0 0
    %2122 = vmatpush2.bf16.xpose.msra.mxu0 0
    %2123 = vmatprep.subr.bf16.mxu0 0
    %2124 = vmatpush2.bf16.xpose.msra.mxu0 0
    %2125 = vmatprep.subr.bf16.mxu0 0
    %2126 = vmatpush2.bf16.xpose.msra.mxu0 0
    %2127 = vmatprep.subr.bf16.mxu0 0
    %2128 = vmatpush2.bf16.xpose.msra.mxu0 0
    %2129 = vmatprep.subr.bf16.mxu0 0
    %2130 = vmatpush2.bf16.xpose.msra.mxu0 0
    %2131 = vmatprep.subr.bf16.mxu0 0
    %2132 = vmatpush2.bf16.xpose.msra.mxu0 0
    %2133 = vmatprep.subr.bf16.mxu0 0
    %2134 = vmatpush2.bf16.xpose.msra.mxu0 0
    %2135 = vmatprep.mubr.bf16.mxu0 %v1922
    %2136 = vmatmul.mubr.bf16.gmra.mxu0 %v1921
    %v2137 = vpop.f32.mrf.mxu0
    %v2138 = vadd.f32 %v1941, %v2137
    %v2139 = vpop.f32.mrf.mxu0
    %v2140 = vpop.f32.mrf.mxu0
    %v2141 = vadd.f32 %v1941, %v2140
    %v2142 = vpop.f32.mrf.mxu0
    %2143 = vdwg.mxu0
    %2144 = vmatprep.subr.bf16.mxu0 0
    %2145 = vmatpush1.bf16.xpose.msra.mxu0 0
    %2146 = vmatprep.subr.bf16.mxu0 0
    %2147 = vmatpush1.bf16.xpose.msra.mxu0 0
    %2148 = vmatprep.subr.bf16.mxu0 0
    %2149 = vmatpush1.bf16.xpose.msra.mxu0 0
    %2150 = vmatprep.subr.bf16.mxu0 0
    %2151 = vmatpush1.bf16.xpose.msra.mxu0 0
    %2152 = vmatprep.subr.bf16.mxu0 0
    %2153 = vmatpush1.bf16.xpose.msra.mxu0 0
    %2154 = vmatprep.subr.bf16.mxu0 0
    %2155 = vmatpush1.bf16.xpose.msra.mxu0 0
    %2156 = vmatprep.subr.bf16.mxu0 %v2058
    %2157 = vmatpush1.bf16.xpose.msra.mxu0 %v2057
    %2158 = vmatprep.subr.bf16.mxu0 %v2042
    %2159 = vmatpush1.bf16.xpose.msra.mxu0 %v2041
    %2160 = vmatprep.subr.bf16.mxu0 0
    %2161 = vmatpush2.bf16.xpose.msra.mxu0 0
    %2162 = vmatprep.subr.bf16.mxu0 0
    %2163 = vmatpush2.bf16.xpose.msra.mxu0 0
    %2164 = vmatprep.subr.bf16.mxu0 0
    %2165 = vmatpush2.bf16.xpose.msra.mxu0 0
    %2166 = vmatprep.subr.bf16.mxu0 0
    %2167 = vmatpush2.bf16.xpose.msra.mxu0 0
    %2168 = vmatprep.subr.bf16.mxu0 0
    %2169 = vmatpush2.bf16.xpose.msra.mxu0 0
    %2170 = vmatprep.subr.bf16.mxu0 0
    %2171 = vmatpush2.bf16.xpose.msra.mxu0 0
    %2172 = vmatprep.subr.bf16.mxu0 0
    %2173 = vmatpush2.bf16.xpose.msra.mxu0 0
    %2174 = vmatprep.subr.bf16.mxu0 0
    %2175 = vmatpush2.bf16.xpose.msra.mxu0 0
    %2176 = vmatprep.mubr.bf16.mxu0 %v1924
    %2177 = vmatmul.mubr.bf16.gmra.mxu0 %v1923
    %v2178 = vpop.f32.mrf.mxu0
    %v2179 = vadd.f32 %v2138, %v2178
    %v2180 = vpop.f32.mrf.mxu0
    %v2181 = vpop.f32.mrf.mxu0
    %v2182 = vadd.f32 %v2141, %v2181
    %v2183 = vpop.f32.mrf.mxu0
    %2184 = vdwg.mxu0
    %2185 = vmatprep.subr.bf16.mxu0 0
    %2186 = vmatpush1.bf16.xpose.msra.mxu0 0
    %2187 = vmatprep.subr.bf16.mxu0 0
    %2188 = vmatpush1.bf16.xpose.msra.mxu0 0
    %2189 = vmatprep.subr.bf16.mxu0 0
    %2190 = vmatpush1.bf16.xpose.msra.mxu0 0
    %2191 = vmatprep.subr.bf16.mxu0 0
    %2192 = vmatpush1.bf16.xpose.msra.mxu0 0
    %2193 = vmatprep.subr.bf16.mxu0 0
    %2194 = vmatpush1.bf16.xpose.msra.mxu0 0
    %2195 = vmatprep.subr.bf16.mxu0 0
    %2196 = vmatpush1.bf16.xpose.msra.mxu0 0
    %2197 = vmatprep.subr.bf16.mxu0 %v2060
    %2198 = vmatpush1.bf16.xpose.msra.mxu0 %v2059
    %2199 = vmatprep.subr.bf16.mxu0 %v2044
    %2200 = vmatpush1.bf16.xpose.msra.mxu0 %v2043
    %2201 = vmatprep.subr.bf16.mxu0 0
    %2202 = vmatpush2.bf16.xpose.msra.mxu0 0
    %2203 = vmatprep.subr.bf16.mxu0 0
    %2204 = vmatpush2.bf16.xpose.msra.mxu0 0
    %2205 = vmatprep.subr.bf16.mxu0 0
    %2206 = vmatpush2.bf16.xpose.msra.mxu0 0
    %2207 = vmatprep.subr.bf16.mxu0 0
    %2208 = vmatpush2.bf16.xpose.msra.mxu0 0
    %2209 = vmatprep.subr.bf16.mxu0 0
    %2210 = vmatpush2.bf16.xpose.msra.mxu0 0
    %2211 = vmatprep.subr.bf16.mxu0 0
    %2212 = vmatpush2.bf16.xpose.msra.mxu0 0
    %2213 = vmatprep.subr.bf16.mxu0 0
    %2214 = vmatpush2.bf16.xpose.msra.mxu0 0
    %2215 = vmatprep.subr.bf16.mxu0 0
    %2216 = vmatpush2.bf16.xpose.msra.mxu0 0
    %2217 = vmatprep.mubr.bf16.mxu0 %v1926
    %2218 = vmatmul.mubr.bf16.gmra.mxu0 %v1925
    %v2219 = vpop.f32.mrf.mxu0
    %v2220 = vadd.f32 %v2179, %v2219
    %v2221 = vpop.f32.mrf.mxu0
    %v2222 = vpop.f32.mrf.mxu0
    %v2223 = vadd.f32 %v2182, %v2222
    %v2224 = vpop.f32.mrf.mxu0
    %2225 = vdwg.mxu0
    %2226 = vmatprep.subr.bf16.mxu0 0
    %2227 = vmatpush1.bf16.xpose.msra.mxu0 0
    %2228 = vmatprep.subr.bf16.mxu0 0
    %2229 = vmatpush1.bf16.xpose.msra.mxu0 0
    %2230 = vmatprep.subr.bf16.mxu0 0
    %2231 = vmatpush1.bf16.xpose.msra.mxu0 0
    %2232 = vmatprep.subr.bf16.mxu0 0
    %2233 = vmatpush1.bf16.xpose.msra.mxu0 0
    %2234 = vmatprep.subr.bf16.mxu0 0
    %2235 = vmatpush1.bf16.xpose.msra.mxu0 0
    %2236 = vmatprep.subr.bf16.mxu0 0
    %2237 = vmatpush1.bf16.xpose.msra.mxu0 0
    %2238 = vmatprep.subr.bf16.mxu0 %v2062
    %2239 = vmatpush1.bf16.xpose.msra.mxu0 %v2061
    %2240 = vmatprep.subr.bf16.mxu0 %v2046
    %2241 = vmatpush1.bf16.xpose.msra.mxu0 %v2045
    %2242 = vmatprep.subr.bf16.mxu0 0
    %2243 = vmatpush2.bf16.xpose.msra.mxu0 0
    %2244 = vmatprep.subr.bf16.mxu0 0
    %2245 = vmatpush2.bf16.xpose.msra.mxu0 0
    %2246 = vmatprep.subr.bf16.mxu0 0
    %2247 = vmatpush2.bf16.xpose.msra.mxu0 0
    %2248 = vmatprep.subr.bf16.mxu0 0
    %2249 = vmatpush2.bf16.xpose.msra.mxu0 0
    %2250 = vmatprep.subr.bf16.mxu0 0
    %2251 = vmatpush2.bf16.xpose.msra.mxu0 0
    %2252 = vmatprep.subr.bf16.mxu0 0
    %2253 = vmatpush2.bf16.xpose.msra.mxu0 0
    %2254 = vmatprep.subr.bf16.mxu0 0
    %2255 = vmatpush2.bf16.xpose.msra.mxu0 0
    %2256 = vmatprep.subr.bf16.mxu0 0
    %2257 = vmatpush2.bf16.xpose.msra.mxu0 0
    %2258 = vmatprep.mubr.bf16.mxu0 %v1928
    %2259 = vmatmul.mubr.bf16.gmra.mxu0 %v1927
    %v2260 = vpop.f32.mrf.mxu0
    %v2261 = vadd.f32 %v2220, %v2260
    %v2262 = vpop.f32.mrf.mxu0
    %v2263 = vpop.f32.mrf.mxu0
    %v2264 = vadd.f32 %v2223, %v2263
    %v2265 = vpop.f32.mrf.mxu0
    %2266 = vdwg.mxu0
    %2267 = vmatprep.subr.bf16.mxu0 0
    %2268 = vmatpush1.bf16.xpose.msra.mxu0 0
    %2269 = vmatprep.subr.bf16.mxu0 0
    %2270 = vmatpush1.bf16.xpose.msra.mxu0 0
    %2271 = vmatprep.subr.bf16.mxu0 0
    %2272 = vmatpush1.bf16.xpose.msra.mxu0 0
    %2273 = vmatprep.subr.bf16.mxu0 0
    %2274 = vmatpush1.bf16.xpose.msra.mxu0 0
    %2275 = vmatprep.subr.bf16.mxu0 0
    %2276 = vmatpush1.bf16.xpose.msra.mxu0 0
    %2277 = vmatprep.subr.bf16.mxu0 0
    %2278 = vmatpush1.bf16.xpose.msra.mxu0 0
    %2279 = vmatprep.subr.bf16.mxu0 %v2064
    %2280 = vmatpush1.bf16.xpose.msra.mxu0 %v2063
    %2281 = vmatprep.subr.bf16.mxu0 %v2048
    %2282 = vmatpush1.bf16.xpose.msra.mxu0 %v2047
    %2283 = vmatprep.subr.bf16.mxu0 0
    %2284 = vmatpush2.bf16.xpose.msra.mxu0 0
    %2285 = vmatprep.subr.bf16.mxu0 0
    %2286 = vmatpush2.bf16.xpose.msra.mxu0 0
    %2287 = vmatprep.subr.bf16.mxu0 0
    %2288 = vmatpush2.bf16.xpose.msra.mxu0 0
    %2289 = vmatprep.subr.bf16.mxu0 0
    %2290 = vmatpush2.bf16.xpose.msra.mxu0 0
    %2291 = vmatprep.subr.bf16.mxu0 0
    %2292 = vmatpush2.bf16.xpose.msra.mxu0 0
    %2293 = vmatprep.subr.bf16.mxu0 0
    %2294 = vmatpush2.bf16.xpose.msra.mxu0 0
    %2295 = vmatprep.subr.bf16.mxu0 0
    %2296 = vmatpush2.bf16.xpose.msra.mxu0 0
    %2297 = vmatprep.subr.bf16.mxu0 0
    %2298 = vmatpush2.bf16.xpose.msra.mxu0 0
    %2299 = vmatprep.mubr.bf16.mxu0 %v1930
    %2300 = vmatmul.mubr.bf16.gmra.mxu0 %v1929
    %v2301 = vpop.f32.mrf.mxu0
    %v2302 = vadd.f32 %v2261, %v2301
    %v2303 = vpop.f32.mrf.mxu0
    %v2304 = vpop.f32.mrf.mxu0
    %v2305 = vadd.f32 %v2264, %v2304
    %v2306 = vpop.f32.mrf.mxu0
    %2307 = vdwg.mxu0
    %2308 = vmatprep.subr.bf16.mxu0 0
    %2309 = vmatpush1.bf16.xpose.msra.mxu0 0
    %2310 = vmatprep.subr.bf16.mxu0 0
    %2311 = vmatpush1.bf16.xpose.msra.mxu0 0
    %2312 = vmatprep.subr.bf16.mxu0 0
    %2313 = vmatpush1.bf16.xpose.msra.mxu0 0
    %2314 = vmatprep.subr.bf16.mxu0 0
    %2315 = vmatpush1.bf16.xpose.msra.mxu0 0
    %2316 = vmatprep.subr.bf16.mxu0 0
    %2317 = vmatpush1.bf16.xpose.msra.mxu0 0
    %2318 = vmatprep.subr.bf16.mxu0 0
    %2319 = vmatpush1.bf16.xpose.msra.mxu0 0
    %2320 = vmatprep.subr.bf16.mxu0 %v2066
    %2321 = vmatpush1.bf16.xpose.msra.mxu0 %v2065
    %2322 = vmatprep.subr.bf16.mxu0 %v2050
    %2323 = vmatpush1.bf16.xpose.msra.mxu0 %v2049
    %2324 = vmatprep.subr.bf16.mxu0 0
    %2325 = vmatpush2.bf16.xpose.msra.mxu0 0
    %2326 = vmatprep.subr.bf16.mxu0 0
    %2327 = vmatpush2.bf16.xpose.msra.mxu0 0
    %2328 = vmatprep.subr.bf16.mxu0 0
    %2329 = vmatpush2.bf16.xpose.msra.mxu0 0
    %2330 = vmatprep.subr.bf16.mxu0 0
    %2331 = vmatpush2.bf16.xpose.msra.mxu0 0
    %2332 = vmatprep.subr.bf16.mxu0 0
    %2333 = vmatpush2.bf16.xpose.msra.mxu0 0
    %2334 = vmatprep.subr.bf16.mxu0 0
    %2335 = vmatpush2.bf16.xpose.msra.mxu0 0
    %2336 = vmatprep.subr.bf16.mxu0 0
    %2337 = vmatpush2.bf16.xpose.msra.mxu0 0
    %2338 = vmatprep.subr.bf16.mxu0 0
    %2339 = vmatpush2.bf16.xpose.msra.mxu0 0
    %2340 = vmatprep.mubr.bf16.mxu0 %v1932
    %2341 = vmatmul.mubr.bf16.gmra.mxu0 %v1931
    %v2342 = vpop.f32.mrf.mxu0
    %v2343 = vadd.f32 %v2302, %v2342
    %v2344 = vpop.f32.mrf.mxu0
    %v2345 = vpop.f32.mrf.mxu0
    %v2346 = vadd.f32 %v2305, %v2345
    %v2347 = vpop.f32.mrf.mxu0
    %2348 = vdwg.mxu0
    %2349 = vmatprep.subr.bf16.mxu0 0
    %2350 = vmatpush1.bf16.xpose.msra.mxu0 0
    %2351 = vmatprep.subr.bf16.mxu0 0
    %2352 = vmatpush1.bf16.xpose.msra.mxu0 0
    %2353 = vmatprep.subr.bf16.mxu0 0
    %2354 = vmatpush1.bf16.xpose.msra.mxu0 0
    %2355 = vmatprep.subr.bf16.mxu0 0
    %2356 = vmatpush1.bf16.xpose.msra.mxu0 0
    %2357 = vmatprep.subr.bf16.mxu0 0
    %2358 = vmatpush1.bf16.xpose.msra.mxu0 0
    %2359 = vmatprep.subr.bf16.mxu0 0
    %2360 = vmatpush1.bf16.xpose.msra.mxu0 0
    %2361 = vmatprep.subr.bf16.mxu0 %v2068
    %2362 = vmatpush1.bf16.xpose.msra.mxu0 %v2067
    %2363 = vmatprep.subr.bf16.mxu0 %v2052
    %2364 = vmatpush1.bf16.xpose.msra.mxu0 %v2051
    %2365 = vmatprep.subr.bf16.mxu0 0
    %2366 = vmatpush2.bf16.xpose.msra.mxu0 0
    %2367 = vmatprep.subr.bf16.mxu0 0
    %2368 = vmatpush2.bf16.xpose.msra.mxu0 0
    %2369 = vmatprep.subr.bf16.mxu0 0
    %2370 = vmatpush2.bf16.xpose.msra.mxu0 0
    %2371 = vmatprep.subr.bf16.mxu0 0
    %2372 = vmatpush2.bf16.xpose.msra.mxu0 0
    %2373 = vmatprep.subr.bf16.mxu0 0
    %2374 = vmatpush2.bf16.xpose.msra.mxu0 0
    %2375 = vmatprep.subr.bf16.mxu0 0
    %2376 = vmatpush2.bf16.xpose.msra.mxu0 0
    %2377 = vmatprep.subr.bf16.mxu0 0
    %2378 = vmatpush2.bf16.xpose.msra.mxu0 0
    %2379 = vmatprep.subr.bf16.mxu0 0
    %2380 = vmatpush2.bf16.xpose.msra.mxu0 0
    %2381 = vmatprep.mubr.bf16.mxu0 %v1934
    %2382 = vmatmul.mubr.bf16.gmra.mxu0 %v1933
    %v2383 = vpop.f32.mrf.mxu0
    %v2384 = vadd.f32 %v2343, %v2383
    %v2385 = vpop.f32.mrf.mxu0
    %v2386 = vpop.f32.mrf.mxu0
    %v2387 = vadd.f32 %v2346, %v2386
    %v2388 = vpop.f32.mrf.mxu0
    %2389 = vdwg.mxu0
    %2390 = vmatprep.subr.bf16.mxu0 0
    %2391 = vmatpush1.bf16.xpose.msra.mxu0 0
    %2392 = vmatprep.subr.bf16.mxu0 0
    %2393 = vmatpush1.bf16.xpose.msra.mxu0 0
    %2394 = vmatprep.subr.bf16.mxu0 0
    %2395 = vmatpush1.bf16.xpose.msra.mxu0 0
    %2396 = vmatprep.subr.bf16.mxu0 0
    %2397 = vmatpush1.bf16.xpose.msra.mxu0 0
    %2398 = vmatprep.subr.bf16.mxu0 0
    %2399 = vmatpush1.bf16.xpose.msra.mxu0 0
    %2400 = vmatprep.subr.bf16.mxu0 0
    %2401 = vmatpush1.bf16.xpose.msra.mxu0 0
    %2402 = vmatprep.subr.bf16.mxu0 %v2070
    %2403 = vmatpush1.bf16.xpose.msra.mxu0 %v2069
    %2404 = vmatprep.subr.bf16.mxu0 %v2054
    %2405 = vmatpush1.bf16.xpose.msra.mxu0 %v2053
    %2406 = vmatprep.subr.bf16.mxu0 0
    %2407 = vmatpush2.bf16.xpose.msra.mxu0 0
    %2408 = vmatprep.subr.bf16.mxu0 0
    %2409 = vmatpush2.bf16.xpose.msra.mxu0 0
    %2410 = vmatprep.subr.bf16.mxu0 0
    %2411 = vmatpush2.bf16.xpose.msra.mxu0 0
    %2412 = vmatprep.subr.bf16.mxu0 0
    %2413 = vmatpush2.bf16.xpose.msra.mxu0 0
    %2414 = vmatprep.subr.bf16.mxu0 0
    %2415 = vmatpush2.bf16.xpose.msra.mxu0 0
    %2416 = vmatprep.subr.bf16.mxu0 0
    %2417 = vmatpush2.bf16.xpose.msra.mxu0 0
    %2418 = vmatprep.subr.bf16.mxu0 0
    %2419 = vmatpush2.bf16.xpose.msra.mxu0 0
    %2420 = vmatprep.subr.bf16.mxu0 0
    %2421 = vmatpush2.bf16.xpose.msra.mxu0 0
    %2422 = vmatprep.mubr.bf16.mxu0 %v1936
    %2423 = vmatmul.mubr.bf16.gmra.mxu0 %v1935
    %v2424 = vpop.f32.mrf.mxu0
    %v2425 = vadd.f32 %v2384, %v2424
    %v2426 = vpop.f32.mrf.mxu0
    %v2427 = vpop.f32.mrf.mxu0
    %v2428 = vadd.f32 %v2387, %v2427
    %v2429 = vpop.f32.mrf.mxu0
    %2430 = vdwg.mxu0
    %v2431 = vadd.f32 %v1297, %v2425
    %v2432 = vadd.f32 %v1298, %v2428
    %s2433 = scalar_lea.vmem %s10, 2
    %v2434 = vld [vmem:[%s2433] sm:$0x1]
    %s2435 = scalar_lea.vmem %s10, 3
    %v2436 = vld [vmem:[%s2435] sm:$0x1]
    %v2437 = vsel %vm220, %v2431, 0.0
    %2438 = vadd.xlane.f32.xlu0 %v2437
    %v2439 = vpop.xlane.xlu0 %2438
    %v2440 = vsel %vm220, %v2432, 0.0
    %2441 = vadd.xlane.f32.xlu0 %v2440
    %v2442 = vpop.xlane.xlu0 %2441
    %v2443 = vmul.f32 %v2439, %v1247
    %v2444 = vmul.f32 %v2442, %v1247
    %v2445 = vsub.f32 %v2431, %v2443
    %v2446 = vsub.f32 %v2432, %v2444
    %v2447 = vmul.f32 %v2445, %v2445
    %v2448 = vmul.f32 %v2446, %v2446
    %v2449 = vsel %vm220, %v2447, 0.0
    %2450 = vadd.xlane.f32.xlu0 %v2449
    %v2451 = vpop.xlane.xlu0 %2450
    %v2452 = vsel %vm220, %v2448, 0.0
    %2453 = vadd.xlane.f32.xlu0 %v2452
    %v2454 = vpop.xlane.xlu0 %2453
    %v2455 = vmul.f32 %v2451, %v1260
    %v2456 = vmul.f32 %v2454, %v1260
    %v2457 = vrsqrt.pop %v2455
    %v2458 = vmul.f32 %v2455, %v2457
    %vm2459 = vcmp.eq.f32.partialorder %v2455, inf
    %v2460 = vsel %vm2459, %v2455, %v2458
    %vm2461 = vcmp.eq.f32.partialorder %v2455, 0.0
    %v2462 = vand.u32 %v2455, 2147483648
    %v2463 = vsel %vm2461, %v2462, %v2460
    %v2464 = vrsqrt.pop %v2456
    %v2465 = vmul.f32 %v2456, %v2464
    %vm2466 = vcmp.eq.f32.partialorder %v2456, inf
    %v2467 = vsel %vm2466, %v2456, %v2465
    %vm2468 = vcmp.eq.f32.partialorder %v2456, 0.0
    %v2469 = vand.u32 %v2456, 2147483648
    %v2470 = vsel %vm2468, %v2469, %v2467
    %v2471 = vadd.f32 %v2463, 1e-06
    %v2472 = vadd.f32 %v2470, 1e-06
    %v2473 = vrcp.pop %v2471
    %v2474 = vrcp.pop %v2472
    %v2475 = vmul.f32 %v2445, %v2473
    %v2476 = vmul.f32 %v2446, %v2474
    %v2478 = vlaneseq
    %v2479 = vshrl.u32 %v2478, 7
    %v2480 = vsub.s32 0, %v2479
    %v2481 = vrot.slane %v2434, %v2480
    %v2483 = vmul.f32 %v2481, %v2475
    %v2484 = vmul.f32 %v2481, %v2476
    %v2486 = vlaneseq
    %v2487 = vshrl.u32 %v2486, 7
    %v2488 = vsub.s32 0, %v2487
    %v2489 = vrot.slane %v2436, %v2488
    %v2491 = vadd.f32 %v2483, %v2489
    %v2492 = vadd.f32 %v2484, %v2489
    %v2494 = vsel %vm220, %v2491, 0
    %v2497 = vsel %vm220, %v2492, 0
    %2499 = vmatprep.subr.mxu0 0.0
    %2500 = vmatpush1.msra.mxu0 0.0
    %2501 = vmatprep.subr.mxu0 0.0
    %2502 = vmatpush1.msra.mxu0 0.0
    %2503 = vmatprep.subr.mxu0 0.0
    %2504 = vmatpush1.msra.mxu0 0.0
    %2505 = vmatprep.subr.mxu0 0.0
    %2506 = vmatpush1.msra.mxu0 0.0
    %2507 = vmatprep.subr.mxu0 0.0
    %2508 = vmatpush1.msra.mxu0 0.0
    %2509 = vmatprep.subr.mxu0 0.0
    %2510 = vmatpush1.msra.mxu0 0.0
    %2511 = vmatprep.subr.mxu0 0.0
    %2512 = vmatpush1.msra.mxu0 0.0
    %2513 = vmatprep.subr.mxu0 0.0
    %2514 = vmatpush1.msra.mxu0 0.0
    %2515 = vmatprep.subr.mxu0 0.0
    %2516 = vmatpush1.msra.mxu0 0.0
    %2517 = vmatprep.subr.mxu0 0.0
    %2518 = vmatpush1.msra.mxu0 0.0
    %2519 = vmatprep.subr.mxu0 0.0
    %2520 = vmatpush1.msra.mxu0 0.0
    %2521 = vmatprep.subr.mxu0 0.0
    %2522 = vmatpush1.msra.mxu0 0.0
    %2523 = vmatprep.subr.mxu0 0.0
    %2524 = vmatpush1.msra.mxu0 %v140
    %2525 = vmatprep.subr.mxu0 0.0
    %2526 = vmatpush1.msra.mxu0 %v139
    %2527 = vmatprep.subr.mxu0 0.0
    %2528 = vmatpush1.msra.mxu0 %v138
    %2529 = vmatprep.subr.mxu0 0.0
    %2530 = vmatpush1.msra.mxu0 %v137
    %2531 = vmatprep.subr.mxu0 0.0
    %2532 = vmatpush2.msra.mxu0 0.0
    %2533 = vmatprep.subr.mxu0 0.0
    %2534 = vmatpush2.msra.mxu0 0.0
    %2535 = vmatprep.subr.mxu0 0.0
    %2536 = vmatpush2.msra.mxu0 0.0
    %2537 = vmatprep.subr.mxu0 0.0
    %2538 = vmatpush2.msra.mxu0 0.0
    %2539 = vmatprep.subr.mxu0 0.0
    %2540 = vmatpush2.msra.mxu0 0.0
    %2541 = vmatprep.subr.mxu0 0.0
    %2542 = vmatpush2.msra.mxu0 0.0
    %2543 = vmatprep.subr.mxu0 0.0
    %2544 = vmatpush2.msra.mxu0 0.0
    %2545 = vmatprep.subr.mxu0 0.0
    %2546 = vmatpush2.msra.mxu0 0.0
    %2547 = vmatprep.subr.mxu0 0.0
    %2548 = vmatpush2.msra.mxu0 0.0
    %2549 = vmatprep.subr.mxu0 0.0
    %2550 = vmatpush2.msra.mxu0 0.0
    %2551 = vmatprep.subr.mxu0 0.0
    %2552 = vmatpush2.msra.mxu0 0.0
    %2553 = vmatprep.subr.mxu0 0.0
    %2554 = vmatpush2.msra.mxu0 0.0
    %2555 = vmatprep.subr.mxu0 0.0
    %2556 = vmatpush2.msra.mxu0 0.0
    %2557 = vmatprep.subr.mxu0 0.0
    %2558 = vmatpush2.msra.mxu0 0.0
    %2559 = vmatprep.subr.mxu0 0.0
    %2560 = vmatpush2.msra.mxu0 0.0
    %2561 = vmatprep.subr.mxu0 0.0
    %2562 = vmatpush2.msra.mxu0 0.0
    %2563 = vmatprep.mubr.f32.mxu0 0.0
    %2564 = vmatmul.mubr.f32.gmra.mxu0 %v2494
    %v2565 = vpop.f32.mrf.mxu0
    %v2566 = vadd.f32 %v218, %v2565
    %v2567 = vpop.f32.mrf.mxu0
    %2568 = vmatprep.mubr.f32.mxu0 0.0
    %2569 = vmatmul.mubr.f32.gmra.mxu0 %v2497
    %v2570 = vpop.f32.mrf.mxu0
    %v2571 = vadd.f32 %v218, %v2570
    %v2572 = vpop.f32.mrf.mxu0
    %2573 = vdwg.mxu0
    %2576 = vrot.lane.b32.xlu0 %v2566, 96
    %v2577 = vpop.permute.xlu0 %2576
    %2578 = vrot.lane.b32.xlu0 %v2571, 96
    %v2579 = vpop.permute.xlu0 %2578
    %v2580 = vsel %vm308, %v2566, 0
    %v2582 = vsel %vm308, %v2571, 0
    %v2584 = vsel %vm308, %v2577, 0
    %v2586 = vsel %vm308, %v2579, 0
    %2588 = vmatprep.subr.mxu0 0.0
    %2589 = vmatpush1.xpose.msra.mxu0 0.0
    %2590 = vmatprep.subr.mxu0 0.0
    %2591 = vmatpush1.xpose.msra.mxu0 0.0
    %2592 = vmatprep.subr.mxu0 0.0
    %2593 = vmatpush1.xpose.msra.mxu0 0.0
    %2594 = vmatprep.subr.mxu0 0.0
    %2595 = vmatpush1.xpose.msra.mxu0 0.0
    %2596 = vmatprep.subr.mxu0 0.0
    %2597 = vmatpush1.xpose.msra.mxu0 0.0
    %2598 = vmatprep.subr.mxu0 0.0
    %2599 = vmatpush1.xpose.msra.mxu0 0.0
    %2600 = vmatprep.subr.mxu0 0.0
    %2601 = vmatpush1.xpose.msra.mxu0 0.0
    %2602 = vmatprep.subr.mxu0 0.0
    %2603 = vmatpush1.xpose.msra.mxu0 0.0
    %2604 = vmatprep.subr.mxu0 0.0
    %2605 = vmatpush1.xpose.msra.mxu0 0.0
    %2606 = vmatprep.subr.mxu0 0.0
    %2607 = vmatpush1.xpose.msra.mxu0 0.0
    %2608 = vmatprep.subr.mxu0 0.0
    %2609 = vmatpush1.xpose.msra.mxu0 0.0
    %2610 = vmatprep.subr.mxu0 0.0
    %2611 = vmatpush1.xpose.msra.mxu0 0.0
    %2612 = vmatprep.subr.mxu0 0.0
    %2613 = vmatpush1.xpose.msra.mxu0 0.0
    %2614 = vmatprep.subr.mxu0 0.0
    %2615 = vmatpush1.xpose.msra.mxu0 0.0
    %2616 = vmatprep.subr.mxu0 0.0
    %2617 = vmatpush1.xpose.msra.mxu0 %v2586
    %2618 = vmatprep.subr.mxu0 0.0
    %2619 = vmatpush1.xpose.msra.mxu0 %v2584
    %2620 = vmatprep.subr.mxu0 0.0
    %2621 = vmatpush2.xpose.msra.mxu0 0.0
    %2622 = vmatprep.subr.mxu0 0.0
    %2623 = vmatpush2.xpose.msra.mxu0 0.0
    %2624 = vmatprep.subr.mxu0 0.0
    %2625 = vmatpush2.xpose.msra.mxu0 0.0
    %2626 = vmatprep.subr.mxu0 0.0
    %2627 = vmatpush2.xpose.msra.mxu0 0.0
    %2628 = vmatprep.subr.mxu0 0.0
    %2629 = vmatpush2.xpose.msra.mxu0 0.0
    %2630 = vmatprep.subr.mxu0 0.0
    %2631 = vmatpush2.xpose.msra.mxu0 0.0
    %2632 = vmatprep.subr.mxu0 0.0
    %2633 = vmatpush2.xpose.msra.mxu0 0.0
    %2634 = vmatprep.subr.mxu0 0.0
    %2635 = vmatpush2.xpose.msra.mxu0 0.0
    %2636 = vmatprep.subr.mxu0 0.0
    %2637 = vmatpush2.xpose.msra.mxu0 0.0
    %2638 = vmatprep.subr.mxu0 0.0
    %2639 = vmatpush2.xpose.msra.mxu0 0.0
    %2640 = vmatprep.subr.mxu0 0.0
    %2641 = vmatpush2.xpose.msra.mxu0 0.0
    %2642 = vmatprep.subr.mxu0 0.0
    %2643 = vmatpush2.xpose.msra.mxu0 0.0
    %2644 = vmatprep.subr.mxu0 0.0
    %2645 = vmatpush2.xpose.msra.mxu0 0.0
    %2646 = vmatprep.subr.mxu0 0.0
    %2647 = vmatpush2.xpose.msra.mxu0 0.0
    %2648 = vmatprep.subr.mxu0 0.0
    %2649 = vmatpush2.xpose.msra.mxu0 0.0
    %2650 = vmatprep.subr.mxu0 0.0
    %2651 = vmatpush2.xpose.msra.mxu0 0.0
    %2652 = vmatprep.mubr.f32.mxu0 0.0
    %2653 = vmatmul.mubr.f32.gmra.mxu0 %v2580
    %v2654 = vpop.f32.mrf.mxu0
    %v2655 = vadd.f32 0.0, %v2654
    %v2656 = vpop.f32.mrf.mxu0
    %2657 = vmatprep.mubr.f32.mxu0 0.0
    %2658 = vmatmul.mubr.f32.gmra.mxu0 %v2582
    %v2659 = vpop.f32.mrf.mxu0
    %v2660 = vadd.f32 0.0, %v2659
    %v2661 = vpop.f32.mrf.mxu0
    %2662 = vdwg.mxu0
    %v2663 = vmul.f32 %v2655, 0.35355338
    %v2664 = vmul.f32 %v2660, 0.35355338
    %v2665 = vadd.f32 %v2663, %v135
    %v2666 = vadd.f32 %v2664, %v136
    %v2667 = vsel %vm396, %v2665, -inf
    %2668 = vmax.xlane.f32.xlu0 %v2667
    %v2669 = vpop.xlane.xlu0 %2668
    %v2670 = vsel %vm396, %v2666, -inf
    %2671 = vmax.xlane.f32.xlu0 %v2670
    %v2672 = vpop.xlane.xlu0 %2671
    %v2673 = vsub.f32 %v2665, %v2669
    %v2674 = vsub.f32 %v2666, %v2672
    %v2675 = vmul.f32 %v2673, 1.442695
    %v2676 = vpow.pop %v2675
    %v2677 = vmul.f32 %v2674, 1.442695
    %v2678 = vpow.pop %v2677
    %v2679 = vsel %vm396, %v2676, 0.0
    %2680 = vadd.xlane.f32.xlu0 %v2679
    %v2681 = vpop.xlane.xlu0 %2680
    %v2682 = vsel %vm396, %v2678, 0.0
    %2683 = vadd.xlane.f32.xlu0 %v2682
    %v2684 = vpop.xlane.xlu0 %2683
    %v2685 = vrcp.pop %v2681
    %v2686 = vrcp.pop %v2684
    %v2687 = vmul.f32 %v2676, %v2685
    %v2688 = vmul.f32 %v2678, %v2686
    %2689 = vrot.lane.b32.xlu0 %v2566, 64
    %v2690 = vpop.permute.xlu0 %2689
    %2691 = vrot.lane.b32.xlu0 %v2571, 64
    %v2692 = vpop.permute.xlu0 %2691
    %v2696 = vsel %vm396, %v2687, 0
    %v2699 = vsel %vm396, %v2688, 0
    %2701 = vmatprep.subr.mxu0 0.0
    %2702 = vmatpush1.msra.mxu0 0.0
    %2703 = vmatprep.subr.mxu0 0.0
    %2704 = vmatpush1.msra.mxu0 0.0
    %2705 = vmatprep.subr.mxu0 0.0
    %2706 = vmatpush1.msra.mxu0 0.0
    %2707 = vmatprep.subr.mxu0 0.0
    %2708 = vmatpush1.msra.mxu0 0.0
    %2709 = vmatprep.subr.mxu0 0.0
    %2710 = vmatpush1.msra.mxu0 0.0
    %2711 = vmatprep.subr.mxu0 0.0
    %2712 = vmatpush1.msra.mxu0 0.0
    %2713 = vmatprep.subr.mxu0 0.0
    %2714 = vmatpush1.msra.mxu0 0.0
    %2715 = vmatprep.subr.mxu0 0.0
    %2716 = vmatpush1.msra.mxu0 0.0
    %2717 = vmatprep.subr.mxu0 0.0
    %2718 = vmatpush1.msra.mxu0 0.0
    %2719 = vmatprep.subr.mxu0 0.0
    %2720 = vmatpush1.msra.mxu0 0.0
    %2721 = vmatprep.subr.mxu0 0.0
    %2722 = vmatpush1.msra.mxu0 0.0
    %2723 = vmatprep.subr.mxu0 0.0
    %2724 = vmatpush1.msra.mxu0 0.0
    %2725 = vmatprep.subr.mxu0 0.0
    %2726 = vmatpush1.msra.mxu0 0.0
    %2727 = vmatprep.subr.mxu0 0.0
    %2728 = vmatpush1.msra.mxu0 0.0
    %2729 = vmatprep.subr.mxu0 0.0
    %2730 = vmatpush1.msra.mxu0 %v2692
    %2731 = vmatprep.subr.mxu0 0.0
    %2732 = vmatpush1.msra.mxu0 %v2690
    %2733 = vmatprep.subr.mxu0 0.0
    %2734 = vmatpush2.msra.mxu0 0.0
    %2735 = vmatprep.subr.mxu0 0.0
    %2736 = vmatpush2.msra.mxu0 0.0
    %2737 = vmatprep.subr.mxu0 0.0
    %2738 = vmatpush2.msra.mxu0 0.0
    %2739 = vmatprep.subr.mxu0 0.0
    %2740 = vmatpush2.msra.mxu0 0.0
    %2741 = vmatprep.subr.mxu0 0.0
    %2742 = vmatpush2.msra.mxu0 0.0
    %2743 = vmatprep.subr.mxu0 0.0
    %2744 = vmatpush2.msra.mxu0 0.0
    %2745 = vmatprep.subr.mxu0 0.0
    %2746 = vmatpush2.msra.mxu0 0.0
    %2747 = vmatprep.subr.mxu0 0.0
    %2748 = vmatpush2.msra.mxu0 0.0
    %2749 = vmatprep.subr.mxu0 0.0
    %2750 = vmatpush2.msra.mxu0 0.0
    %2751 = vmatprep.subr.mxu0 0.0
    %2752 = vmatpush2.msra.mxu0 0.0
    %2753 = vmatprep.subr.mxu0 0.0
    %2754 = vmatpush2.msra.mxu0 0.0
    %2755 = vmatprep.subr.mxu0 0.0
    %2756 = vmatpush2.msra.mxu0 0.0
    %2757 = vmatprep.subr.mxu0 0.0
    %2758 = vmatpush2.msra.mxu0 0.0
    %2759 = vmatprep.subr.mxu0 0.0
    %2760 = vmatpush2.msra.mxu0 0.0
    %2761 = vmatprep.subr.mxu0 0.0
    %2762 = vmatpush2.msra.mxu0 0.0
    %2763 = vmatprep.subr.mxu0 0.0
    %2764 = vmatpush2.msra.mxu0 0.0
    %2765 = vmatprep.mubr.f32.mxu0 0.0
    %2766 = vmatmul.mubr.f32.gmra.mxu0 %v2696
    %v2767 = vpop.f32.mrf.mxu0
    %v2768 = vadd.f32 0.0, %v2767
    %v2769 = vpop.f32.mrf.mxu0
    %2770 = vmatprep.mubr.f32.mxu0 0.0
    %2771 = vmatmul.mubr.f32.gmra.mxu0 %v2699
    %v2772 = vpop.f32.mrf.mxu0
    %v2773 = vadd.f32 0.0, %v2772
    %v2774 = vpop.f32.mrf.mxu0
    %2775 = vdwg.mxu0
    %2776 = vrot.lane.b32.xlu0 %v2566, 120
    %v2777 = vpop.permute.xlu0 %2776
    %2778 = vrot.lane.b32.xlu0 %v2571, 120
    %v2779 = vpop.permute.xlu0 %2778
    %2780 = vrot.lane.b32.xlu0 %v2566, 88
    %v2781 = vpop.permute.xlu0 %2780
    %2782 = vrot.lane.b32.xlu0 %v2571, 88
    %v2783 = vpop.permute.xlu0 %2782
    %v2784 = vsel %vm308, %v2777, 0
    %v2786 = vsel %vm308, %v2779, 0
    %v2788 = vsel %vm308, %v2781, 0
    %v2790 = vsel %vm308, %v2783, 0
    %2792 = vmatprep.subr.mxu0 0.0
    %2793 = vmatpush1.xpose.msra.mxu0 0.0
    %2794 = vmatprep.subr.mxu0 0.0
    %2795 = vmatpush1.xpose.msra.mxu0 0.0
    %2796 = vmatprep.subr.mxu0 0.0
    %2797 = vmatpush1.xpose.msra.mxu0 0.0
    %2798 = vmatprep.subr.mxu0 0.0
    %2799 = vmatpush1.xpose.msra.mxu0 0.0
    %2800 = vmatprep.subr.mxu0 0.0
    %2801 = vmatpush1.xpose.msra.mxu0 0.0
    %2802 = vmatprep.subr.mxu0 0.0
    %2803 = vmatpush1.xpose.msra.mxu0 0.0
    %2804 = vmatprep.subr.mxu0 0.0
    %2805 = vmatpush1.xpose.msra.mxu0 0.0
    %2806 = vmatprep.subr.mxu0 0.0
    %2807 = vmatpush1.xpose.msra.mxu0 0.0
    %2808 = vmatprep.subr.mxu0 0.0
    %2809 = vmatpush1.xpose.msra.mxu0 0.0
    %2810 = vmatprep.subr.mxu0 0.0
    %2811 = vmatpush1.xpose.msra.mxu0 0.0
    %2812 = vmatprep.subr.mxu0 0.0
    %2813 = vmatpush1.xpose.msra.mxu0 0.0
    %2814 = vmatprep.subr.mxu0 0.0
    %2815 = vmatpush1.xpose.msra.mxu0 0.0
    %2816 = vmatprep.subr.mxu0 0.0
    %2817 = vmatpush1.xpose.msra.mxu0 0.0
    %2818 = vmatprep.subr.mxu0 0.0
    %2819 = vmatpush1.xpose.msra.mxu0 0.0
    %2820 = vmatprep.subr.mxu0 0.0
    %2821 = vmatpush1.xpose.msra.mxu0 %v2790
    %2822 = vmatprep.subr.mxu0 0.0
    %2823 = vmatpush1.xpose.msra.mxu0 %v2788
    %2824 = vmatprep.subr.mxu0 0.0
    %2825 = vmatpush2.xpose.msra.mxu0 0.0
    %2826 = vmatprep.subr.mxu0 0.0
    %2827 = vmatpush2.xpose.msra.mxu0 0.0
    %2828 = vmatprep.subr.mxu0 0.0
    %2829 = vmatpush2.xpose.msra.mxu0 0.0
    %2830 = vmatprep.subr.mxu0 0.0
    %2831 = vmatpush2.xpose.msra.mxu0 0.0
    %2832 = vmatprep.subr.mxu0 0.0
    %2833 = vmatpush2.xpose.msra.mxu0 0.0
    %2834 = vmatprep.subr.mxu0 0.0
    %2835 = vmatpush2.xpose.msra.mxu0 0.0
    %2836 = vmatprep.subr.mxu0 0.0
    %2837 = vmatpush2.xpose.msra.mxu0 0.0
    %2838 = vmatprep.subr.mxu0 0.0
    %2839 = vmatpush2.xpose.msra.mxu0 0.0
    %2840 = vmatprep.subr.mxu0 0.0
    %2841 = vmatpush2.xpose.msra.mxu0 0.0
    %2842 = vmatprep.subr.mxu0 0.0
    %2843 = vmatpush2.xpose.msra.mxu0 0.0
    %2844 = vmatprep.subr.mxu0 0.0
    %2845 = vmatpush2.xpose.msra.mxu0 0.0
    %2846 = vmatprep.subr.mxu0 0.0
    %2847 = vmatpush2.xpose.msra.mxu0 0.0
    %2848 = vmatprep.subr.mxu0 0.0
    %2849 = vmatpush2.xpose.msra.mxu0 0.0
    %2850 = vmatprep.subr.mxu0 0.0
    %2851 = vmatpush2.xpose.msra.mxu0 0.0
    %2852 = vmatprep.subr.mxu0 0.0
    %2853 = vmatpush2.xpose.msra.mxu0 0.0
    %2854 = vmatprep.subr.mxu0 0.0
    %2855 = vmatpush2.xpose.msra.mxu0 0.0
    %2856 = vmatprep.mubr.f32.mxu0 0.0
    %2857 = vmatmul.mubr.f32.gmra.mxu0 %v2784
    %v2858 = vpop.f32.mrf.mxu0
    %v2859 = vadd.f32 0.0, %v2858
    %v2860 = vpop.f32.mrf.mxu0
    %2861 = vmatprep.mubr.f32.mxu0 0.0
    %2862 = vmatmul.mubr.f32.gmra.mxu0 %v2786
    %v2863 = vpop.f32.mrf.mxu0
    %v2864 = vadd.f32 0.0, %v2863
    %v2865 = vpop.f32.mrf.mxu0
    %2866 = vdwg.mxu0
    %v2867 = vmul.f32 %v2859, 0.35355338
    %v2868 = vmul.f32 %v2864, 0.35355338
    %v2869 = vadd.f32 %v2867, %v135
    %v2870 = vadd.f32 %v2868, %v136
    %v2871 = vsel %vm396, %v2869, -inf
    %2872 = vmax.xlane.f32.xlu0 %v2871
    %v2873 = vpop.xlane.xlu0 %2872
    %v2874 = vsel %vm396, %v2870, -inf
    %2875 = vmax.xlane.f32.xlu0 %v2874
    %v2876 = vpop.xlane.xlu0 %2875
    %v2877 = vsub.f32 %v2869, %v2873
    %v2878 = vsub.f32 %v2870, %v2876
    %v2879 = vmul.f32 %v2877, 1.442695
    %v2880 = vpow.pop %v2879
    %v2881 = vmul.f32 %v2878, 1.442695
    %v2882 = vpow.pop %v2881
    %v2883 = vsel %vm396, %v2880, 0.0
    %2884 = vadd.xlane.f32.xlu0 %v2883
    %v2885 = vpop.xlane.xlu0 %2884
    %v2886 = vsel %vm396, %v2882, 0.0
    %2887 = vadd.xlane.f32.xlu0 %v2886
    %v2888 = vpop.xlane.xlu0 %2887
    %v2889 = vrcp.pop %v2885
    %v2890 = vrcp.pop %v2888
    %v2891 = vmul.f32 %v2880, %v2889
    %v2892 = vmul.f32 %v2882, %v2890
    %2893 = vrot.lane.b32.xlu0 %v2566, 56
    %v2894 = vpop.permute.xlu0 %2893
    %2895 = vrot.lane.b32.xlu0 %v2571, 56
    %v2896 = vpop.permute.xlu0 %2895
    %v2900 = vsel %vm396, %v2891, 0
    %v2903 = vsel %vm396, %v2892, 0
    %2905 = vmatprep.subr.mxu0 0.0
    %2906 = vmatpush1.msra.mxu0 0.0
    %2907 = vmatprep.subr.mxu0 0.0
    %2908 = vmatpush1.msra.mxu0 0.0
    %2909 = vmatprep.subr.mxu0 0.0
    %2910 = vmatpush1.msra.mxu0 0.0
    %2911 = vmatprep.subr.mxu0 0.0
    %2912 = vmatpush1.msra.mxu0 0.0
    %2913 = vmatprep.subr.mxu0 0.0
    %2914 = vmatpush1.msra.mxu0 0.0
    %2915 = vmatprep.subr.mxu0 0.0
    %2916 = vmatpush1.msra.mxu0 0.0
    %2917 = vmatprep.subr.mxu0 0.0
    %2918 = vmatpush1.msra.mxu0 0.0
    %2919 = vmatprep.subr.mxu0 0.0
    %2920 = vmatpush1.msra.mxu0 0.0
    %2921 = vmatprep.subr.mxu0 0.0
    %2922 = vmatpush1.msra.mxu0 0.0
    %2923 = vmatprep.subr.mxu0 0.0
    %2924 = vmatpush1.msra.mxu0 0.0
    %2925 = vmatprep.subr.mxu0 0.0
    %2926 = vmatpush1.msra.mxu0 0.0
    %2927 = vmatprep.subr.mxu0 0.0
    %2928 = vmatpush1.msra.mxu0 0.0
    %2929 = vmatprep.subr.mxu0 0.0
    %2930 = vmatpush1.msra.mxu0 0.0
    %2931 = vmatprep.subr.mxu0 0.0
    %2932 = vmatpush1.msra.mxu0 0.0
    %2933 = vmatprep.subr.mxu0 0.0
    %2934 = vmatpush1.msra.mxu0 %v2896
    %2935 = vmatprep.subr.mxu0 0.0
    %2936 = vmatpush1.msra.mxu0 %v2894
    %2937 = vmatprep.subr.mxu0 0.0
    %2938 = vmatpush2.msra.mxu0 0.0
    %2939 = vmatprep.subr.mxu0 0.0
    %2940 = vmatpush2.msra.mxu0 0.0
    %2941 = vmatprep.subr.mxu0 0.0
    %2942 = vmatpush2.msra.mxu0 0.0
    %2943 = vmatprep.subr.mxu0 0.0
    %2944 = vmatpush2.msra.mxu0 0.0
    %2945 = vmatprep.subr.mxu0 0.0
    %2946 = vmatpush2.msra.mxu0 0.0
    %2947 = vmatprep.subr.mxu0 0.0
    %2948 = vmatpush2.msra.mxu0 0.0
    %2949 = vmatprep.subr.mxu0 0.0
    %2950 = vmatpush2.msra.mxu0 0.0
    %2951 = vmatprep.subr.mxu0 0.0
    %2952 = vmatpush2.msra.mxu0 0.0
    %2953 = vmatprep.subr.mxu0 0.0
    %2954 = vmatpush2.msra.mxu0 0.0
    %2955 = vmatprep.subr.mxu0 0.0
    %2956 = vmatpush2.msra.mxu0 0.0
    %2957 = vmatprep.subr.mxu0 0.0
    %2958 = vmatpush2.msra.mxu0 0.0
    %2959 = vmatprep.subr.mxu0 0.0
    %2960 = vmatpush2.msra.mxu0 0.0
    %2961 = vmatprep.subr.mxu0 0.0
    %2962 = vmatpush2.msra.mxu0 0.0
    %2963 = vmatprep.subr.mxu0 0.0
    %2964 = vmatpush2.msra.mxu0 0.0
    %2965 = vmatprep.subr.mxu0 0.0
    %2966 = vmatpush2.msra.mxu0 0.0
    %2967 = vmatprep.subr.mxu0 0.0
    %2968 = vmatpush2.msra.mxu0 0.0
    %2969 = vmatprep.mubr.f32.mxu0 0.0
    %2970 = vmatmul.mubr.f32.gmra.mxu0 %v2900
    %v2971 = vpop.f32.mrf.mxu0
    %v2972 = vadd.f32 0.0, %v2971
    %v2973 = vpop.f32.mrf.mxu0
    %2974 = vmatprep.mubr.f32.mxu0 0.0
    %2975 = vmatmul.mubr.f32.gmra.mxu0 %v2903
    %v2976 = vpop.f32.mrf.mxu0
    %v2977 = vadd.f32 0.0, %v2976
    %v2978 = vpop.f32.mrf.mxu0
    %2979 = vdwg.mxu0
    %2980 = vrot.lane.b32.xlu0 %v2566, 112
    %v2981 = vpop.permute.xlu0 %2980
    %2982 = vrot.lane.b32.xlu0 %v2571, 112
    %v2983 = vpop.permute.xlu0 %2982
    %2984 = vrot.lane.b32.xlu0 %v2566, 80
    %v2985 = vpop.permute.xlu0 %2984
    %2986 = vrot.lane.b32.xlu0 %v2571, 80
    %v2987 = vpop.permute.xlu0 %2986
    %v2988 = vsel %vm308, %v2981, 0
    %v2990 = vsel %vm308, %v2983, 0
    %v2992 = vsel %vm308, %v2985, 0
    %v2994 = vsel %vm308, %v2987, 0
    %2996 = vmatprep.subr.mxu0 0.0
    %2997 = vmatpush1.xpose.msra.mxu0 0.0
    %2998 = vmatprep.subr.mxu0 0.0
    %2999 = vmatpush1.xpose.msra.mxu0 0.0
    %3000 = vmatprep.subr.mxu0 0.0
    %3001 = vmatpush1.xpose.msra.mxu0 0.0
    %3002 = vmatprep.subr.mxu0 0.0
    %3003 = vmatpush1.xpose.msra.mxu0 0.0
    %3004 = vmatprep.subr.mxu0 0.0
    %3005 = vmatpush1.xpose.msra.mxu0 0.0
    %3006 = vmatprep.subr.mxu0 0.0
    %3007 = vmatpush1.xpose.msra.mxu0 0.0
    %3008 = vmatprep.subr.mxu0 0.0
    %3009 = vmatpush1.xpose.msra.mxu0 0.0
    %3010 = vmatprep.subr.mxu0 0.0
    %3011 = vmatpush1.xpose.msra.mxu0 0.0
    %3012 = vmatprep.subr.mxu0 0.0
    %3013 = vmatpush1.xpose.msra.mxu0 0.0
    %3014 = vmatprep.subr.mxu0 0.0
    %3015 = vmatpush1.xpose.msra.mxu0 0.0
    %3016 = vmatprep.subr.mxu0 0.0
    %3017 = vmatpush1.xpose.msra.mxu0 0.0
    %3018 = vmatprep.subr.mxu0 0.0
    %3019 = vmatpush1.xpose.msra.mxu0 0.0
    %3020 = vmatprep.subr.mxu0 0.0
    %3021 = vmatpush1.xpose.msra.mxu0 0.0
    %3022 = vmatprep.subr.mxu0 0.0
    %3023 = vmatpush1.xpose.msra.mxu0 0.0
    %3024 = vmatprep.subr.mxu0 0.0
    %3025 = vmatpush1.xpose.msra.mxu0 %v2994
    %3026 = vmatprep.subr.mxu0 0.0
    %3027 = vmatpush1.xpose.msra.mxu0 %v2992
    %3028 = vmatprep.subr.mxu0 0.0
    %3029 = vmatpush2.xpose.msra.mxu0 0.0
    %3030 = vmatprep.subr.mxu0 0.0
    %3031 = vmatpush2.xpose.msra.mxu0 0.0
    %3032 = vmatprep.subr.mxu0 0.0
    %3033 = vmatpush2.xpose.msra.mxu0 0.0
    %3034 = vmatprep.subr.mxu0 0.0
    %3035 = vmatpush2.xpose.msra.mxu0 0.0
    %3036 = vmatprep.subr.mxu0 0.0
    %3037 = vmatpush2.xpose.msra.mxu0 0.0
    %3038 = vmatprep.subr.mxu0 0.0
    %3039 = vmatpush2.xpose.msra.mxu0 0.0
    %3040 = vmatprep.subr.mxu0 0.0
    %3041 = vmatpush2.xpose.msra.mxu0 0.0
    %3042 = vmatprep.subr.mxu0 0.0
    %3043 = vmatpush2.xpose.msra.mxu0 0.0
    %3044 = vmatprep.subr.mxu0 0.0
    %3045 = vmatpush2.xpose.msra.mxu0 0.0
    %3046 = vmatprep.subr.mxu0 0.0
    %3047 = vmatpush2.xpose.msra.mxu0 0.0
    %3048 = vmatprep.subr.mxu0 0.0
    %3049 = vmatpush2.xpose.msra.mxu0 0.0
    %3050 = vmatprep.subr.mxu0 0.0
    %3051 = vmatpush2.xpose.msra.mxu0 0.0
    %3052 = vmatprep.subr.mxu0 0.0
    %3053 = vmatpush2.xpose.msra.mxu0 0.0
    %3054 = vmatprep.subr.mxu0 0.0
    %3055 = vmatpush2.xpose.msra.mxu0 0.0
    %3056 = vmatprep.subr.mxu0 0.0
    %3057 = vmatpush2.xpose.msra.mxu0 0.0
    %3058 = vmatprep.subr.mxu0 0.0
    %3059 = vmatpush2.xpose.msra.mxu0 0.0
    %3060 = vmatprep.mubr.f32.mxu0 0.0
    %3061 = vmatmul.mubr.f32.gmra.mxu0 %v2988
    %v3062 = vpop.f32.mrf.mxu0
    %v3063 = vadd.f32 0.0, %v3062
    %v3064 = vpop.f32.mrf.mxu0
    %3065 = vmatprep.mubr.f32.mxu0 0.0
    %3066 = vmatmul.mubr.f32.gmra.mxu0 %v2990
    %v3067 = vpop.f32.mrf.mxu0
    %v3068 = vadd.f32 0.0, %v3067
    %v3069 = vpop.f32.mrf.mxu0
    %3070 = vdwg.mxu0
    %v3071 = vmul.f32 %v3063, 0.35355338
    %v3072 = vmul.f32 %v3068, 0.35355338
    %v3073 = vadd.f32 %v3071, %v135
    %v3074 = vadd.f32 %v3072, %v136
    %v3075 = vsel %vm396, %v3073, -inf
    %3076 = vmax.xlane.f32.xlu0 %v3075
    %v3077 = vpop.xlane.xlu0 %3076
    %v3078 = vsel %vm396, %v3074, -inf
    %3079 = vmax.xlane.f32.xlu0 %v3078
    %v3080 = vpop.xlane.xlu0 %3079
    %v3081 = vsub.f32 %v3073, %v3077
    %v3082 = vsub.f32 %v3074, %v3080
    %v3083 = vmul.f32 %v3081, 1.442695
    %v3084 = vpow.pop %v3083
    %v3085 = vmul.f32 %v3082, 1.442695
    %v3086 = vpow.pop %v3085
    %v3087 = vsel %vm396, %v3084, 0.0
    %3088 = vadd.xlane.f32.xlu0 %v3087
    %v3089 = vpop.xlane.xlu0 %3088
    %v3090 = vsel %vm396, %v3086, 0.0
    %3091 = vadd.xlane.f32.xlu0 %v3090
    %v3092 = vpop.xlane.xlu0 %3091
    %v3093 = vrcp.pop %v3089
    %v3094 = vrcp.pop %v3092
    %v3095 = vmul.f32 %v3084, %v3093
    %v3096 = vmul.f32 %v3086, %v3094
    %3097 = vrot.lane.b32.xlu0 %v2566, 48
    %v3098 = vpop.permute.xlu0 %3097
    %3099 = vrot.lane.b32.xlu0 %v2571, 48
    %v3100 = vpop.permute.xlu0 %3099
    %v3104 = vsel %vm396, %v3095, 0
    %v3107 = vsel %vm396, %v3096, 0
    %3109 = vmatprep.subr.mxu0 0.0
    %3110 = vmatpush1.msra.mxu0 0.0
    %3111 = vmatprep.subr.mxu0 0.0
    %3112 = vmatpush1.msra.mxu0 0.0
    %3113 = vmatprep.subr.mxu0 0.0
    %3114 = vmatpush1.msra.mxu0 0.0
    %3115 = vmatprep.subr.mxu0 0.0
    %3116 = vmatpush1.msra.mxu0 0.0
    %3117 = vmatprep.subr.mxu0 0.0
    %3118 = vmatpush1.msra.mxu0 0.0
    %3119 = vmatprep.subr.mxu0 0.0
    %3120 = vmatpush1.msra.mxu0 0.0
    %3121 = vmatprep.subr.mxu0 0.0
    %3122 = vmatpush1.msra.mxu0 0.0
    %3123 = vmatprep.subr.mxu0 0.0
    %3124 = vmatpush1.msra.mxu0 0.0
    %3125 = vmatprep.subr.mxu0 0.0
    %3126 = vmatpush1.msra.mxu0 0.0
    %3127 = vmatprep.subr.mxu0 0.0
    %3128 = vmatpush1.msra.mxu0 0.0
    %3129 = vmatprep.subr.mxu0 0.0
    %3130 = vmatpush1.msra.mxu0 0.0
    %3131 = vmatprep.subr.mxu0 0.0
    %3132 = vmatpush1.msra.mxu0 0.0
    %3133 = vmatprep.subr.mxu0 0.0
    %3134 = vmatpush1.msra.mxu0 0.0
    %3135 = vmatprep.subr.mxu0 0.0
    %3136 = vmatpush1.msra.mxu0 0.0
    %3137 = vmatprep.subr.mxu0 0.0
    %3138 = vmatpush1.msra.mxu0 %v3100
    %3139 = vmatprep.subr.mxu0 0.0
    %3140 = vmatpush1.msra.mxu0 %v3098
    %3141 = vmatprep.subr.mxu0 0.0
    %3142 = vmatpush2.msra.mxu0 0.0
    %3143 = vmatprep.subr.mxu0 0.0
    %3144 = vmatpush2.msra.mxu0 0.0
    %3145 = vmatprep.subr.mxu0 0.0
    %3146 = vmatpush2.msra.mxu0 0.0
    %3147 = vmatprep.subr.mxu0 0.0
    %3148 = vmatpush2.msra.mxu0 0.0
    %3149 = vmatprep.subr.mxu0 0.0
    %3150 = vmatpush2.msra.mxu0 0.0
    %3151 = vmatprep.subr.mxu0 0.0
    %3152 = vmatpush2.msra.mxu0 0.0
    %3153 = vmatprep.subr.mxu0 0.0
    %3154 = vmatpush2.msra.mxu0 0.0
    %3155 = vmatprep.subr.mxu0 0.0
    %3156 = vmatpush2.msra.mxu0 0.0
    %3157 = vmatprep.subr.mxu0 0.0
    %3158 = vmatpush2.msra.mxu0 0.0
    %3159 = vmatprep.subr.mxu0 0.0
    %3160 = vmatpush2.msra.mxu0 0.0
    %3161 = vmatprep.subr.mxu0 0.0
    %3162 = vmatpush2.msra.mxu0 0.0
    %3163 = vmatprep.subr.mxu0 0.0
    %3164 = vmatpush2.msra.mxu0 0.0
    %3165 = vmatprep.subr.mxu0 0.0
    %3166 = vmatpush2.msra.mxu0 0.0
    %3167 = vmatprep.subr.mxu0 0.0
    %3168 = vmatpush2.msra.mxu0 0.0
    %3169 = vmatprep.subr.mxu0 0.0
    %3170 = vmatpush2.msra.mxu0 0.0
    %3171 = vmatprep.subr.mxu0 0.0
    %3172 = vmatpush2.msra.mxu0 0.0
    %3173 = vmatprep.mubr.f32.mxu0 0.0
    %3174 = vmatmul.mubr.f32.gmra.mxu0 %v3104
    %v3175 = vpop.f32.mrf.mxu0
    %v3176 = vadd.f32 0.0, %v3175
    %v3177 = vpop.f32.mrf.mxu0
    %3178 = vmatprep.mubr.f32.mxu0 0.0
    %3179 = vmatmul.mubr.f32.gmra.mxu0 %v3107
    %v3180 = vpop.f32.mrf.mxu0
    %v3181 = vadd.f32 0.0, %v3180
    %v3182 = vpop.f32.mrf.mxu0
    %3183 = vdwg.mxu0
    %3184 = vrot.lane.b32.xlu0 %v2566, 104
    %v3185 = vpop.permute.xlu0 %3184
    %3186 = vrot.lane.b32.xlu0 %v2571, 104
    %v3187 = vpop.permute.xlu0 %3186
    %3188 = vrot.lane.b32.xlu0 %v2566, 72
    %v3189 = vpop.permute.xlu0 %3188
    %3190 = vrot.lane.b32.xlu0 %v2571, 72
    %v3191 = vpop.permute.xlu0 %3190
    %v3192 = vsel %vm308, %v3185, 0
    %v3194 = vsel %vm308, %v3187, 0
    %v3196 = vsel %vm308, %v3189, 0
    %v3198 = vsel %vm308, %v3191, 0
    %3200 = vmatprep.subr.mxu0 0.0
    %3201 = vmatpush1.xpose.msra.mxu0 0.0
    %3202 = vmatprep.subr.mxu0 0.0
    %3203 = vmatpush1.xpose.msra.mxu0 0.0
    %3204 = vmatprep.subr.mxu0 0.0
    %3205 = vmatpush1.xpose.msra.mxu0 0.0
    %3206 = vmatprep.subr.mxu0 0.0
    %3207 = vmatpush1.xpose.msra.mxu0 0.0
    %3208 = vmatprep.subr.mxu0 0.0
    %3209 = vmatpush1.xpose.msra.mxu0 0.0
    %3210 = vmatprep.subr.mxu0 0.0
    %3211 = vmatpush1.xpose.msra.mxu0 0.0
    %3212 = vmatprep.subr.mxu0 0.0
    %3213 = vmatpush1.xpose.msra.mxu0 0.0
    %3214 = vmatprep.subr.mxu0 0.0
    %3215 = vmatpush1.xpose.msra.mxu0 0.0
    %3216 = vmatprep.subr.mxu0 0.0
    %3217 = vmatpush1.xpose.msra.mxu0 0.0
    %3218 = vmatprep.subr.mxu0 0.0
    %3219 = vmatpush1.xpose.msra.mxu0 0.0
    %3220 = vmatprep.subr.mxu0 0.0
    %3221 = vmatpush1.xpose.msra.mxu0 0.0
    %3222 = vmatprep.subr.mxu0 0.0
    %3223 = vmatpush1.xpose.msra.mxu0 0.0
    %3224 = vmatprep.subr.mxu0 0.0
    %3225 = vmatpush1.xpose.msra.mxu0 0.0
    %3226 = vmatprep.subr.mxu0 0.0
    %3227 = vmatpush1.xpose.msra.mxu0 0.0
    %3228 = vmatprep.subr.mxu0 0.0
    %3229 = vmatpush1.xpose.msra.mxu0 %v3198
    %3230 = vmatprep.subr.mxu0 0.0
    %3231 = vmatpush1.xpose.msra.mxu0 %v3196
    %3232 = vmatprep.subr.mxu0 0.0
    %3233 = vmatpush2.xpose.msra.mxu0 0.0
    %3234 = vmatprep.subr.mxu0 0.0
    %3235 = vmatpush2.xpose.msra.mxu0 0.0
    %3236 = vmatprep.subr.mxu0 0.0
    %3237 = vmatpush2.xpose.msra.mxu0 0.0
    %3238 = vmatprep.subr.mxu0 0.0
    %3239 = vmatpush2.xpose.msra.mxu0 0.0
    %3240 = vmatprep.subr.mxu0 0.0
    %3241 = vmatpush2.xpose.msra.mxu0 0.0
    %3242 = vmatprep.subr.mxu0 0.0
    %3243 = vmatpush2.xpose.msra.mxu0 0.0
    %3244 = vmatprep.subr.mxu0 0.0
    %3245 = vmatpush2.xpose.msra.mxu0 0.0
    %3246 = vmatprep.subr.mxu0 0.0
    %3247 = vmatpush2.xpose.msra.mxu0 0.0
    %3248 = vmatprep.subr.mxu0 0.0
    %3249 = vmatpush2.xpose.msra.mxu0 0.0
    %3250 = vmatprep.subr.mxu0 0.0
    %3251 = vmatpush2.xpose.msra.mxu0 0.0
    %3252 = vmatprep.subr.mxu0 0.0
    %3253 = vmatpush2.xpose.msra.mxu0 0.0
    %3254 = vmatprep.subr.mxu0 0.0
    %3255 = vmatpush2.xpose.msra.mxu0 0.0
    %3256 = vmatprep.subr.mxu0 0.0
    %3257 = vmatpush2.xpose.msra.mxu0 0.0
    %3258 = vmatprep.subr.mxu0 0.0
    %3259 = vmatpush2.xpose.msra.mxu0 0.0
    %3260 = vmatprep.subr.mxu0 0.0
    %3261 = vmatpush2.xpose.msra.mxu0 0.0
    %3262 = vmatprep.subr.mxu0 0.0
    %3263 = vmatpush2.xpose.msra.mxu0 0.0
    %3264 = vmatprep.mubr.f32.mxu0 0.0
    %3265 = vmatmul.mubr.f32.gmra.mxu0 %v3192
    %v3266 = vpop.f32.mrf.mxu0
    %v3267 = vadd.f32 0.0, %v3266
    %v3268 = vpop.f32.mrf.mxu0
    %3269 = vmatprep.mubr.f32.mxu0 0.0
    %3270 = vmatmul.mubr.f32.gmra.mxu0 %v3194
    %v3271 = vpop.f32.mrf.mxu0
    %v3272 = vadd.f32 0.0, %v3271
    %v3273 = vpop.f32.mrf.mxu0
    %3274 = vdwg.mxu0
    %v3275 = vmul.f32 %v3267, 0.35355338
    %v3276 = vmul.f32 %v3272, 0.35355338
    %v3277 = vadd.f32 %v3275, %v135
    %v3278 = vadd.f32 %v3276, %v136
    %v3279 = vsel %vm396, %v3277, -inf
    %3280 = vmax.xlane.f32.xlu0 %v3279
    %v3281 = vpop.xlane.xlu0 %3280
    %v3282 = vsel %vm396, %v3278, -inf
    %3283 = vmax.xlane.f32.xlu0 %v3282
    %v3284 = vpop.xlane.xlu0 %3283
    %v3285 = vsub.f32 %v3277, %v3281
    %v3286 = vsub.f32 %v3278, %v3284
    %v3287 = vmul.f32 %v3285, 1.442695
    %v3288 = vpow.pop %v3287
    %v3289 = vmul.f32 %v3286, 1.442695
    %v3290 = vpow.pop %v3289
    %v3291 = vsel %vm396, %v3288, 0.0
    %3292 = vadd.xlane.f32.xlu0 %v3291
    %v3293 = vpop.xlane.xlu0 %3292
    %v3294 = vsel %vm396, %v3290, 0.0
    %3295 = vadd.xlane.f32.xlu0 %v3294
    %v3296 = vpop.xlane.xlu0 %3295
    %v3297 = vrcp.pop %v3293
    %v3298 = vrcp.pop %v3296
    %v3299 = vmul.f32 %v3288, %v3297
    %v3300 = vmul.f32 %v3290, %v3298
    %3301 = vrot.lane.b32.xlu0 %v2566, 40
    %v3302 = vpop.permute.xlu0 %3301
    %3303 = vrot.lane.b32.xlu0 %v2571, 40
    %v3304 = vpop.permute.xlu0 %3303
    %v3308 = vsel %vm396, %v3299, 0
    %v3311 = vsel %vm396, %v3300, 0
    %3313 = vmatprep.subr.mxu0 0.0
    %3314 = vmatpush1.msra.mxu0 0.0
    %3315 = vmatprep.subr.mxu0 0.0
    %3316 = vmatpush1.msra.mxu0 0.0
    %3317 = vmatprep.subr.mxu0 0.0
    %3318 = vmatpush1.msra.mxu0 0.0
    %3319 = vmatprep.subr.mxu0 0.0
    %3320 = vmatpush1.msra.mxu0 0.0
    %3321 = vmatprep.subr.mxu0 0.0
    %3322 = vmatpush1.msra.mxu0 0.0
    %3323 = vmatprep.subr.mxu0 0.0
    %3324 = vmatpush1.msra.mxu0 0.0
    %3325 = vmatprep.subr.mxu0 0.0
    %3326 = vmatpush1.msra.mxu0 0.0
    %3327 = vmatprep.subr.mxu0 0.0
    %3328 = vmatpush1.msra.mxu0 0.0
    %3329 = vmatprep.subr.mxu0 0.0
    %3330 = vmatpush1.msra.mxu0 0.0
    %3331 = vmatprep.subr.mxu0 0.0
    %3332 = vmatpush1.msra.mxu0 0.0
    %3333 = vmatprep.subr.mxu0 0.0
    %3334 = vmatpush1.msra.mxu0 0.0
    %3335 = vmatprep.subr.mxu0 0.0
    %3336 = vmatpush1.msra.mxu0 0.0
    %3337 = vmatprep.subr.mxu0 0.0
    %3338 = vmatpush1.msra.mxu0 0.0
    %3339 = vmatprep.subr.mxu0 0.0
    %3340 = vmatpush1.msra.mxu0 0.0
    %3341 = vmatprep.subr.mxu0 0.0
    %3342 = vmatpush1.msra.mxu0 %v3304
    %3343 = vmatprep.subr.mxu0 0.0
    %3344 = vmatpush1.msra.mxu0 %v3302
    %3345 = vmatprep.subr.mxu0 0.0
    %3346 = vmatpush2.msra.mxu0 0.0
    %3347 = vmatprep.subr.mxu0 0.0
    %3348 = vmatpush2.msra.mxu0 0.0
    %3349 = vmatprep.subr.mxu0 0.0
    %3350 = vmatpush2.msra.mxu0 0.0
    %3351 = vmatprep.subr.mxu0 0.0
    %3352 = vmatpush2.msra.mxu0 0.0
    %3353 = vmatprep.subr.mxu0 0.0
    %3354 = vmatpush2.msra.mxu0 0.0
    %3355 = vmatprep.subr.mxu0 0.0
    %3356 = vmatpush2.msra.mxu0 0.0
    %3357 = vmatprep.subr.mxu0 0.0
    %3358 = vmatpush2.msra.mxu0 0.0
    %3359 = vmatprep.subr.mxu0 0.0
    %3360 = vmatpush2.msra.mxu0 0.0
    %3361 = vmatprep.subr.mxu0 0.0
    %3362 = vmatpush2.msra.mxu0 0.0
    %3363 = vmatprep.subr.mxu0 0.0
    %3364 = vmatpush2.msra.mxu0 0.0
    %3365 = vmatprep.subr.mxu0 0.0
    %3366 = vmatpush2.msra.mxu0 0.0
    %3367 = vmatprep.subr.mxu0 0.0
    %3368 = vmatpush2.msra.mxu0 0.0
    %3369 = vmatprep.subr.mxu0 0.0
    %3370 = vmatpush2.msra.mxu0 0.0
    %3371 = vmatprep.subr.mxu0 0.0
    %3372 = vmatpush2.msra.mxu0 0.0
    %3373 = vmatprep.subr.mxu0 0.0
    %3374 = vmatpush2.msra.mxu0 0.0
    %3375 = vmatprep.subr.mxu0 0.0
    %3376 = vmatpush2.msra.mxu0 0.0
    %3377 = vmatprep.mubr.f32.mxu0 0.0
    %3378 = vmatmul.mubr.f32.gmra.mxu0 %v3308
    %v3379 = vpop.f32.mrf.mxu0
    %v3380 = vadd.f32 0.0, %v3379
    %v3381 = vpop.f32.mrf.mxu0
    %3382 = vmatprep.mubr.f32.mxu0 0.0
    %3383 = vmatmul.mubr.f32.gmra.mxu0 %v3311
    %v3384 = vpop.f32.mrf.mxu0
    %v3385 = vadd.f32 0.0, %v3384
    %v3386 = vpop.f32.mrf.mxu0
    %3387 = vdwg.mxu0
    %3390 = vrot.lane.b32.xlu0 %v2972, 8
    %v3391 = vpop.permute.xlu0 %3390
    %3392 = vrot.lane.b32.xlu0 %v2977, 8
    %v3393 = vpop.permute.xlu0 %3392
    %3398 = vrot.lane.b32.xlu0 %v3176, 16
    %v3399 = vpop.permute.xlu0 %3398
    %3400 = vrot.lane.b32.xlu0 %v3181, 16
    %v3401 = vpop.permute.xlu0 %3400
    %3406 = vrot.lane.b32.xlu0 %v3380, 24
    %v3407 = vpop.permute.xlu0 %3406
    %3408 = vrot.lane.b32.xlu0 %v3385, 24
    %v3409 = vpop.permute.xlu0 %3408
    %v3412 = vsel %vm308, %v2768, %v3391
    %v3413 = vsel %vm308, %v2773, %v3393
    %v3414 = vsel %vm396, %v3412, %v3399
    %v3415 = vsel %vm396, %v3413, %v3401
    %v3416 = vsel %vm1146, %v3414, %v3407
    %v3417 = vsel %vm1146, %v3415, %v3409
    %v3419 = vsel %vm220, %v3416, 0
    %v3422 = vsel %vm220, %v3417, 0
    %3424 = vmatprep.subr.mxu0 0.0
    %3425 = vmatpush1.msra.mxu0 0.0
    %3426 = vmatprep.subr.mxu0 0.0
    %3427 = vmatpush1.msra.mxu0 0.0
    %3428 = vmatprep.subr.mxu0 0.0
    %3429 = vmatpush1.msra.mxu0 0.0
    %3430 = vmatprep.subr.mxu0 0.0
    %3431 = vmatpush1.msra.mxu0 0.0
    %3432 = vmatprep.subr.mxu0 0.0
    %3433 = vmatpush1.msra.mxu0 0.0
    %3434 = vmatprep.subr.mxu0 0.0
    %3435 = vmatpush1.msra.mxu0 0.0
    %3436 = vmatprep.subr.mxu0 0.0
    %3437 = vmatpush1.msra.mxu0 0.0
    %3438 = vmatprep.subr.mxu0 0.0
    %3439 = vmatpush1.msra.mxu0 0.0
    %3440 = vmatprep.subr.mxu0 0.0
    %3441 = vmatpush1.msra.mxu0 0.0
    %3442 = vmatprep.subr.mxu0 0.0
    %3443 = vmatpush1.msra.mxu0 0.0
    %3444 = vmatprep.subr.mxu0 0.0
    %3445 = vmatpush1.msra.mxu0 0.0
    %3446 = vmatprep.subr.mxu0 0.0
    %3447 = vmatpush1.msra.mxu0 0.0
    %3448 = vmatprep.subr.mxu0 0.0
    %3449 = vmatpush1.msra.mxu0 %v145
    %3450 = vmatprep.subr.mxu0 0.0
    %3451 = vmatpush1.msra.mxu0 %v144
    %3452 = vmatprep.subr.mxu0 0.0
    %3453 = vmatpush1.msra.mxu0 %v143
    %3454 = vmatprep.subr.mxu0 0.0
    %3455 = vmatpush1.msra.mxu0 %v142
    %3456 = vmatprep.subr.mxu0 0.0
    %3457 = vmatpush2.msra.mxu0 0.0
    %3458 = vmatprep.subr.mxu0 0.0
    %3459 = vmatpush2.msra.mxu0 0.0
    %3460 = vmatprep.subr.mxu0 0.0
    %3461 = vmatpush2.msra.mxu0 0.0
    %3462 = vmatprep.subr.mxu0 0.0
    %3463 = vmatpush2.msra.mxu0 0.0
    %3464 = vmatprep.subr.mxu0 0.0
    %3465 = vmatpush2.msra.mxu0 0.0
    %3466 = vmatprep.subr.mxu0 0.0
    %3467 = vmatpush2.msra.mxu0 0.0
    %3468 = vmatprep.subr.mxu0 0.0
    %3469 = vmatpush2.msra.mxu0 0.0
    %3470 = vmatprep.subr.mxu0 0.0
    %3471 = vmatpush2.msra.mxu0 0.0
    %3472 = vmatprep.subr.mxu0 0.0
    %3473 = vmatpush2.msra.mxu0 0.0
    %3474 = vmatprep.subr.mxu0 0.0
    %3475 = vmatpush2.msra.mxu0 0.0
    %3476 = vmatprep.subr.mxu0 0.0
    %3477 = vmatpush2.msra.mxu0 0.0
    %3478 = vmatprep.subr.mxu0 0.0
    %3479 = vmatpush2.msra.mxu0 0.0
    %3480 = vmatprep.subr.mxu0 0.0
    %3481 = vmatpush2.msra.mxu0 0.0
    %3482 = vmatprep.subr.mxu0 0.0
    %3483 = vmatpush2.msra.mxu0 0.0
    %3484 = vmatprep.subr.mxu0 0.0
    %3485 = vmatpush2.msra.mxu0 0.0
    %3486 = vmatprep.subr.mxu0 0.0
    %3487 = vmatpush2.msra.mxu0 0.0
    %3488 = vmatprep.mubr.f32.mxu0 0.0
    %3489 = vmatmul.mubr.f32.gmra.mxu0 %v3419
    %v3490 = vpop.f32.mrf.mxu0
    %v3491 = vadd.f32 %v1153, %v3490
    %v3492 = vpop.f32.mrf.mxu0
    %3493 = vmatprep.mubr.f32.mxu0 0.0
    %3494 = vmatmul.mubr.f32.gmra.mxu0 %v3422
    %v3495 = vpop.f32.mrf.mxu0
    %v3496 = vadd.f32 %v1153, %v3495
    %v3497 = vpop.f32.mrf.mxu0
    %3498 = vdwg.mxu0
    %v3499 = vadd.f32 %v2491, %v3491
    %v3500 = vadd.f32 %v2492, %v3496
    %v3501 = vsel %vm220, %v3499, 0.0
    %3502 = vadd.xlane.f32.xlu0 %v3501
    %v3503 = vpop.xlane.xlu0 %3502
    %v3504 = vsel %vm220, %v3500, 0.0
    %3505 = vadd.xlane.f32.xlu0 %v3504
    %v3506 = vpop.xlane.xlu0 %3505
    %v3507 = vmul.f32 %v3503, %v1247
    %v3508 = vmul.f32 %v3506, %v1247
    %v3509 = vsub.f32 %v3499, %v3507
    %v3510 = vsub.f32 %v3500, %v3508
    %v3511 = vmul.f32 %v3509, %v3509
    %v3512 = vmul.f32 %v3510, %v3510
    %v3513 = vsel %vm220, %v3511, 0.0
    %3514 = vadd.xlane.f32.xlu0 %v3513
    %v3515 = vpop.xlane.xlu0 %3514
    %v3516 = vsel %vm220, %v3512, 0.0
    %3517 = vadd.xlane.f32.xlu0 %v3516
    %v3518 = vpop.xlane.xlu0 %3517
    %v3519 = vmul.f32 %v3515, %v1260
    %v3520 = vmul.f32 %v3518, %v1260
    %v3521 = vrsqrt.pop %v3519
    %v3522 = vmul.f32 %v3519, %v3521
    %vm3523 = vcmp.eq.f32.partialorder %v3519, inf
    %v3524 = vsel %vm3523, %v3519, %v3522
    %vm3525 = vcmp.eq.f32.partialorder %v3519, 0.0
    %v3526 = vand.u32 %v3519, 2147483648
    %v3527 = vsel %vm3525, %v3526, %v3524
    %v3528 = vrsqrt.pop %v3520
    %v3529 = vmul.f32 %v3520, %v3528
    %vm3530 = vcmp.eq.f32.partialorder %v3520, inf
    %v3531 = vsel %vm3530, %v3520, %v3529
    %vm3532 = vcmp.eq.f32.partialorder %v3520, 0.0
    %v3533 = vand.u32 %v3520, 2147483648
    %v3534 = vsel %vm3532, %v3533, %v3531
    %v3535 = vadd.f32 %v3527, 1e-06
    %v3536 = vadd.f32 %v3534, 1e-06
    %v3537 = vrcp.pop %v3535
    %v3538 = vrcp.pop %v3536
    %v3539 = vmul.f32 %v3509, %v3537
    %v3540 = vmul.f32 %v3510, %v3538
    %v3541 = vmul.f32 %v1287, %v3539
    %v3542 = vmul.f32 %v1287, %v3540
    %v3543 = vadd.f32 %v3541, %v1295
    %v3544 = vadd.f32 %v3542, %v1295
    %v3545 = vpack.c.bf16 %v3544, %v3543
    %v3547 = vsel %vm220, %v3545, 0
    %3549 = vmatprep.subr.bf16.mxu0 0
    %3550 = vmatpush1.bf16.msra.mxu0 0
    %3551 = vmatprep.subr.bf16.mxu0 0
    %3552 = vmatpush1.bf16.msra.mxu0 0
    %3553 = vmatprep.subr.bf16.mxu0 0
    %3554 = vmatpush1.bf16.msra.mxu0 0
    %3555 = vmatprep.subr.bf16.mxu0 0
    %3556 = vmatpush1.bf16.msra.mxu0 0
    %3557 = vmatprep.subr.bf16.mxu0 0
    %3558 = vmatpush1.bf16.msra.mxu0 0
    %3559 = vmatprep.subr.bf16.mxu0 0
    %3560 = vmatpush1.bf16.msra.mxu0 0
    %3561 = vmatprep.subr.bf16.mxu0 %v1495
    %3562 = vmatpush1.bf16.msra.mxu0 %v1494
    %3563 = vmatprep.subr.bf16.mxu0 %v1479
    %3564 = vmatpush1.bf16.msra.mxu0 %v1478
    %3565 = vmatprep.subr.bf16.mxu0 0
    %3566 = vmatpush2.bf16.msra.mxu0 0
    %3567 = vmatprep.subr.bf16.mxu0 0
    %3568 = vmatpush2.bf16.msra.mxu0 0
    %3569 = vmatprep.subr.bf16.mxu0 0
    %3570 = vmatpush2.bf16.msra.mxu0 0
    %3571 = vmatprep.subr.bf16.mxu0 0
    %3572 = vmatpush2.bf16.msra.mxu0 0
    %3573 = vmatprep.subr.bf16.mxu0 0
    %3574 = vmatpush2.bf16.msra.mxu0 0
    %3575 = vmatprep.subr.bf16.mxu0 0
    %3576 = vmatpush2.bf16.msra.mxu0 0
    %3577 = vmatprep.subr.bf16.mxu0 0
    %3578 = vmatpush2.bf16.msra.mxu0 0
    %3579 = vmatprep.subr.bf16.mxu0 0
    %3580 = vmatpush2.bf16.msra.mxu0 0
    %3581 = vmatprep.mubr.bf16.mxu0 0
    %3582 = vmatmul.mubr.bf16.gmra.mxu0 %v3547
    %v3583 = vpop.f32.mrf.mxu0
    %v3584 = vadd.f32 %v1305, %v3583
    %v3585 = vpop.f32.mrf.mxu0
    %v3586 = vadd.f32 %v1309, %v3585
    %v3587 = vpop.f32.mrf.mxu0
    %v3588 = vadd.f32 %v1305, %v3587
    %v3589 = vpop.f32.mrf.mxu0
    %v3590 = vadd.f32 %v1309, %v3589
    %3591 = vdwg.mxu0
    %3592 = vmatprep.subr.bf16.mxu0 0
    %3593 = vmatpush1.bf16.msra.mxu0 0
    %3594 = vmatprep.subr.bf16.mxu0 0
    %3595 = vmatpush1.bf16.msra.mxu0 0
    %3596 = vmatprep.subr.bf16.mxu0 0
    %3597 = vmatpush1.bf16.msra.mxu0 0
    %3598 = vmatprep.subr.bf16.mxu0 0
    %3599 = vmatpush1.bf16.msra.mxu0 0
    %3600 = vmatprep.subr.bf16.mxu0 0
    %3601 = vmatpush1.bf16.msra.mxu0 0
    %3602 = vmatprep.subr.bf16.mxu0 0
    %3603 = vmatpush1.bf16.msra.mxu0 0
    %3604 = vmatprep.subr.bf16.mxu0 %v1497
    %3605 = vmatpush1.bf16.msra.mxu0 %v1496
    %3606 = vmatprep.subr.bf16.mxu0 %v1481
    %3607 = vmatpush1.bf16.msra.mxu0 %v1480
    %3608 = vmatprep.subr.bf16.mxu0 0
    %3609 = vmatpush2.bf16.msra.mxu0 0
    %3610 = vmatprep.subr.bf16.mxu0 0
    %3611 = vmatpush2.bf16.msra.mxu0 0
    %3612 = vmatprep.subr.bf16.mxu0 0
    %3613 = vmatpush2.bf16.msra.mxu0 0
    %3614 = vmatprep.subr.bf16.mxu0 0
    %3615 = vmatpush2.bf16.msra.mxu0 0
    %3616 = vmatprep.subr.bf16.mxu0 0
    %3617 = vmatpush2.bf16.msra.mxu0 0
    %3618 = vmatprep.subr.bf16.mxu0 0
    %3619 = vmatpush2.bf16.msra.mxu0 0
    %3620 = vmatprep.subr.bf16.mxu0 0
    %3621 = vmatpush2.bf16.msra.mxu0 0
    %3622 = vmatprep.subr.bf16.mxu0 0
    %3623 = vmatpush2.bf16.msra.mxu0 0
    %3624 = vmatprep.mubr.bf16.mxu0 0
    %3625 = vmatmul.mubr.bf16.gmra.mxu0 %v3547
    %v3626 = vpop.f32.mrf.mxu0
    %v3627 = vadd.f32 %v1313, %v3626
    %v3628 = vpop.f32.mrf.mxu0
    %v3629 = vadd.f32 %v1317, %v3628
    %v3630 = vpop.f32.mrf.mxu0
    %v3631 = vadd.f32 %v1313, %v3630
    %v3632 = vpop.f32.mrf.mxu0
    %v3633 = vadd.f32 %v1317, %v3632
    %3634 = vdwg.mxu0
    %3635 = vmatprep.subr.bf16.mxu0 0
    %3636 = vmatpush1.bf16.msra.mxu0 0
    %3637 = vmatprep.subr.bf16.mxu0 0
    %3638 = vmatpush1.bf16.msra.mxu0 0
    %3639 = vmatprep.subr.bf16.mxu0 0
    %3640 = vmatpush1.bf16.msra.mxu0 0
    %3641 = vmatprep.subr.bf16.mxu0 0
    %3642 = vmatpush1.bf16.msra.mxu0 0
    %3643 = vmatprep.subr.bf16.mxu0 0
    %3644 = vmatpush1.bf16.msra.mxu0 0
    %3645 = vmatprep.subr.bf16.mxu0 0
    %3646 = vmatpush1.bf16.msra.mxu0 0
    %3647 = vmatprep.subr.bf16.mxu0 %v1499
    %3648 = vmatpush1.bf16.msra.mxu0 %v1498
    %3649 = vmatprep.subr.bf16.mxu0 %v1483
    %3650 = vmatpush1.bf16.msra.mxu0 %v1482
    %3651 = vmatprep.subr.bf16.mxu0 0
    %3652 = vmatpush2.bf16.msra.mxu0 0
    %3653 = vmatprep.subr.bf16.mxu0 0
    %3654 = vmatpush2.bf16.msra.mxu0 0
    %3655 = vmatprep.subr.bf16.mxu0 0
    %3656 = vmatpush2.bf16.msra.mxu0 0
    %3657 = vmatprep.subr.bf16.mxu0 0
    %3658 = vmatpush2.bf16.msra.mxu0 0
    %3659 = vmatprep.subr.bf16.mxu0 0
    %3660 = vmatpush2.bf16.msra.mxu0 0
    %3661 = vmatprep.subr.bf16.mxu0 0
    %3662 = vmatpush2.bf16.msra.mxu0 0
    %3663 = vmatprep.subr.bf16.mxu0 0
    %3664 = vmatpush2.bf16.msra.mxu0 0
    %3665 = vmatprep.subr.bf16.mxu0 0
    %3666 = vmatpush2.bf16.msra.mxu0 0
    %3667 = vmatprep.mubr.bf16.mxu0 0
    %3668 = vmatmul.mubr.bf16.gmra.mxu0 %v3547
    %v3669 = vpop.f32.mrf.mxu0
    %v3670 = vadd.f32 %v1321, %v3669
    %v3671 = vpop.f32.mrf.mxu0
    %v3672 = vadd.f32 %v1325, %v3671
    %v3673 = vpop.f32.mrf.mxu0
    %v3674 = vadd.f32 %v1321, %v3673
    %v3675 = vpop.f32.mrf.mxu0
    %v3676 = vadd.f32 %v1325, %v3675
    %3677 = vdwg.mxu0
    %3678 = vmatprep.subr.bf16.mxu0 0
    %3679 = vmatpush1.bf16.msra.mxu0 0
    %3680 = vmatprep.subr.bf16.mxu0 0
    %3681 = vmatpush1.bf16.msra.mxu0 0
    %3682 = vmatprep.subr.bf16.mxu0 0
    %3683 = vmatpush1.bf16.msra.mxu0 0
    %3684 = vmatprep.subr.bf16.mxu0 0
    %3685 = vmatpush1.bf16.msra.mxu0 0
    %3686 = vmatprep.subr.bf16.mxu0 0
    %3687 = vmatpush1.bf16.msra.mxu0 0
    %3688 = vmatprep.subr.bf16.mxu0 0
    %3689 = vmatpush1.bf16.msra.mxu0 0
    %3690 = vmatprep.subr.bf16.mxu0 %v1501
    %3691 = vmatpush1.bf16.msra.mxu0 %v1500
    %3692 = vmatprep.subr.bf16.mxu0 %v1485
    %3693 = vmatpush1.bf16.msra.mxu0 %v1484
    %3694 = vmatprep.subr.bf16.mxu0 0
    %3695 = vmatpush2.bf16.msra.mxu0 0
    %3696 = vmatprep.subr.bf16.mxu0 0
    %3697 = vmatpush2.bf16.msra.mxu0 0
    %3698 = vmatprep.subr.bf16.mxu0 0
    %3699 = vmatpush2.bf16.msra.mxu0 0
    %3700 = vmatprep.subr.bf16.mxu0 0
    %3701 = vmatpush2.bf16.msra.mxu0 0
    %3702 = vmatprep.subr.bf16.mxu0 0
    %3703 = vmatpush2.bf16.msra.mxu0 0
    %3704 = vmatprep.subr.bf16.mxu0 0
    %3705 = vmatpush2.bf16.msra.mxu0 0
    %3706 = vmatprep.subr.bf16.mxu0 0
    %3707 = vmatpush2.bf16.msra.mxu0 0
    %3708 = vmatprep.subr.bf16.mxu0 0
    %3709 = vmatpush2.bf16.msra.mxu0 0
    %3710 = vmatprep.mubr.bf16.mxu0 0
    %3711 = vmatmul.mubr.bf16.gmra.mxu0 %v3547
    %v3712 = vpop.f32.mrf.mxu0
    %v3713 = vadd.f32 %v1329, %v3712
    %v3714 = vpop.f32.mrf.mxu0
    %v3715 = vadd.f32 %v1333, %v3714
    %v3716 = vpop.f32.mrf.mxu0
    %v3717 = vadd.f32 %v1329, %v3716
    %v3718 = vpop.f32.mrf.mxu0
    %v3719 = vadd.f32 %v1333, %v3718
    %3720 = vdwg.mxu0
    %3721 = vmatprep.subr.bf16.mxu0 0
    %3722 = vmatpush1.bf16.msra.mxu0 0
    %3723 = vmatprep.subr.bf16.mxu0 0
    %3724 = vmatpush1.bf16.msra.mxu0 0
    %3725 = vmatprep.subr.bf16.mxu0 0
    %3726 = vmatpush1.bf16.msra.mxu0 0
    %3727 = vmatprep.subr.bf16.mxu0 0
    %3728 = vmatpush1.bf16.msra.mxu0 0
    %3729 = vmatprep.subr.bf16.mxu0 0
    %3730 = vmatpush1.bf16.msra.mxu0 0
    %3731 = vmatprep.subr.bf16.mxu0 0
    %3732 = vmatpush1.bf16.msra.mxu0 0
    %3733 = vmatprep.subr.bf16.mxu0 %v1503
    %3734 = vmatpush1.bf16.msra.mxu0 %v1502
    %3735 = vmatprep.subr.bf16.mxu0 %v1487
    %3736 = vmatpush1.bf16.msra.mxu0 %v1486
    %3737 = vmatprep.subr.bf16.mxu0 0
    %3738 = vmatpush2.bf16.msra.mxu0 0
    %3739 = vmatprep.subr.bf16.mxu0 0
    %3740 = vmatpush2.bf16.msra.mxu0 0
    %3741 = vmatprep.subr.bf16.mxu0 0
    %3742 = vmatpush2.bf16.msra.mxu0 0
    %3743 = vmatprep.subr.bf16.mxu0 0
    %3744 = vmatpush2.bf16.msra.mxu0 0
    %3745 = vmatprep.subr.bf16.mxu0 0
    %3746 = vmatpush2.bf16.msra.mxu0 0
    %3747 = vmatprep.subr.bf16.mxu0 0
    %3748 = vmatpush2.bf16.msra.mxu0 0
    %3749 = vmatprep.subr.bf16.mxu0 0
    %3750 = vmatpush2.bf16.msra.mxu0 0
    %3751 = vmatprep.subr.bf16.mxu0 0
    %3752 = vmatpush2.bf16.msra.mxu0 0
    %3753 = vmatprep.mubr.bf16.mxu0 0
    %3754 = vmatmul.mubr.bf16.gmra.mxu0 %v3547
    %v3755 = vpop.f32.mrf.mxu0
    %v3756 = vadd.f32 %v1337, %v3755
    %v3757 = vpop.f32.mrf.mxu0
    %v3758 = vadd.f32 %v1341, %v3757
    %v3759 = vpop.f32.mrf.mxu0
    %v3760 = vadd.f32 %v1337, %v3759
    %v3761 = vpop.f32.mrf.mxu0
    %v3762 = vadd.f32 %v1341, %v3761
    %3763 = vdwg.mxu0
    %3764 = vmatprep.subr.bf16.mxu0 0
    %3765 = vmatpush1.bf16.msra.mxu0 0
    %3766 = vmatprep.subr.bf16.mxu0 0
    %3767 = vmatpush1.bf16.msra.mxu0 0
    %3768 = vmatprep.subr.bf16.mxu0 0
    %3769 = vmatpush1.bf16.msra.mxu0 0
    %3770 = vmatprep.subr.bf16.mxu0 0
    %3771 = vmatpush1.bf16.msra.mxu0 0
    %3772 = vmatprep.subr.bf16.mxu0 0
    %3773 = vmatpush1.bf16.msra.mxu0 0
    %3774 = vmatprep.subr.bf16.mxu0 0
    %3775 = vmatpush1.bf16.msra.mxu0 0
    %3776 = vmatprep.subr.bf16.mxu0 %v1505
    %3777 = vmatpush1.bf16.msra.mxu0 %v1504
    %3778 = vmatprep.subr.bf16.mxu0 %v1489
    %3779 = vmatpush1.bf16.msra.mxu0 %v1488
    %3780 = vmatprep.subr.bf16.mxu0 0
    %3781 = vmatpush2.bf16.msra.mxu0 0
    %3782 = vmatprep.subr.bf16.mxu0 0
    %3783 = vmatpush2.bf16.msra.mxu0 0
    %3784 = vmatprep.subr.bf16.mxu0 0
    %3785 = vmatpush2.bf16.msra.mxu0 0
    %3786 = vmatprep.subr.bf16.mxu0 0
    %3787 = vmatpush2.bf16.msra.mxu0 0
    %3788 = vmatprep.subr.bf16.mxu0 0
    %3789 = vmatpush2.bf16.msra.mxu0 0
    %3790 = vmatprep.subr.bf16.mxu0 0
    %3791 = vmatpush2.bf16.msra.mxu0 0
    %3792 = vmatprep.subr.bf16.mxu0 0
    %3793 = vmatpush2.bf16.msra.mxu0 0
    %3794 = vmatprep.subr.bf16.mxu0 0
    %3795 = vmatpush2.bf16.msra.mxu0 0
    %3796 = vmatprep.mubr.bf16.mxu0 0
    %3797 = vmatmul.mubr.bf16.gmra.mxu0 %v3547
    %v3798 = vpop.f32.mrf.mxu0
    %v3799 = vadd.f32 %v1345, %v3798
    %v3800 = vpop.f32.mrf.mxu0
    %v3801 = vadd.f32 %v1349, %v3800
    %v3802 = vpop.f32.mrf.mxu0
    %v3803 = vadd.f32 %v1345, %v3802
    %v3804 = vpop.f32.mrf.mxu0
    %v3805 = vadd.f32 %v1349, %v3804
    %3806 = vdwg.mxu0
    %3807 = vmatprep.subr.bf16.mxu0 0
    %3808 = vmatpush1.bf16.msra.mxu0 0
    %3809 = vmatprep.subr.bf16.mxu0 0
    %3810 = vmatpush1.bf16.msra.mxu0 0
    %3811 = vmatprep.subr.bf16.mxu0 0
    %3812 = vmatpush1.bf16.msra.mxu0 0
    %3813 = vmatprep.subr.bf16.mxu0 0
    %3814 = vmatpush1.bf16.msra.mxu0 0
    %3815 = vmatprep.subr.bf16.mxu0 0
    %3816 = vmatpush1.bf16.msra.mxu0 0
    %3817 = vmatprep.subr.bf16.mxu0 0
    %3818 = vmatpush1.bf16.msra.mxu0 0
    %3819 = vmatprep.subr.bf16.mxu0 %v1507
    %3820 = vmatpush1.bf16.msra.mxu0 %v1506
    %3821 = vmatprep.subr.bf16.mxu0 %v1491
    %3822 = vmatpush1.bf16.msra.mxu0 %v1490
    %3823 = vmatprep.subr.bf16.mxu0 0
    %3824 = vmatpush2.bf16.msra.mxu0 0
    %3825 = vmatprep.subr.bf16.mxu0 0
    %3826 = vmatpush2.bf16.msra.mxu0 0
    %3827 = vmatprep.subr.bf16.mxu0 0
    %3828 = vmatpush2.bf16.msra.mxu0 0
    %3829 = vmatprep.subr.bf16.mxu0 0
    %3830 = vmatpush2.bf16.msra.mxu0 0
    %3831 = vmatprep.subr.bf16.mxu0 0
    %3832 = vmatpush2.bf16.msra.mxu0 0
    %3833 = vmatprep.subr.bf16.mxu0 0
    %3834 = vmatpush2.bf16.msra.mxu0 0
    %3835 = vmatprep.subr.bf16.mxu0 0
    %3836 = vmatpush2.bf16.msra.mxu0 0
    %3837 = vmatprep.subr.bf16.mxu0 0
    %3838 = vmatpush2.bf16.msra.mxu0 0
    %3839 = vmatprep.mubr.bf16.mxu0 0
    %3840 = vmatmul.mubr.bf16.gmra.mxu0 %v3547
    %v3841 = vpop.f32.mrf.mxu0
    %v3842 = vadd.f32 %v1353, %v3841
    %v3843 = vpop.f32.mrf.mxu0
    %v3844 = vadd.f32 %v1357, %v3843
    %v3845 = vpop.f32.mrf.mxu0
    %v3846 = vadd.f32 %v1353, %v3845
    %v3847 = vpop.f32.mrf.mxu0
    %v3848 = vadd.f32 %v1357, %v3847
    %3849 = vdwg.mxu0
    %3850 = vmatprep.subr.bf16.mxu0 0
    %3851 = vmatpush1.bf16.msra.mxu0 0
    %3852 = vmatprep.subr.bf16.mxu0 0
    %3853 = vmatpush1.bf16.msra.mxu0 0
    %3854 = vmatprep.subr.bf16.mxu0 0
    %3855 = vmatpush1.bf16.msra.mxu0 0
    %3856 = vmatprep.subr.bf16.mxu0 0
    %3857 = vmatpush1.bf16.msra.mxu0 0
    %3858 = vmatprep.subr.bf16.mxu0 0
    %3859 = vmatpush1.bf16.msra.mxu0 0
    %3860 = vmatprep.subr.bf16.mxu0 0
    %3861 = vmatpush1.bf16.msra.mxu0 0
    %3862 = vmatprep.subr.bf16.mxu0 %v1509
    %3863 = vmatpush1.bf16.msra.mxu0 %v1508
    %3864 = vmatprep.subr.bf16.mxu0 %v1493
    %3865 = vmatpush1.bf16.msra.mxu0 %v1492
    %3866 = vmatprep.subr.bf16.mxu0 0
    %3867 = vmatpush2.bf16.msra.mxu0 0
    %3868 = vmatprep.subr.bf16.mxu0 0
    %3869 = vmatpush2.bf16.msra.mxu0 0
    %3870 = vmatprep.subr.bf16.mxu0 0
    %3871 = vmatpush2.bf16.msra.mxu0 0
    %3872 = vmatprep.subr.bf16.mxu0 0
    %3873 = vmatpush2.bf16.msra.mxu0 0
    %3874 = vmatprep.subr.bf16.mxu0 0
    %3875 = vmatpush2.bf16.msra.mxu0 0
    %3876 = vmatprep.subr.bf16.mxu0 0
    %3877 = vmatpush2.bf16.msra.mxu0 0
    %3878 = vmatprep.subr.bf16.mxu0 0
    %3879 = vmatpush2.bf16.msra.mxu0 0
    %3880 = vmatprep.subr.bf16.mxu0 0
    %3881 = vmatpush2.bf16.msra.mxu0 0
    %3882 = vmatprep.mubr.bf16.mxu0 0
    %3883 = vmatmul.mubr.bf16.gmra.mxu0 %v3547
    %v3884 = vpop.f32.mrf.mxu0
    %v3885 = vadd.f32 %v1361, %v3884
    %v3886 = vpop.f32.mrf.mxu0
    %v3887 = vadd.f32 %v1365, %v3886
    %v3888 = vpop.f32.mrf.mxu0
    %v3889 = vadd.f32 %v1361, %v3888
    %v3890 = vpop.f32.mrf.mxu0
    %v3891 = vadd.f32 %v1365, %v3890
    %3892 = vdwg.mxu0
    %v3893 = vmax.f32 %v3584, 0.0
    %v3894 = vmax.f32 %v3586, 0.0
    %v3895 = vmax.f32 %v3627, 0.0
    %v3896 = vmax.f32 %v3629, 0.0
    %v3897 = vmax.f32 %v3670, 0.0
    %v3898 = vmax.f32 %v3672, 0.0
    %v3899 = vmax.f32 %v3713, 0.0
    %v3900 = vmax.f32 %v3715, 0.0
    %v3901 = vmax.f32 %v3756, 0.0
    %v3902 = vmax.f32 %v3758, 0.0
    %v3903 = vmax.f32 %v3799, 0.0
    %v3904 = vmax.f32 %v3801, 0.0
    %v3905 = vmax.f32 %v3842, 0.0
    %v3906 = vmax.f32 %v3844, 0.0
    %v3907 = vmax.f32 %v3885, 0.0
    %v3908 = vmax.f32 %v3887, 0.0
    %v3909 = vmax.f32 %v3588, 0.0
    %v3910 = vmax.f32 %v3590, 0.0
    %v3911 = vmax.f32 %v3631, 0.0
    %v3912 = vmax.f32 %v3633, 0.0
    %v3913 = vmax.f32 %v3674, 0.0
    %v3914 = vmax.f32 %v3676, 0.0
    %v3915 = vmax.f32 %v3717, 0.0
    %v3916 = vmax.f32 %v3719, 0.0
    %v3917 = vmax.f32 %v3760, 0.0
    %v3918 = vmax.f32 %v3762, 0.0
    %v3919 = vmax.f32 %v3803, 0.0
    %v3920 = vmax.f32 %v3805, 0.0
    %v3921 = vmax.f32 %v3846, 0.0
    %v3922 = vmax.f32 %v3848, 0.0
    %v3923 = vmax.f32 %v3889, 0.0
    %v3924 = vmax.f32 %v3891, 0.0
    %v3925 = vpack.c.bf16 %v3909, %v3893
    %v3926 = vpack.c.bf16 %v3910, %v3894
    %v3927 = vpack.c.bf16 %v3911, %v3895
    %v3928 = vpack.c.bf16 %v3912, %v3896
    %v3929 = vpack.c.bf16 %v3913, %v3897
    %v3930 = vpack.c.bf16 %v3914, %v3898
    %v3931 = vpack.c.bf16 %v3915, %v3899
    %v3932 = vpack.c.bf16 %v3916, %v3900
    %v3933 = vpack.c.bf16 %v3917, %v3901
    %v3934 = vpack.c.bf16 %v3918, %v3902
    %v3935 = vpack.c.bf16 %v3919, %v3903
    %v3936 = vpack.c.bf16 %v3920, %v3904
    %v3937 = vpack.c.bf16 %v3921, %v3905
    %v3938 = vpack.c.bf16 %v3922, %v3906
    %v3939 = vpack.c.bf16 %v3923, %v3907
    %v3940 = vpack.c.bf16 %v3924, %v3908
    %3941 = vmatprep.subr.bf16.mxu0 0
    %3942 = vmatpush1.bf16.xpose.msra.mxu0 0
    %3943 = vmatprep.subr.bf16.mxu0 0
    %3944 = vmatpush1.bf16.xpose.msra.mxu0 0
    %3945 = vmatprep.subr.bf16.mxu0 0
    %3946 = vmatpush1.bf16.xpose.msra.mxu0 0
    %3947 = vmatprep.subr.bf16.mxu0 0
    %3948 = vmatpush1.bf16.xpose.msra.mxu0 0
    %3949 = vmatprep.subr.bf16.mxu0 0
    %3950 = vmatpush1.bf16.xpose.msra.mxu0 0
    %3951 = vmatprep.subr.bf16.mxu0 0
    %3952 = vmatpush1.bf16.xpose.msra.mxu0 0
    %3953 = vmatprep.subr.bf16.mxu0 %v2056
    %3954 = vmatpush1.bf16.xpose.msra.mxu0 %v2055
    %3955 = vmatprep.subr.bf16.mxu0 %v2040
    %3956 = vmatpush1.bf16.xpose.msra.mxu0 %v2039
    %3957 = vmatprep.subr.bf16.mxu0 0
    %3958 = vmatpush2.bf16.xpose.msra.mxu0 0
    %3959 = vmatprep.subr.bf16.mxu0 0
    %3960 = vmatpush2.bf16.xpose.msra.mxu0 0
    %3961 = vmatprep.subr.bf16.mxu0 0
    %3962 = vmatpush2.bf16.xpose.msra.mxu0 0
    %3963 = vmatprep.subr.bf16.mxu0 0
    %3964 = vmatpush2.bf16.xpose.msra.mxu0 0
    %3965 = vmatprep.subr.bf16.mxu0 0
    %3966 = vmatpush2.bf16.xpose.msra.mxu0 0
    %3967 = vmatprep.subr.bf16.mxu0 0
    %3968 = vmatpush2.bf16.xpose.msra.mxu0 0
    %3969 = vmatprep.subr.bf16.mxu0 0
    %3970 = vmatpush2.bf16.xpose.msra.mxu0 0
    %3971 = vmatprep.subr.bf16.mxu0 0
    %3972 = vmatpush2.bf16.xpose.msra.mxu0 0
    %3973 = vmatprep.mubr.bf16.mxu0 %v3926
    %3974 = vmatmul.mubr.bf16.gmra.mxu0 %v3925
    %v3975 = vpop.f32.mrf.mxu0
    %v3976 = vadd.f32 %v1941, %v3975
    %v3977 = vpop.f32.mrf.mxu0
    %v3978 = vpop.f32.mrf.mxu0
    %v3979 = vadd.f32 %v1941, %v3978
    %v3980 = vpop.f32.mrf.mxu0
    %3981 = vdwg.mxu0
    %3982 = vmatprep.subr.bf16.mxu0 0
    %3983 = vmatpush1.bf16.xpose.msra.mxu0 0
    %3984 = vmatprep.subr.bf16.mxu0 0
    %3985 = vmatpush1.bf16.xpose.msra.mxu0 0
    %3986 = vmatprep.subr.bf16.mxu0 0
    %3987 = vmatpush1.bf16.xpose.msra.mxu0 0
    %3988 = vmatprep.subr.bf16.mxu0 0
    %3989 = vmatpush1.bf16.xpose.msra.mxu0 0
    %3990 = vmatprep.subr.bf16.mxu0 0
    %3991 = vmatpush1.bf16.xpose.msra.mxu0 0
    %3992 = vmatprep.subr.bf16.mxu0 0
    %3993 = vmatpush1.bf16.xpose.msra.mxu0 0
    %3994 = vmatprep.subr.bf16.mxu0 %v2058
    %3995 = vmatpush1.bf16.xpose.msra.mxu0 %v2057
    %3996 = vmatprep.subr.bf16.mxu0 %v2042
    %3997 = vmatpush1.bf16.xpose.msra.mxu0 %v2041
    %3998 = vmatprep.subr.bf16.mxu0 0
    %3999 = vmatpush2.bf16.xpose.msra.mxu0 0
    %4000 = vmatprep.subr.bf16.mxu0 0
    %4001 = vmatpush2.bf16.xpose.msra.mxu0 0
    %4002 = vmatprep.subr.bf16.mxu0 0
    %4003 = vmatpush2.bf16.xpose.msra.mxu0 0
    %4004 = vmatprep.subr.bf16.mxu0 0
    %4005 = vmatpush2.bf16.xpose.msra.mxu0 0
    %4006 = vmatprep.subr.bf16.mxu0 0
    %4007 = vmatpush2.bf16.xpose.msra.mxu0 0
    %4008 = vmatprep.subr.bf16.mxu0 0
    %4009 = vmatpush2.bf16.xpose.msra.mxu0 0
    %4010 = vmatprep.subr.bf16.mxu0 0
    %4011 = vmatpush2.bf16.xpose.msra.mxu0 0
    %4012 = vmatprep.subr.bf16.mxu0 0
    %4013 = vmatpush2.bf16.xpose.msra.mxu0 0
    %4014 = vmatprep.mubr.bf16.mxu0 %v3928
    %4015 = vmatmul.mubr.bf16.gmra.mxu0 %v3927
    %v4016 = vpop.f32.mrf.mxu0
    %v4017 = vadd.f32 %v3976, %v4016
    %v4018 = vpop.f32.mrf.mxu0
    %v4019 = vpop.f32.mrf.mxu0
    %v4020 = vadd.f32 %v3979, %v4019
    %v4021 = vpop.f32.mrf.mxu0
    %4022 = vdwg.mxu0
    %4023 = vmatprep.subr.bf16.mxu0 0
    %4024 = vmatpush1.bf16.xpose.msra.mxu0 0
    %4025 = vmatprep.subr.bf16.mxu0 0
    %4026 = vmatpush1.bf16.xpose.msra.mxu0 0
    %4027 = vmatprep.subr.bf16.mxu0 0
    %4028 = vmatpush1.bf16.xpose.msra.mxu0 0
    %4029 = vmatprep.subr.bf16.mxu0 0
    %4030 = vmatpush1.bf16.xpose.msra.mxu0 0
    %4031 = vmatprep.subr.bf16.mxu0 0
    %4032 = vmatpush1.bf16.xpose.msra.mxu0 0
    %4033 = vmatprep.subr.bf16.mxu0 0
    %4034 = vmatpush1.bf16.xpose.msra.mxu0 0
    %4035 = vmatprep.subr.bf16.mxu0 %v2060
    %4036 = vmatpush1.bf16.xpose.msra.mxu0 %v2059
    %4037 = vmatprep.subr.bf16.mxu0 %v2044
    %4038 = vmatpush1.bf16.xpose.msra.mxu0 %v2043
    %4039 = vmatprep.subr.bf16.mxu0 0
    %4040 = vmatpush2.bf16.xpose.msra.mxu0 0
    %4041 = vmatprep.subr.bf16.mxu0 0
    %4042 = vmatpush2.bf16.xpose.msra.mxu0 0
    %4043 = vmatprep.subr.bf16.mxu0 0
    %4044 = vmatpush2.bf16.xpose.msra.mxu0 0
    %4045 = vmatprep.subr.bf16.mxu0 0
    %4046 = vmatpush2.bf16.xpose.msra.mxu0 0
    %4047 = vmatprep.subr.bf16.mxu0 0
    %4048 = vmatpush2.bf16.xpose.msra.mxu0 0
    %4049 = vmatprep.subr.bf16.mxu0 0
    %4050 = vmatpush2.bf16.xpose.msra.mxu0 0
    %4051 = vmatprep.subr.bf16.mxu0 0
    %4052 = vmatpush2.bf16.xpose.msra.mxu0 0
    %4053 = vmatprep.subr.bf16.mxu0 0
    %4054 = vmatpush2.bf16.xpose.msra.mxu0 0
    %4055 = vmatprep.mubr.bf16.mxu0 %v3930
    %4056 = vmatmul.mubr.bf16.gmra.mxu0 %v3929
    %v4057 = vpop.f32.mrf.mxu0
    %v4058 = vadd.f32 %v4017, %v4057
    %v4059 = vpop.f32.mrf.mxu0
    %v4060 = vpop.f32.mrf.mxu0
    %v4061 = vadd.f32 %v4020, %v4060
    %v4062 = vpop.f32.mrf.mxu0
    %4063 = vdwg.mxu0
    %4064 = vmatprep.subr.bf16.mxu0 0
    %4065 = vmatpush1.bf16.xpose.msra.mxu0 0
    %4066 = vmatprep.subr.bf16.mxu0 0
    %4067 = vmatpush1.bf16.xpose.msra.mxu0 0
    %4068 = vmatprep.subr.bf16.mxu0 0
    %4069 = vmatpush1.bf16.xpose.msra.mxu0 0
    %4070 = vmatprep.subr.bf16.mxu0 0
    %4071 = vmatpush1.bf16.xpose.msra.mxu0 0
    %4072 = vmatprep.subr.bf16.mxu0 0
    %4073 = vmatpush1.bf16.xpose.msra.mxu0 0
    %4074 = vmatprep.subr.bf16.mxu0 0
    %4075 = vmatpush1.bf16.xpose.msra.mxu0 0
    %4076 = vmatprep.subr.bf16.mxu0 %v2062
    %4077 = vmatpush1.bf16.xpose.msra.mxu0 %v2061
    %4078 = vmatprep.subr.bf16.mxu0 %v2046
    %4079 = vmatpush1.bf16.xpose.msra.mxu0 %v2045
    %4080 = vmatprep.subr.bf16.mxu0 0
    %4081 = vmatpush2.bf16.xpose.msra.mxu0 0
    %4082 = vmatprep.subr.bf16.mxu0 0
    %4083 = vmatpush2.bf16.xpose.msra.mxu0 0
    %4084 = vmatprep.subr.bf16.mxu0 0
    %4085 = vmatpush2.bf16.xpose.msra.mxu0 0
    %4086 = vmatprep.subr.bf16.mxu0 0
    %4087 = vmatpush2.bf16.xpose.msra.mxu0 0
    %4088 = vmatprep.subr.bf16.mxu0 0
    %4089 = vmatpush2.bf16.xpose.msra.mxu0 0
    %4090 = vmatprep.subr.bf16.mxu0 0
    %4091 = vmatpush2.bf16.xpose.msra.mxu0 0
    %4092 = vmatprep.subr.bf16.mxu0 0
    %4093 = vmatpush2.bf16.xpose.msra.mxu0 0
    %4094 = vmatprep.subr.bf16.mxu0 0
    %4095 = vmatpush2.bf16.xpose.msra.mxu0 0
    %4096 = vmatprep.mubr.bf16.mxu0 %v3932
    %4097 = vmatmul.mubr.bf16.gmra.mxu0 %v3931
    %v4098 = vpop.f32.mrf.mxu0
    %v4099 = vadd.f32 %v4058, %v4098
    %v4100 = vpop.f32.mrf.mxu0
    %v4101 = vpop.f32.mrf.mxu0
    %v4102 = vadd.f32 %v4061, %v4101
    %v4103 = vpop.f32.mrf.mxu0
    %4104 = vdwg.mxu0
    %4105 = vmatprep.subr.bf16.mxu0 0
    %4106 = vmatpush1.bf16.xpose.msra.mxu0 0
    %4107 = vmatprep.subr.bf16.mxu0 0
    %4108 = vmatpush1.bf16.xpose.msra.mxu0 0
    %4109 = vmatprep.subr.bf16.mxu0 0
    %4110 = vmatpush1.bf16.xpose.msra.mxu0 0
    %4111 = vmatprep.subr.bf16.mxu0 0
    %4112 = vmatpush1.bf16.xpose.msra.mxu0 0
    %4113 = vmatprep.subr.bf16.mxu0 0
    %4114 = vmatpush1.bf16.xpose.msra.mxu0 0
    %4115 = vmatprep.subr.bf16.mxu0 0
    %4116 = vmatpush1.bf16.xpose.msra.mxu0 0
    %4117 = vmatprep.subr.bf16.mxu0 %v2064
    %4118 = vmatpush1.bf16.xpose.msra.mxu0 %v2063
    %4119 = vmatprep.subr.bf16.mxu0 %v2048
    %4120 = vmatpush1.bf16.xpose.msra.mxu0 %v2047
    %4121 = vmatprep.subr.bf16.mxu0 0
    %4122 = vmatpush2.bf16.xpose.msra.mxu0 0
    %4123 = vmatprep.subr.bf16.mxu0 0
    %4124 = vmatpush2.bf16.xpose.msra.mxu0 0
    %4125 = vmatprep.subr.bf16.mxu0 0
    %4126 = vmatpush2.bf16.xpose.msra.mxu0 0
    %4127 = vmatprep.subr.bf16.mxu0 0
    %4128 = vmatpush2.bf16.xpose.msra.mxu0 0
    %4129 = vmatprep.subr.bf16.mxu0 0
    %4130 = vmatpush2.bf16.xpose.msra.mxu0 0
    %4131 = vmatprep.subr.bf16.mxu0 0
    %4132 = vmatpush2.bf16.xpose.msra.mxu0 0
    %4133 = vmatprep.subr.bf16.mxu0 0
    %4134 = vmatpush2.bf16.xpose.msra.mxu0 0
    %4135 = vmatprep.subr.bf16.mxu0 0
    %4136 = vmatpush2.bf16.xpose.msra.mxu0 0
    %4137 = vmatprep.mubr.bf16.mxu0 %v3934
    %4138 = vmatmul.mubr.bf16.gmra.mxu0 %v3933
    %v4139 = vpop.f32.mrf.mxu0
    %v4140 = vadd.f32 %v4099, %v4139
    %v4141 = vpop.f32.mrf.mxu0
    %v4142 = vpop.f32.mrf.mxu0
    %v4143 = vadd.f32 %v4102, %v4142
    %v4144 = vpop.f32.mrf.mxu0
    %4145 = vdwg.mxu0
    %4146 = vmatprep.subr.bf16.mxu0 0
    %4147 = vmatpush1.bf16.xpose.msra.mxu0 0
    %4148 = vmatprep.subr.bf16.mxu0 0
    %4149 = vmatpush1.bf16.xpose.msra.mxu0 0
    %4150 = vmatprep.subr.bf16.mxu0 0
    %4151 = vmatpush1.bf16.xpose.msra.mxu0 0
    %4152 = vmatprep.subr.bf16.mxu0 0
    %4153 = vmatpush1.bf16.xpose.msra.mxu0 0
    %4154 = vmatprep.subr.bf16.mxu0 0
    %4155 = vmatpush1.bf16.xpose.msra.mxu0 0
    %4156 = vmatprep.subr.bf16.mxu0 0
    %4157 = vmatpush1.bf16.xpose.msra.mxu0 0
    %4158 = vmatprep.subr.bf16.mxu0 %v2066
    %4159 = vmatpush1.bf16.xpose.msra.mxu0 %v2065
    %4160 = vmatprep.subr.bf16.mxu0 %v2050
    %4161 = vmatpush1.bf16.xpose.msra.mxu0 %v2049
    %4162 = vmatprep.subr.bf16.mxu0 0
    %4163 = vmatpush2.bf16.xpose.msra.mxu0 0
    %4164 = vmatprep.subr.bf16.mxu0 0
    %4165 = vmatpush2.bf16.xpose.msra.mxu0 0
    %4166 = vmatprep.subr.bf16.mxu0 0
    %4167 = vmatpush2.bf16.xpose.msra.mxu0 0
    %4168 = vmatprep.subr.bf16.mxu0 0
    %4169 = vmatpush2.bf16.xpose.msra.mxu0 0
    %4170 = vmatprep.subr.bf16.mxu0 0
    %4171 = vmatpush2.bf16.xpose.msra.mxu0 0
    %4172 = vmatprep.subr.bf16.mxu0 0
    %4173 = vmatpush2.bf16.xpose.msra.mxu0 0
    %4174 = vmatprep.subr.bf16.mxu0 0
    %4175 = vmatpush2.bf16.xpose.msra.mxu0 0
    %4176 = vmatprep.subr.bf16.mxu0 0
    %4177 = vmatpush2.bf16.xpose.msra.mxu0 0
    %4178 = vmatprep.mubr.bf16.mxu0 %v3936
    %4179 = vmatmul.mubr.bf16.gmra.mxu0 %v3935
    %v4180 = vpop.f32.mrf.mxu0
    %v4181 = vadd.f32 %v4140, %v4180
    %v4182 = vpop.f32.mrf.mxu0
    %v4183 = vpop.f32.mrf.mxu0
    %v4184 = vadd.f32 %v4143, %v4183
    %v4185 = vpop.f32.mrf.mxu0
    %4186 = vdwg.mxu0
    %4187 = vmatprep.subr.bf16.mxu0 0
    %4188 = vmatpush1.bf16.xpose.msra.mxu0 0
    %4189 = vmatprep.subr.bf16.mxu0 0
    %4190 = vmatpush1.bf16.xpose.msra.mxu0 0
    %4191 = vmatprep.subr.bf16.mxu0 0
    %4192 = vmatpush1.bf16.xpose.msra.mxu0 0
    %4193 = vmatprep.subr.bf16.mxu0 0
    %4194 = vmatpush1.bf16.xpose.msra.mxu0 0
    %4195 = vmatprep.subr.bf16.mxu0 0
    %4196 = vmatpush1.bf16.xpose.msra.mxu0 0
    %4197 = vmatprep.subr.bf16.mxu0 0
    %4198 = vmatpush1.bf16.xpose.msra.mxu0 0
    %4199 = vmatprep.subr.bf16.mxu0 %v2068
    %4200 = vmatpush1.bf16.xpose.msra.mxu0 %v2067
    %4201 = vmatprep.subr.bf16.mxu0 %v2052
    %4202 = vmatpush1.bf16.xpose.msra.mxu0 %v2051
    %4203 = vmatprep.subr.bf16.mxu0 0
    %4204 = vmatpush2.bf16.xpose.msra.mxu0 0
    %4205 = vmatprep.subr.bf16.mxu0 0
    %4206 = vmatpush2.bf16.xpose.msra.mxu0 0
    %4207 = vmatprep.subr.bf16.mxu0 0
    %4208 = vmatpush2.bf16.xpose.msra.mxu0 0
    %4209 = vmatprep.subr.bf16.mxu0 0
    %4210 = vmatpush2.bf16.xpose.msra.mxu0 0
    %4211 = vmatprep.subr.bf16.mxu0 0
    %4212 = vmatpush2.bf16.xpose.msra.mxu0 0
    %4213 = vmatprep.subr.bf16.mxu0 0
    %4214 = vmatpush2.bf16.xpose.msra.mxu0 0
    %4215 = vmatprep.subr.bf16.mxu0 0
    %4216 = vmatpush2.bf16.xpose.msra.mxu0 0
    %4217 = vmatprep.subr.bf16.mxu0 0
    %4218 = vmatpush2.bf16.xpose.msra.mxu0 0
    %4219 = vmatprep.mubr.bf16.mxu0 %v3938
    %4220 = vmatmul.mubr.bf16.gmra.mxu0 %v3937
    %v4221 = vpop.f32.mrf.mxu0
    %v4222 = vadd.f32 %v4181, %v4221
    %v4223 = vpop.f32.mrf.mxu0
    %v4224 = vpop.f32.mrf.mxu0
    %v4225 = vadd.f32 %v4184, %v4224
    %v4226 = vpop.f32.mrf.mxu0
    %4227 = vdwg.mxu0
    %4228 = vmatprep.subr.bf16.mxu0 0
    %4229 = vmatpush1.bf16.xpose.msra.mxu0 0
    %4230 = vmatprep.subr.bf16.mxu0 0
    %4231 = vmatpush1.bf16.xpose.msra.mxu0 0
    %4232 = vmatprep.subr.bf16.mxu0 0
    %4233 = vmatpush1.bf16.xpose.msra.mxu0 0
    %4234 = vmatprep.subr.bf16.mxu0 0
    %4235 = vmatpush1.bf16.xpose.msra.mxu0 0
    %4236 = vmatprep.subr.bf16.mxu0 0
    %4237 = vmatpush1.bf16.xpose.msra.mxu0 0
    %4238 = vmatprep.subr.bf16.mxu0 0
    %4239 = vmatpush1.bf16.xpose.msra.mxu0 0
    %4240 = vmatprep.subr.bf16.mxu0 %v2070
    %4241 = vmatpush1.bf16.xpose.msra.mxu0 %v2069
    %4242 = vmatprep.subr.bf16.mxu0 %v2054
    %4243 = vmatpush1.bf16.xpose.msra.mxu0 %v2053
    %4244 = vmatprep.subr.bf16.mxu0 0
    %4245 = vmatpush2.bf16.xpose.msra.mxu0 0
    %4246 = vmatprep.subr.bf16.mxu0 0
    %4247 = vmatpush2.bf16.xpose.msra.mxu0 0
    %4248 = vmatprep.subr.bf16.mxu0 0
    %4249 = vmatpush2.bf16.xpose.msra.mxu0 0
    %4250 = vmatprep.subr.bf16.mxu0 0
    %4251 = vmatpush2.bf16.xpose.msra.mxu0 0
    %4252 = vmatprep.subr.bf16.mxu0 0
    %4253 = vmatpush2.bf16.xpose.msra.mxu0 0
    %4254 = vmatprep.subr.bf16.mxu0 0
    %4255 = vmatpush2.bf16.xpose.msra.mxu0 0
    %4256 = vmatprep.subr.bf16.mxu0 0
    %4257 = vmatpush2.bf16.xpose.msra.mxu0 0
    %4258 = vmatprep.subr.bf16.mxu0 0
    %4259 = vmatpush2.bf16.xpose.msra.mxu0 0
    %4260 = vmatprep.mubr.bf16.mxu0 %v3940
    %4261 = vmatmul.mubr.bf16.gmra.mxu0 %v3939
    %v4262 = vpop.f32.mrf.mxu0
    %v4263 = vadd.f32 %v4222, %v4262
    %v4264 = vpop.f32.mrf.mxu0
    %v4265 = vpop.f32.mrf.mxu0
    %v4266 = vadd.f32 %v4225, %v4265
    %v4267 = vpop.f32.mrf.mxu0
    %4268 = vdwg.mxu0
    %v4269 = vadd.f32 %v3543, %v4263
    %v4270 = vadd.f32 %v3544, %v4266
    %v4271 = vsel %vm220, %v4269, 0.0
    %4272 = vadd.xlane.f32.xlu0 %v4271
    %v4273 = vpop.xlane.xlu0 %4272
    %v4274 = vsel %vm220, %v4270, 0.0
    %4275 = vadd.xlane.f32.xlu0 %v4274
    %v4276 = vpop.xlane.xlu0 %4275
    %v4277 = vmul.f32 %v4273, %v1247
    %v4278 = vmul.f32 %v4276, %v1247
    %v4279 = vsub.f32 %v4269, %v4277
    %v4280 = vsub.f32 %v4270, %v4278
    %v4281 = vmul.f32 %v4279, %v4279
    %v4282 = vmul.f32 %v4280, %v4280
    %v4283 = vsel %vm220, %v4281, 0.0
    %4284 = vadd.xlane.f32.xlu0 %v4283
    %v4285 = vpop.xlane.xlu0 %4284
    %v4286 = vsel %vm220, %v4282, 0.0
    %4287 = vadd.xlane.f32.xlu0 %v4286
    %v4288 = vpop.xlane.xlu0 %4287
    %v4289 = vmul.f32 %v4285, %v1260
    %v4290 = vmul.f32 %v4288, %v1260
    %v4291 = vrsqrt.pop %v4289
    %v4292 = vmul.f32 %v4289, %v4291
    %vm4293 = vcmp.eq.f32.partialorder %v4289, inf
    %v4294 = vsel %vm4293, %v4289, %v4292
    %vm4295 = vcmp.eq.f32.partialorder %v4289, 0.0
    %v4296 = vand.u32 %v4289, 2147483648
    %v4297 = vsel %vm4295, %v4296, %v4294
    %v4298 = vrsqrt.pop %v4290
    %v4299 = vmul.f32 %v4290, %v4298
    %vm4300 = vcmp.eq.f32.partialorder %v4290, inf
    %v4301 = vsel %vm4300, %v4290, %v4299
    %vm4302 = vcmp.eq.f32.partialorder %v4290, 0.0
    %v4303 = vand.u32 %v4290, 2147483648
    %v4304 = vsel %vm4302, %v4303, %v4301
    %v4305 = vadd.f32 %v4297, 1e-06
    %v4306 = vadd.f32 %v4304, 1e-06
    %v4307 = vrcp.pop %v4305
    %v4308 = vrcp.pop %v4306
    %v4309 = vmul.f32 %v4279, %v4307
    %v4310 = vmul.f32 %v4280, %v4308
    %v4311 = vmul.f32 %v2481, %v4309
    %v4312 = vmul.f32 %v2481, %v4310
    %v4313 = vadd.f32 %v4311, %v2489
    %v4314 = vadd.f32 %v4312, %v2489
    %4315 = vst.msk [vmem:[#allocation14] sm:$0xff] %vm220, %v4313
    %4316 = vst.msk [vmem:[#allocation14 + $0x8] sm:$0xff] %vm220, %v4314
    // Predicated region
    $region74: #{tpu_custom_call.1} parent=1 // pred_check
      _
    $region75: #{tpu_custom_call.1} parent=1 // pred_check_branch
      %4318 = sbr.rel (0) target = $region77
    $region76: #{tpu_custom_call.1} parent=1 // pred_region
      %s4320 = ssub.s32 256, 256
      %4321 = vsyncadd [#allocation4], %s4320
      %s4322 = sshll.u32 [#allocation14], 4
      %s4323 = int_to_ptr.vmem [resolvable:$true] %s4322
      %4328 = dma.vmem_to_hbm [thread:$0]  %s4323, 256, %s11, [#allocation4], 128, 128, 8
    $region77: #{tpu_custom_call.1} parent=1 // pred_fallthru
      _
    // Predicated region
    $region78: #{tpu_custom_call.1} parent=1 // pred_check
      _
    $region79: #{tpu_custom_call.1} parent=1 // pred_check_branch
      %4330 = sbr.rel (0) target = $region81
    $region80: #{tpu_custom_call.1} parent=1 // pred_region
      %4331 = dma.done [#allocation4], 256
    $region81: #{tpu_custom_call.1} parent=1 // pred_fallthru
      _
    %4332 = vsyncpa [#allocation3], 1
    %4333 = vsyncpa [#allocation6], 1
    %4334 = vsyncpa [#allocation9], 1
    %4335 = vsyncpa [#allocation12], 1
    %4336 = vsyncpa [#allocation4], 1

</llo_original>
